<compile_context>
chip_gen: v7x
topology: tpu7x:2x2x1
jax: 0.10.0
libtpu: 0.0.40
codegen_flags: <defaults>
</compile_context>

<pallas_src>
import functools

import jax
import jax.numpy as jnp
from jax import lax
from jax.experimental import pallas as pl
from jax.experimental.pallas import tpu as pltpu


# --------------------------- in-kernel helpers --------------------------------

def _dense(x, w, b):
  """bf16 matmul on the MXU with f32 accumulation; bias added in f32."""
  return jnp.dot(x.astype(jnp.bfloat16), w.astype(jnp.bfloat16),
                 preferred_element_type=jnp.float32) + b


def _layer_norm(x, g, b):
  mean = jnp.mean(x, axis=-1, keepdims=True)
  c = x - mean
  var = jnp.mean(c * c, axis=-1, keepdims=True)
  return c * lax.rsqrt(var + 1e-5) * g + b


def _mha(q, k, v, wo, bo, num_heads):
  """Per-batch multi-head attention, no mask.

  q: (Sq, E) f32, k/v: (Sk, E) f32.  Head outputs are accumulated straight
  through the output projection (no concatenate / cross-lane relayout).
  Softmax statistics stay in f32; matmul operands are cast to bf16.
  """
  E = q.shape[-1]
  dh = E // num_heads
  scale = 1.0 / float(dh) ** 0.5
  qb = q.astype(jnp.bfloat16)
  kb = k.astype(jnp.bfloat16)
  vb = v.astype(jnp.bfloat16)
  wo_b = wo.astype(jnp.bfloat16)
  out = jnp.zeros((q.shape[0], wo.shape[-1]), jnp.float32) + bo
  for h in range(num_heads):
    sl = slice(h * dh, (h + 1) * dh)
    s = lax.dot_general(qb[:, sl], kb[:, sl], (((1,), (1,)), ((), ())),
                        preferred_element_type=jnp.float32) * scale
    s = s - jnp.max(s, axis=-1, keepdims=True)
    p = jnp.exp(s)
    p = p * pl.reciprocal(jnp.sum(p, axis=-1, keepdims=True), approx=True)
    oh = jnp.dot(p.astype(jnp.bfloat16), vb[:, sl],
                 preferred_element_type=jnp.float32)            # (Sq, dh)
    out = out + jnp.dot(oh.astype(jnp.bfloat16), wo_b[sl, :],
                        preferred_element_type=jnp.float32)     # fold into Wo
  return out


# ------------------------------- kernels --------------------------------------
# grid = (batch, layer); layer weights are streamed per grid step, the running
# activation lives in a VMEM scratch carried across the layer axis.

def _encoder_kernel(src_ref,
                    wqkv, bqkv, wo, bo, ln1g, ln1b,
                    w1, b1, w2, b2, ln2g, ln2b,
                    fng, fnb,
                    mem_ref,
                    x_scr,
                    *, E, H, n_layers):
  l = pl.program_id(1)

  @pl.when(l == 0)
  def _():
    x_scr[...] = src_ref[0].astype(jnp.float32)

  x = x_scr[...]
  # self-attention block (post-norm)
  qkv = _dense(x, wqkv[0], bqkv[0])                       # (S, 3E)
  a = _mha(qkv[:, :E], qkv[:, E:2 * E], qkv[:, 2 * E:], wo[0], bo[0], H)
  x = _layer_norm(x + a, ln1g[0], ln1b[0])
  # feed-forward block
  ff = _dense(jnp.maximum(_dense(x, w1[0], b1[0]), 0.0), w2[0], b2[0])
  x = _layer_norm(x + ff, ln2g[0], ln2b[0])
  x_scr[...] = x

  @pl.when(l == n_layers - 1)
  def _():
    mem_ref[0] = _layer_norm(x, fng[...], fnb[...])       # encoder final norm


def _decoder_kernel(trg_ref, mem_ref,
                    wqkv, bqkv, wo1, bo1, ln1g, ln1b,
                    wq, bq, wkv, bkv, wo2, bo2, ln2g, ln2b,
                    w1, b1, w2, b2, ln3g, ln3b,
                    fng, fnb, fcw, fcb,
                    out_ref,
                    y_scr,
                    *, E, H, n_layers):
  l = pl.program_id(1)

  @pl.when(l == 0)
  def _():
    y_scr[...] = trg_ref[0].astype(jnp.float32)

  y = y_scr[...]
  mem = mem_ref[0]                                        # (S, E)

  # self-attention
  qkv = _dense(y, wqkv[0], bqkv[0])                       # (T, 3E)
  a = _mha(qkv[:, :E], qkv[:, E:2 * E], qkv[:, 2 * E:], wo1[0], bo1[0], H)
  y = _layer_norm(y + a, ln1g[0], ln1b[0])
  # cross-attention against encoder memory
  qc = _dense(y, wq[0], bq[0])                            # (T, E)
  kv = _dense(mem, wkv[0], bkv[0])                        # (S, 2E)
  c = _mha(qc, kv[:, :E], kv[:, E:], wo2[0], bo2[0], H)
  y = _layer_norm(y + c, ln2g[0], ln2b[0])
  # feed-forward
  ff = _dense(jnp.maximum(_dense(y, w1[0], b1[0]), 0.0), w2[0], b2[0])
  y = _layer_norm(y + ff, ln3g[0], ln3b[0])
  y_scr[...] = y

  @pl.when(l == n_layers - 1)
  def _():
    yf = _layer_norm(y, fng[...], fnb[...])               # decoder final norm
    out_ref[0] = _dense(yf, fcw[...], fcb[...])           # fused fc_out (padded lanes)


# ------------------------------ spec builders ---------------------------------

def _layer_spec(arr):
  """Stacked per-layer array (L, ...): stream block l each grid step."""
  nd = arr.ndim
  return pl.BlockSpec((1,) + arr.shape[1:],
                      lambda b, l: (l,) + (0,) * (nd - 1))


def _const_spec(arr):
  """Layer-independent array: whole thing, constant block."""
  nd = arr.ndim
  return pl.BlockSpec(arr.shape, lambda b, l: (0,) * nd)


def _batch_spec(arr):
  """(B, rows, E) activation: one batch per grid step along axis 0."""
  return pl.BlockSpec((1,) + arr.shape[1:], lambda b, l: (b, 0, 0))


def _vmem_limit_bytes():
  # Generation-aware VMEM budget (128 MiB on v5e/v6e, 64 MiB on v7x).
  try:
    cap = getattr(pltpu.get_tpu_info(), "vmem_capacity_bytes", None)
    if cap:
      return int(cap) * 3 // 4
  except Exception:
    pass
  return None


_VMEM_LIMIT_BYTES = _vmem_limit_bytes()


def _compiler_params():
  kwargs = dict(dimension_semantics=("parallel", "arbitrary"))
  if _VMEM_LIMIT_BYTES is not None:
    kwargs["vmem_limit_bytes"] = _VMEM_LIMIT_BYTES
  return pltpu.CompilerParams(**kwargs)


# -------------------------------- wrapper --------------------------------------

@functools.partial(jax.jit, static_argnums=(3,))
def transformer_forward(src, trg, params, num_heads):
  S, B, E = src.shape
  T = trg.shape[0]
  assert E % num_heads == 0
  n_enc = params["e_wqkv"].shape[0]
  n_dec = params["d_wqkv"].shape[0]
  Tout = params["fc_w"].shape[-1]
  Tout_pad = ((Tout + 127) // 128) * 128

  # dropout(src), dropout(trg) -> identity at inference.
  # Batch-major layout so each grid step gets one batch's rows as a dense tile.
  src_b = src.transpose(1, 0, 2)            # (B, S, E)
  trg_b = trg.transpose(1, 0, 2)            # (B, T, E)

  # Pad fc_out to a lane-dense (multiple of 128) width for an unmasked final store.
  fc_w = jnp.pad(params["fc_w"], ((0, 0), (0, Tout_pad - Tout)))
  fc_b = jnp.pad(params["fc_b"], ((0, 0), (0, Tout_pad - Tout)))

  cparams = _compiler_params()

  # ------------------------------- encoder ------------------------------------
  enc_weights = (
      params["e_wqkv"], params["e_bqkv"], params["e_wo"], params["e_bo"],
      params["e_ln1g"], params["e_ln1b"],
      params["e_w1"], params["e_b1"], params["e_w2"], params["e_b2"],
      params["e_ln2g"], params["e_ln2b"])
  enc_in = (src_b,) + enc_weights + (params["enc_ng"], params["enc_nb"])
  enc_specs = ([_batch_spec(src_b)] + [_layer_spec(w) for w in enc_weights]
               + [_const_spec(params["enc_ng"]), _const_spec(params["enc_nb"])])

  mem = pl.pallas_call(
      functools.partial(_encoder_kernel, E=E, H=num_heads, n_layers=n_enc),
      out_shape=jax.ShapeDtypeStruct((B, S, E), jnp.float32),
      grid_spec=pltpu.PrefetchScalarGridSpec(
          num_scalar_prefetch=0,
          grid=(B, n_enc),
          in_specs=enc_specs,
          out_specs=pl.BlockSpec((1, S, E), lambda b, l: (b, 0, 0)),
          scratch_shapes=[pltpu.VMEM((S, E), jnp.float32)]),
      compiler_params=cparams,
  )(*enc_in)

  # ------------------------------- decoder ------------------------------------
  dec_weights = (
      params["d_wqkv"], params["d_bqkv"], params["d_wo1"], params["d_bo1"],
      params["d_ln1g"], params["d_ln1b"],
      params["d_wq"], params["d_bq"], params["d_wkv"], params["d_bkv"],
      params["d_wo2"], params["d_bo2"], params["d_ln2g"], params["d_ln2b"],
      params["d_w1"], params["d_b1"], params["d_w2"], params["d_b2"],
      params["d_ln3g"], params["d_ln3b"])
  dec_in = ((trg_b, mem) + dec_weights
            + (params["dec_ng"], params["dec_nb"], fc_w, fc_b))
  dec_specs = ([_batch_spec(trg_b), _batch_spec(mem)]
               + [_layer_spec(w) for w in dec_weights]
               + [_const_spec(params["dec_ng"]), _const_spec(params["dec_nb"]),
                  _const_spec(fc_w), _const_spec(fc_b)])

  out_pad = pl.pallas_call(
      functools.partial(_decoder_kernel, E=E, H=num_heads, n_layers=n_dec),
      out_shape=jax.ShapeDtypeStruct((B, T, Tout_pad), jnp.float32),
      grid_spec=pltpu.PrefetchScalarGridSpec(
          num_scalar_prefetch=0,
          grid=(B, n_dec),
          in_specs=dec_specs,
          out_specs=pl.BlockSpec((1, T, Tout_pad), lambda b, l: (b, 0, 0)),
          scratch_shapes=[pltpu.VMEM((T, E), jnp.float32)]),
      compiler_params=cparams,
  )(*dec_in)

  return out_pad[:, :, :Tout].transpose(1, 0, 2)          # (T, B, trg_embed)


# --------------------------- parameter creation --------------------------------
# Linear weights stored pre-transposed (in_features, out_features) in bf16 (MXU-native);
# biases and LayerNorm params stay f32; QKV/KV projections pre-packed along the output
# axis; per-layer params stacked on axis 0 so they can be streamed by the layer grid.

def init_params(key, E, F, trg_embed, n_enc, n_dec):
  keys = iter(jax.random.split(key, 64))

  def wmat(shape, scale=0.05):
    return (scale * jax.random.normal(next(keys), shape)).astype(jnp.bfloat16)

  def bvec(shape, scale=0.05):
    return (scale * jax.random.normal(next(keys), shape)).astype(jnp.float32)

  def ones(shape):
    return jnp.ones(shape, jnp.float32)

  def zeros(shape):
    return jnp.zeros(shape, jnp.float32)

  Le, Ld = n_enc, n_dec
  return dict(
      # encoder layers
      e_wqkv=wmat((Le, E, 3 * E)), e_bqkv=bvec((Le, 1, 3 * E)),
      e_wo=wmat((Le, E, E)), e_bo=bvec((Le, 1, E)),
      e_ln1g=ones((Le, 1, E)), e_ln1b=zeros((Le, 1, E)),
      e_w1=wmat((Le, E, F)), e_b1=bvec((Le, 1, F)),
      e_w2=wmat((Le, F, E)), e_b2=bvec((Le, 1, E)),
      e_ln2g=ones((Le, 1, E)), e_ln2b=zeros((Le, 1, E)),
      enc_ng=ones((1, E)), enc_nb=zeros((1, E)),
      # decoder layers
      d_wqkv=wmat((Ld, E, 3 * E)), d_bqkv=bvec((Ld, 1, 3 * E)),
      d_wo1=wmat((Ld, E, E)), d_bo1=bvec((Ld, 1, E)),
      d_ln1g=ones((Ld, 1, E)), d_ln1b=zeros((Ld, 1, E)),
      d_wq=wmat((Ld, E, E)), d_bq=bvec((Ld, 1, E)),
      d_wkv=wmat((Ld, E, 2 * E)), d_bkv=bvec((Ld, 1, 2 * E)),
      d_wo2=wmat((Ld, E, E)), d_bo2=bvec((Ld, 1, E)),
      d_ln2g=ones((Ld, 1, E)), d_ln2b=zeros((Ld, 1, E)),
      d_w1=wmat((Ld, E, F)), d_b1=bvec((Ld, 1, F)),
      d_w2=wmat((Ld, F, E)), d_b2=bvec((Ld, 1, E)),
      d_ln3g=ones((Ld, 1, E)), d_ln3b=zeros((Ld, 1, E)),
      dec_ng=ones((1, E)), dec_nb=zeros((1, E)),
      # output head (padded to a 128-lane multiple inside the wrapper)
      fc_w=wmat((E, trg_embed)), fc_b=bvec((1, trg_embed)),
  )


# ----------------------------------- main ---------------------------------------

if __name__ == "__main__":
  embedding_size = 32
  trg_embed_size = 16
  num_heads = 4
  num_encoder_layers = 2
  num_decoder_layers = 2
  forward_expansion = 64   # dim_feedforward in nn.Transformer
  src_seq, trg_seq, batch = 8, 6, 2

  key = jax.random.PRNGKey(0)
  k_src, k_trg, k_par = jax.random.split(key, 3)
  src = jax.random.normal(k_src, (src_seq, batch, embedding_size), jnp.float32)
  trg = jax.random.normal(k_trg, (trg_seq, batch, embedding_size), jnp.float32)

  params = init_params(k_par, embedding_size, forward_expansion,
                       trg_embed_size, num_encoder_layers, num_decoder_layers)

  out = transformer_forward(src, trg, params, num_heads)
  out = jax.block_until_ready(out)
  assert out.shape == (trg_seq, batch, trg_embed_size), out.shape
  assert bool(jnp.all(jnp.isfinite(out)))
  print("KERNEL_OK")
</pallas_src>

<mosaic_0001>
module attributes {stable_mosaic.version = 11 : i64} {
  func.func @_encoder_kernel(%arg0: i32, %arg1: i32, %arg2: memref<1x8x32xf32, #tpu.memory_space<vmem>>, %arg3: memref<1x32x96xbf16, #tpu.memory_space<vmem>>, %arg4: memref<1x1x96xf32, #tpu.memory_space<vmem>>, %arg5: memref<1x32x32xbf16, #tpu.memory_space<vmem>>, %arg6: memref<1x1x32xf32, #tpu.memory_space<vmem>>, %arg7: memref<1x1x32xf32, #tpu.memory_space<vmem>>, %arg8: memref<1x1x32xf32, #tpu.memory_space<vmem>>, %arg9: memref<1x32x64xbf16, #tpu.memory_space<vmem>>, %arg10: memref<1x1x64xf32, #tpu.memory_space<vmem>>, %arg11: memref<1x64x32xbf16, #tpu.memory_space<vmem>>, %arg12: memref<1x1x32xf32, #tpu.memory_space<vmem>>, %arg13: memref<1x1x32xf32, #tpu.memory_space<vmem>>, %arg14: memref<1x1x32xf32, #tpu.memory_space<vmem>>, %arg15: memref<1x32xf32, #tpu.memory_space<vmem>>, %arg16: memref<1x32xf32, #tpu.memory_space<vmem>>, %arg17: memref<1x8x32xf32, #tpu.memory_space<vmem>>, %arg18: memref<8x32xf32, #tpu.memory_space<vmem>>) attributes {dimension_semantics = [#tpu.dimension_semantics<parallel>, #tpu.dimension_semantics<arbitrary>], iteration_bounds = array<i64: 2, 2>, scalar_prefetch = 0 : i64, scratch_operands = 1 : i64, tpu.core_type = #tpu.core_type<tc>, window_params = [{transform_indices = @transform_0, window_bounds = array<i64: 1, 8, 32>}, {transform_indices = @transform_1, window_bounds = array<i64: 1, 32, 96>}, {transform_indices = @transform_2, window_bounds = array<i64: 1, 1, 96>}, {transform_indices = @transform_3, window_bounds = array<i64: 1, 32, 32>}, {transform_indices = @transform_4, window_bounds = array<i64: 1, 1, 32>}, {transform_indices = @transform_5, window_bounds = array<i64: 1, 1, 32>}, {transform_indices = @transform_6, window_bounds = array<i64: 1, 1, 32>}, {transform_indices = @transform_7, window_bounds = array<i64: 1, 32, 64>}, {transform_indices = @transform_8, window_bounds = array<i64: 1, 1, 64>}, {transform_indices = @transform_9, window_bounds = array<i64: 1, 64, 32>}, {transform_indices = @transform_10, window_bounds = array<i64: 1, 1, 32>}, {transform_indices = @transform_11, window_bounds = array<i64: 1, 1, 32>}, {transform_indices = @transform_12, window_bounds = array<i64: 1, 1, 32>}, {pipeline_mode = #tpu.pipeline_mode<synchronous>, transform_indices = @transform_13, window_bounds = array<i64: 1, 32>}, {pipeline_mode = #tpu.pipeline_mode<synchronous>, transform_indices = @transform_14, window_bounds = array<i64: 1, 32>}, {transform_indices = @transform_15, window_bounds = array<i64: 1, 8, 32>}]} {
    %c0_i32 = arith.constant 0 : i32
    %0 = arith.cmpi eq, %arg1, %c0_i32 : i32
    %1 = arith.extui %0 : i1 to i32
    %c0_i32_0 = arith.constant 0 : i32
    %2 = arith.cmpi ne, %1, %c0_i32_0 : i32
    scf.if %2 {
      %c0_79 = arith.constant 0 : index
      %c0_80 = arith.constant 0 : index
      %c0_81 = arith.constant 0 : index
      %185 = vector.load %arg2[%c0_79, %c0_80, %c0_81] : memref<1x8x32xf32, #tpu.memory_space<vmem>>, vector<1x8x32xf32>
      %186 = vector.shape_cast %185 : vector<1x8x32xf32> to vector<8x32xf32>
      %c0_82 = arith.constant 0 : index
      %c0_83 = arith.constant 0 : index
      %187 = vector.load %arg18[%c0_82, %c0_83] : memref<8x32xf32, #tpu.memory_space<vmem>>, vector<8x32xf32>
      tpu.vector_store %arg18[%c0_82, %c0_83], %186 {strides = array<i32>} : memref<8x32xf32, #tpu.memory_space<vmem>>, vector<8x32xf32>,
    } else {
    }
    %c0 = arith.constant 0 : index
    %c0_1 = arith.constant 0 : index
    %3 = vector.load %arg18[%c0, %c0_1] : memref<8x32xf32, #tpu.memory_space<vmem>>, vector<8x32xf32>
    %c0_2 = arith.constant 0 : index
    %c0_3 = arith.constant 0 : index
    %c0_4 = arith.constant 0 : index
    %4 = vector.load %arg3[%c0_2, %c0_3, %c0_4] : memref<1x32x96xbf16, #tpu.memory_space<vmem>>, vector<1x32x96xbf16>
    %5 = vector.shape_cast %4 : vector<1x32x96xbf16> to vector<32x96xbf16>
    %c0_5 = arith.constant 0 : index
    %c0_6 = arith.constant 0 : index
    %c0_7 = arith.constant 0 : index
    %6 = vector.load %arg4[%c0_5, %c0_6, %c0_7] : memref<1x1x96xf32, #tpu.memory_space<vmem>>, vector<1x1x96xf32>
    %7 = vector.shape_cast %6 : vector<1x1x96xf32> to vector<1x96xf32>
    %8 = arith.truncf %3 : vector<8x32xf32> to vector<8x32xbf16>
    %cst = arith.constant dense<0.000000e+00> : vector<8x96xf32>
    %9 = tpu.matmul %8, %5, %cst {dimension_numbers = #tpu.dot_dimension_numbers<[1], [0], [0], [1], [0, 0, 1, 1], [], []>} : vector<8x32xbf16>, vector<32x96xbf16>, vector<8x96xf32> -> vector<8x96xf32>
    %10 = vector.broadcast %7 : vector<1x96xf32> to vector<8x96xf32>
    %11 = arith.addf %9, %10 : vector<8x96xf32>
    %12 = vector.extract_strided_slice %11 {offsets = [0, 0], sizes = [8, 32], strides = [1, 1]} : vector<8x96xf32> to vector<8x32xf32>
    %13 = vector.extract_strided_slice %11 {offsets = [0, 32], sizes = [8, 32], strides = [1, 1]} : vector<8x96xf32> to vector<8x32xf32>
    %14 = vector.extract_strided_slice %11 {offsets = [0, 64], sizes = [8, 32], strides = [1, 1]} : vector<8x96xf32> to vector<8x32xf32>
    %c0_8 = arith.constant 0 : index
    %c0_9 = arith.constant 0 : index
    %c0_10 = arith.constant 0 : index
    %15 = vector.load %arg5[%c0_8, %c0_9, %c0_10] : memref<1x32x32xbf16, #tpu.memory_space<vmem>>, vector<1x32x32xbf16>
    %16 = vector.shape_cast %15 : vector<1x32x32xbf16> to vector<32x32xbf16>
    %c0_11 = arith.constant 0 : index
    %c0_12 = arith.constant 0 : index
    %c0_13 = arith.constant 0 : index
    %17 = vector.load %arg6[%c0_11, %c0_12, %c0_13] : memref<1x1x32xf32, #tpu.memory_space<vmem>>, vector<1x1x32xf32>
    %18 = vector.shape_cast %17 : vector<1x1x32xf32> to vector<1x32xf32>
    %19 = arith.truncf %12 : vector<8x32xf32> to vector<8x32xbf16>
    %20 = arith.truncf %13 : vector<8x32xf32> to vector<8x32xbf16>
    %21 = arith.truncf %14 : vector<8x32xf32> to vector<8x32xbf16>
    %cst_14 = arith.constant 0.000000e+00 : f32
    %22 = vector.broadcast %cst_14 : f32 to vector<8x32xf32>
    %23 = vector.broadcast %18 : vector<1x32xf32> to vector<8x32xf32>
    %24 = arith.addf %22, %23 : vector<8x32xf32>
    %25 = vector.extract_strided_slice %19 {offsets = [0, 0], sizes = [8, 8], strides = [1, 1]} : vector<8x32xbf16> to vector<8x8xbf16>
    %26 = vector.extract_strided_slice %20 {offsets = [0, 0], sizes = [8, 8], strides = [1, 1]} : vector<8x32xbf16> to vector<8x8xbf16>
    %cst_15 = arith.constant dense<0.000000e+00> : vector<8x8xf32>
    %27 = tpu.matmul %25, %26, %cst_15 {dimension_numbers = #tpu.dot_dimension_numbers<[1], [1], [0], [0], [0, 0, 1, 0], [], []>} : vector<8x8xbf16>, vector<8x8xbf16>, vector<8x8xf32> -> vector<8x8xf32>
    %cst_16 = arith.constant 0.353553385 : f32
    %28 = vector.broadcast %cst_16 : f32 to vector<8x8xf32>
    %29 = arith.mulf %27, %28 : vector<8x8xf32>
    %cst_17 = arith.constant dense<0xFF800000> : vector<8xf32>
    %30 = vector.multi_reduction <maximumf>, %29, %cst_17 [1] : vector<8x8xf32> to vector<8xf32>
    %31 = vector.shape_cast %30 : vector<8xf32> to vector<8x1xf32>
    %32 = vector.broadcast %31 : vector<8x1xf32> to vector<8x8xf32>
    %33 = arith.subf %29, %32 : vector<8x8xf32>
    %34 = math.exp %33 : vector<8x8xf32>
    %cst_18 = arith.constant dense<0.000000e+00> : vector<8xf32>
    %35 = vector.multi_reduction <add>, %34, %cst_18 [1] : vector<8x8xf32> to vector<8xf32>
    %36 = vector.shape_cast %35 : vector<8xf32> to vector<8x1xf32>
    %37 = tpu.reciprocal %36 {approx = true} : vector<8x1xf32> -> vector<8x1xf32>
    %38 = vector.broadcast %37 : vector<8x1xf32> to vector<8x8xf32>
    %39 = arith.mulf %34, %38 : vector<8x8xf32>
    %40 = arith.truncf %39 : vector<8x8xf32> to vector<8x8xbf16>
    %41 = vector.extract_strided_slice %21 {offsets = [0, 0], sizes = [8, 8], strides = [1, 1]} : vector<8x32xbf16> to vector<8x8xbf16>
    %cst_19 = arith.constant dense<0.000000e+00> : vector<8x8xf32>
    %42 = tpu.matmul %40, %41, %cst_19 {dimension_numbers = #tpu.dot_dimension_numbers<[1], [0], [0], [1], [0, 0, 1, 1], [], []>} : vector<8x8xbf16>, vector<8x8xbf16>, vector<8x8xf32> -> vector<8x8xf32>
    %43 = arith.truncf %42 : vector<8x8xf32> to vector<8x8xbf16>
    %44 = vector.extract_strided_slice %16 {offsets = [0, 0], sizes = [8, 32], strides = [1, 1]} : vector<32x32xbf16> to vector<8x32xbf16>
    %cst_20 = arith.constant dense<0.000000e+00> : vector<8x32xf32>
    %45 = tpu.matmul %43, %44, %cst_20 {dimension_numbers = #tpu.dot_dimension_numbers<[1], [0], [0], [1], [0, 0, 1, 1], [], []>} : vector<8x8xbf16>, vector<8x32xbf16>, vector<8x32xf32> -> vector<8x32xf32>
    %46 = arith.addf %24, %45 : vector<8x32xf32>
    %47 = vector.extract_strided_slice %19 {offsets = [0, 8], sizes = [8, 8], strides = [1, 1]} : vector<8x32xbf16> to vector<8x8xbf16>
    %48 = vector.extract_strided_slice %20 {offsets = [0, 8], sizes = [8, 8], strides = [1, 1]} : vector<8x32xbf16> to vector<8x8xbf16>
    %cst_21 = arith.constant dense<0.000000e+00> : vector<8x8xf32>
    %49 = tpu.matmul %47, %48, %cst_21 {dimension_numbers = #tpu.dot_dimension_numbers<[1], [1], [0], [0], [0, 0, 1, 0], [], []>} : vector<8x8xbf16>, vector<8x8xbf16>, vector<8x8xf32> -> vector<8x8xf32>
    %cst_22 = arith.constant 0.353553385 : f32
    %50 = vector.broadcast %cst_22 : f32 to vector<8x8xf32>
    %51 = arith.mulf %49, %50 : vector<8x8xf32>
    %cst_23 = arith.constant dense<0xFF800000> : vector<8xf32>
    %52 = vector.multi_reduction <maximumf>, %51, %cst_23 [1] : vector<8x8xf32> to vector<8xf32>
    %53 = vector.shape_cast %52 : vector<8xf32> to vector<8x1xf32>
    %54 = vector.broadcast %53 : vector<8x1xf32> to vector<8x8xf32>
    %55 = arith.subf %51, %54 : vector<8x8xf32>
    %56 = math.exp %55 : vector<8x8xf32>
    %cst_24 = arith.constant dense<0.000000e+00> : vector<8xf32>
    %57 = vector.multi_reduction <add>, %56, %cst_24 [1] : vector<8x8xf32> to vector<8xf32>
    %58 = vector.shape_cast %57 : vector<8xf32> to vector<8x1xf32>
    %59 = tpu.reciprocal %58 {approx = true} : vector<8x1xf32> -> vector<8x1xf32>
    %60 = vector.broadcast %59 : vector<8x1xf32> to vector<8x8xf32>
    %61 = arith.mulf %56, %60 : vector<8x8xf32>
    %62 = arith.truncf %61 : vector<8x8xf32> to vector<8x8xbf16>
    %63 = vector.extract_strided_slice %21 {offsets = [0, 8], sizes = [8, 8], strides = [1, 1]} : vector<8x32xbf16> to vector<8x8xbf16>
    %cst_25 = arith.constant dense<0.000000e+00> : vector<8x8xf32>
    %64 = tpu.matmul %62, %63, %cst_25 {dimension_numbers = #tpu.dot_dimension_numbers<[1], [0], [0], [1], [0, 0, 1, 1], [], []>} : vector<8x8xbf16>, vector<8x8xbf16>, vector<8x8xf32> -> vector<8x8xf32>
    %65 = arith.truncf %64 : vector<8x8xf32> to vector<8x8xbf16>
    %66 = vector.extract_strided_slice %16 {offsets = [8, 0], sizes = [8, 32], strides = [1, 1]} : vector<32x32xbf16> to vector<8x32xbf16>
    %cst_26 = arith.constant dense<0.000000e+00> : vector<8x32xf32>
    %67 = tpu.matmul %65, %66, %cst_26 {dimension_numbers = #tpu.dot_dimension_numbers<[1], [0], [0], [1], [0, 0, 1, 1], [], []>} : vector<8x8xbf16>, vector<8x32xbf16>, vector<8x32xf32> -> vector<8x32xf32>
    %68 = arith.addf %46, %67 : vector<8x32xf32>
    %69 = vector.extract_strided_slice %19 {offsets = [0, 16], sizes = [8, 8], strides = [1, 1]} : vector<8x32xbf16> to vector<8x8xbf16>
    %70 = vector.extract_strided_slice %20 {offsets = [0, 16], sizes = [8, 8], strides = [1, 1]} : vector<8x32xbf16> to vector<8x8xbf16>
    %cst_27 = arith.constant dense<0.000000e+00> : vector<8x8xf32>
    %71 = tpu.matmul %69, %70, %cst_27 {dimension_numbers = #tpu.dot_dimension_numbers<[1], [1], [0], [0], [0, 0, 1, 0], [], []>} : vector<8x8xbf16>, vector<8x8xbf16>, vector<8x8xf32> -> vector<8x8xf32>
    %cst_28 = arith.constant 0.353553385 : f32
    %72 = vector.broadcast %cst_28 : f32 to vector<8x8xf32>
    %73 = arith.mulf %71, %72 : vector<8x8xf32>
    %cst_29 = arith.constant dense<0xFF800000> : vector<8xf32>
    %74 = vector.multi_reduction <maximumf>, %73, %cst_29 [1] : vector<8x8xf32> to vector<8xf32>
    %75 = vector.shape_cast %74 : vector<8xf32> to vector<8x1xf32>
    %76 = vector.broadcast %75 : vector<8x1xf32> to vector<8x8xf32>
    %77 = arith.subf %73, %76 : vector<8x8xf32>
    %78 = math.exp %77 : vector<8x8xf32>
    %cst_30 = arith.constant dense<0.000000e+00> : vector<8xf32>
    %79 = vector.multi_reduction <add>, %78, %cst_30 [1] : vector<8x8xf32> to vector<8xf32>
    %80 = vector.shape_cast %79 : vector<8xf32> to vector<8x1xf32>
    %81 = tpu.reciprocal %80 {approx = true} : vector<8x1xf32> -> vector<8x1xf32>
    %82 = vector.broadcast %81 : vector<8x1xf32> to vector<8x8xf32>
    %83 = arith.mulf %78, %82 : vector<8x8xf32>
    %84 = arith.truncf %83 : vector<8x8xf32> to vector<8x8xbf16>
    %85 = vector.extract_strided_slice %21 {offsets = [0, 16], sizes = [8, 8], strides = [1, 1]} : vector<8x32xbf16> to vector<8x8xbf16>
    %cst_31 = arith.constant dense<0.000000e+00> : vector<8x8xf32>
    %86 = tpu.matmul %84, %85, %cst_31 {dimension_numbers = #tpu.dot_dimension_numbers<[1], [0], [0], [1], [0, 0, 1, 1], [], []>} : vector<8x8xbf16>, vector<8x8xbf16>, vector<8x8xf32> -> vector<8x8xf32>
    %87 = arith.truncf %86 : vector<8x8xf32> to vector<8x8xbf16>
    %88 = vector.extract_strided_slice %16 {offsets = [16, 0], sizes = [8, 32], strides = [1, 1]} : vector<32x32xbf16> to vector<8x32xbf16>
    %cst_32 = arith.constant dense<0.000000e+00> : vector<8x32xf32>
    %89 = tpu.matmul %87, %88, %cst_32 {dimension_numbers = #tpu.dot_dimension_numbers<[1], [0], [0], [1], [0, 0, 1, 1], [], []>} : vector<8x8xbf16>, vector<8x32xbf16>, vector<8x32xf32> -> vector<8x32xf32>
    %90 = arith.addf %68, %89 : vector<8x32xf32>
    %91 = vector.extract_strided_slice %19 {offsets = [0, 24], sizes = [8, 8], strides = [1, 1]} : vector<8x32xbf16> to vector<8x8xbf16>
    %92 = vector.extract_strided_slice %20 {offsets = [0, 24], sizes = [8, 8], strides = [1, 1]} : vector<8x32xbf16> to vector<8x8xbf16>
    %cst_33 = arith.constant dense<0.000000e+00> : vector<8x8xf32>
    %93 = tpu.matmul %91, %92, %cst_33 {dimension_numbers = #tpu.dot_dimension_numbers<[1], [1], [0], [0], [0, 0, 1, 0], [], []>} : vector<8x8xbf16>, vector<8x8xbf16>, vector<8x8xf32> -> vector<8x8xf32>
    %cst_34 = arith.constant 0.353553385 : f32
    %94 = vector.broadcast %cst_34 : f32 to vector<8x8xf32>
    %95 = arith.mulf %93, %94 : vector<8x8xf32>
    %cst_35 = arith.constant dense<0xFF800000> : vector<8xf32>
    %96 = vector.multi_reduction <maximumf>, %95, %cst_35 [1] : vector<8x8xf32> to vector<8xf32>
    %97 = vector.shape_cast %96 : vector<8xf32> to vector<8x1xf32>
    %98 = vector.broadcast %97 : vector<8x1xf32> to vector<8x8xf32>
    %99 = arith.subf %95, %98 : vector<8x8xf32>
    %100 = math.exp %99 : vector<8x8xf32>
    %cst_36 = arith.constant dense<0.000000e+00> : vector<8xf32>
    %101 = vector.multi_reduction <add>, %100, %cst_36 [1] : vector<8x8xf32> to vector<8xf32>
    %102 = vector.shape_cast %101 : vector<8xf32> to vector<8x1xf32>
    %103 = tpu.reciprocal %102 {approx = true} : vector<8x1xf32> -> vector<8x1xf32>
    %104 = vector.broadcast %103 : vector<8x1xf32> to vector<8x8xf32>
    %105 = arith.mulf %100, %104 : vector<8x8xf32>
    %106 = arith.truncf %105 : vector<8x8xf32> to vector<8x8xbf16>
    %107 = vector.extract_strided_slice %21 {offsets = [0, 24], sizes = [8, 8], strides = [1, 1]} : vector<8x32xbf16> to vector<8x8xbf16>
    %cst_37 = arith.constant dense<0.000000e+00> : vector<8x8xf32>
    %108 = tpu.matmul %106, %107, %cst_37 {dimension_numbers = #tpu.dot_dimension_numbers<[1], [0], [0], [1], [0, 0, 1, 1], [], []>} : vector<8x8xbf16>, vector<8x8xbf16>, vector<8x8xf32> -> vector<8x8xf32>
    %109 = arith.truncf %108 : vector<8x8xf32> to vector<8x8xbf16>
    %110 = vector.extract_strided_slice %16 {offsets = [24, 0], sizes = [8, 32], strides = [1, 1]} : vector<32x32xbf16> to vector<8x32xbf16>
    %cst_38 = arith.constant dense<0.000000e+00> : vector<8x32xf32>
    %111 = tpu.matmul %109, %110, %cst_38 {dimension_numbers = #tpu.dot_dimension_numbers<[1], [0], [0], [1], [0, 0, 1, 1], [], []>} : vector<8x8xbf16>, vector<8x32xbf16>, vector<8x32xf32> -> vector<8x32xf32>
    %112 = arith.addf %90, %111 : vector<8x32xf32>
    %113 = arith.addf %3, %112 : vector<8x32xf32>
    %c0_39 = arith.constant 0 : index
    %c0_40 = arith.constant 0 : index
    %c0_41 = arith.constant 0 : index
    %114 = vector.load %arg7[%c0_39, %c0_40, %c0_41] : memref<1x1x32xf32, #tpu.memory_space<vmem>>, vector<1x1x32xf32>
    %115 = vector.shape_cast %114 : vector<1x1x32xf32> to vector<1x32xf32>
    %c0_42 = arith.constant 0 : index
    %c0_43 = arith.constant 0 : index
    %c0_44 = arith.constant 0 : index
    %116 = vector.load %arg8[%c0_42, %c0_43, %c0_44] : memref<1x1x32xf32, #tpu.memory_space<vmem>>, vector<1x1x32xf32>
    %117 = vector.shape_cast %116 : vector<1x1x32xf32> to vector<1x32xf32>
    %cst_45 = arith.constant dense<0.000000e+00> : vector<8xf32>
    %118 = vector.multi_reduction <add>, %113, %cst_45 [1] : vector<8x32xf32> to vector<8xf32>
    %119 = vector.shape_cast %118 : vector<8xf32> to vector<8x1xf32>
    %cst_46 = arith.constant 3.200000e+01 : f32
    %120 = vector.broadcast %cst_46 : f32 to vector<8x1xf32>
    %121 = arith.divf %119, %120 : vector<8x1xf32>
    %122 = vector.broadcast %121 : vector<8x1xf32> to vector<8x32xf32>
    %123 = arith.subf %113, %122 : vector<8x32xf32>
    %124 = arith.mulf %123, %123 : vector<8x32xf32>
    %cst_47 = arith.constant dense<0.000000e+00> : vector<8xf32>
    %125 = vector.multi_reduction <add>, %124, %cst_47 [1] : vector<8x32xf32> to vector<8xf32>
    %126 = vector.shape_cast %125 : vector<8xf32> to vector<8x1xf32>
    %cst_48 = arith.constant 3.200000e+01 : f32
    %127 = vector.broadcast %cst_48 : f32 to vector<8x1xf32>
    %128 = arith.divf %126, %127 : vector<8x1xf32>
    %cst_49 = arith.constant 9.99999974E-6 : f32
    %129 = vector.broadcast %cst_49 : f32 to vector<8x1xf32>
    %130 = arith.addf %128, %129 : vector<8x1xf32>
    %131 = math.rsqrt %130 : vector<8x1xf32>
    %132 = vector.broadcast %131 : vector<8x1xf32> to vector<8x32xf32>
    %133 = arith.mulf %123, %132 : vector<8x32xf32>
    %134 = vector.broadcast %115 : vector<1x32xf32> to vector<8x32xf32>
    %135 = arith.mulf %133, %134 : vector<8x32xf32>
    %136 = vector.broadcast %117 : vector<1x32xf32> to vector<8x32xf32>
    %137 = arith.addf %135, %136 : vector<8x32xf32>
    %c0_50 = arith.constant 0 : index
    %c0_51 = arith.constant 0 : index
    %c0_52 = arith.constant 0 : index
    %138 = vector.load %arg9[%c0_50, %c0_51, %c0_52] : memref<1x32x64xbf16, #tpu.memory_space<vmem>>, vector<1x32x64xbf16>
    %139 = vector.shape_cast %138 : vector<1x32x64xbf16> to vector<32x64xbf16>
    %c0_53 = arith.constant 0 : index
    %c0_54 = arith.constant 0 : index
    %c0_55 = arith.constant 0 : index
    %140 = vector.load %arg10[%c0_53, %c0_54, %c0_55] : memref<1x1x64xf32, #tpu.memory_space<vmem>>, vector<1x1x64xf32>
    %141 = vector.shape_cast %140 : vector<1x1x64xf32> to vector<1x64xf32>
    %142 = arith.truncf %137 : vector<8x32xf32> to vector<8x32xbf16>
    %cst_56 = arith.constant dense<0.000000e+00> : vector<8x64xf32>
    %143 = tpu.matmul %142, %139, %cst_56 {dimension_numbers = #tpu.dot_dimension_numbers<[1], [0], [0], [1], [0, 0, 1, 1], [], []>} : vector<8x32xbf16>, vector<32x64xbf16>, vector<8x64xf32> -> vector<8x64xf32>
    %144 = vector.broadcast %141 : vector<1x64xf32> to vector<8x64xf32>
    %145 = arith.addf %143, %144 : vector<8x64xf32>
    %cst_57 = arith.constant 0.000000e+00 : f32
    %146 = vector.broadcast %cst_57 : f32 to vector<8x64xf32>
    %147 = arith.maximumf %145, %146 : vector<8x64xf32>
    %c0_58 = arith.constant 0 : index
    %c0_59 = arith.constant 0 : index
    %c0_60 = arith.constant 0 : index
    %148 = vector.load %arg11[%c0_58, %c0_59, %c0_60] : memref<1x64x32xbf16, #tpu.memory_space<vmem>>, vector<1x64x32xbf16>
    %149 = vector.shape_cast %148 : vector<1x64x32xbf16> to vector<64x32xbf16>
    %c0_61 = arith.constant 0 : index
    %c0_62 = arith.constant 0 : index
    %c0_63 = arith.constant 0 : index
    %150 = vector.load %arg12[%c0_61, %c0_62, %c0_63] : memref<1x1x32xf32, #tpu.memory_space<vmem>>, vector<1x1x32xf32>
    %151 = vector.shape_cast %150 : vector<1x1x32xf32> to vector<1x32xf32>
    %152 = arith.truncf %147 : vector<8x64xf32> to vector<8x64xbf16>
    %cst_64 = arith.constant dense<0.000000e+00> : vector<8x32xf32>
    %153 = tpu.matmul %152, %149, %cst_64 {dimension_numbers = #tpu.dot_dimension_numbers<[1], [0], [0], [1], [0, 0, 1, 1], [], []>} : vector<8x64xbf16>, vector<64x32xbf16>, vector<8x32xf32> -> vector<8x32xf32>
    %154 = vector.broadcast %151 : vector<1x32xf32> to vector<8x32xf32>
    %155 = arith.addf %153, %154 : vector<8x32xf32>
    %156 = arith.addf %137, %155 : vector<8x32xf32>
    %c0_65 = arith.constant 0 : index
    %c0_66 = arith.constant 0 : index
    %c0_67 = arith.constant 0 : index
    %157 = vector.load %arg13[%c0_65, %c0_66, %c0_67] : memref<1x1x32xf32, #tpu.memory_space<vmem>>, vector<1x1x32xf32>
    %158 = vector.shape_cast %157 : vector<1x1x32xf32> to vector<1x32xf32>
    %c0_68 = arith.constant 0 : index
    %c0_69 = arith.constant 0 : index
    %c0_70 = arith.constant 0 : index
    %159 = vector.load %arg14[%c0_68, %c0_69, %c0_70] : memref<1x1x32xf32, #tpu.memory_space<vmem>>, vector<1x1x32xf32>
    %160 = vector.shape_cast %159 : vector<1x1x32xf32> to vector<1x32xf32>
    %cst_71 = arith.constant dense<0.000000e+00> : vector<8xf32>
    %161 = vector.multi_reduction <add>, %156, %cst_71 [1] : vector<8x32xf32> to vector<8xf32>
    %162 = vector.shape_cast %161 : vector<8xf32> to vector<8x1xf32>
    %cst_72 = arith.constant 3.200000e+01 : f32
    %163 = vector.broadcast %cst_72 : f32 to vector<8x1xf32>
    %164 = arith.divf %162, %163 : vector<8x1xf32>
    %165 = vector.broadcast %164 : vector<8x1xf32> to vector<8x32xf32>
    %166 = arith.subf %156, %165 : vector<8x32xf32>
    %167 = arith.mulf %166, %166 : vector<8x32xf32>
    %cst_73 = arith.constant dense<0.000000e+00> : vector<8xf32>
    %168 = vector.multi_reduction <add>, %167, %cst_73 [1] : vector<8x32xf32> to vector<8xf32>
    %169 = vector.shape_cast %168 : vector<8xf32> to vector<8x1xf32>
    %cst_74 = arith.constant 3.200000e+01 : f32
    %170 = vector.broadcast %cst_74 : f32 to vector<8x1xf32>
    %171 = arith.divf %169, %170 : vector<8x1xf32>
    %cst_75 = arith.constant 9.99999974E-6 : f32
    %172 = vector.broadcast %cst_75 : f32 to vector<8x1xf32>
    %173 = arith.addf %171, %172 : vector<8x1xf32>
    %174 = math.rsqrt %173 : vector<8x1xf32>
    %175 = vector.broadcast %174 : vector<8x1xf32> to vector<8x32xf32>
    %176 = arith.mulf %166, %175 : vector<8x32xf32>
    %177 = vector.broadcast %158 : vector<1x32xf32> to vector<8x32xf32>
    %178 = arith.mulf %176, %177 : vector<8x32xf32>
    %179 = vector.broadcast %160 : vector<1x32xf32> to vector<8x32xf32>
    %180 = arith.addf %178, %179 : vector<8x32xf32>
    %c0_76 = arith.constant 0 : index
    %c0_77 = arith.constant 0 : index
    %181 = vector.load %arg18[%c0_76, %c0_77] : memref<8x32xf32, #tpu.memory_space<vmem>>, vector<8x32xf32>
    tpu.vector_store %arg18[%c0_76, %c0_77], %180 {strides = array<i32>} : memref<8x32xf32, #tpu.memory_space<vmem>>, vector<8x32xf32>,
    %c1_i32 = arith.constant 1 : i32
    %182 = arith.cmpi eq, %arg1, %c1_i32 : i32
    %183 = arith.extui %182 : i1 to i32
    %c0_i32_78 = arith.constant 0 : i32
    %184 = arith.cmpi ne, %183, %c0_i32_78 : i32
    scf.if %184 {
      %c0_79 = arith.constant 0 : index
      %c0_80 = arith.constant 0 : index
      %185 = vector.load %arg15[%c0_79, %c0_80] : memref<1x32xf32, #tpu.memory_space<vmem>>, vector<1x32xf32>
      %c0_81 = arith.constant 0 : index
      %c0_82 = arith.constant 0 : index
      %186 = vector.load %arg16[%c0_81, %c0_82] : memref<1x32xf32, #tpu.memory_space<vmem>>, vector<1x32xf32>
      %cst_83 = arith.constant dense<0.000000e+00> : vector<8xf32>
      %187 = vector.multi_reduction <add>, %180, %cst_83 [1] : vector<8x32xf32> to vector<8xf32>
      %188 = vector.shape_cast %187 : vector<8xf32> to vector<8x1xf32>
      %cst_84 = arith.constant 3.200000e+01 : f32
      %189 = vector.broadcast %cst_84 : f32 to vector<8x1xf32>
      %190 = arith.divf %188, %189 : vector<8x1xf32>
      %191 = vector.broadcast %190 : vector<8x1xf32> to vector<8x32xf32>
      %192 = arith.subf %180, %191 : vector<8x32xf32>
      %193 = arith.mulf %192, %192 : vector<8x32xf32>
      %cst_85 = arith.constant dense<0.000000e+00> : vector<8xf32>
      %194 = vector.multi_reduction <add>, %193, %cst_85 [1] : vector<8x32xf32> to vector<8xf32>
      %195 = vector.shape_cast %194 : vector<8xf32> to vector<8x1xf32>
      %cst_86 = arith.constant 3.200000e+01 : f32
      %196 = vector.broadcast %cst_86 : f32 to vector<8x1xf32>
      %197 = arith.divf %195, %196 : vector<8x1xf32>
      %cst_87 = arith.constant 9.99999974E-6 : f32
      %198 = vector.broadcast %cst_87 : f32 to vector<8x1xf32>
      %199 = arith.addf %197, %198 : vector<8x1xf32>
      %200 = math.rsqrt %199 : vector<8x1xf32>
      %201 = vector.broadcast %200 : vector<8x1xf32> to vector<8x32xf32>
      %202 = arith.mulf %192, %201 : vector<8x32xf32>
      %203 = vector.broadcast %185 : vector<1x32xf32> to vector<8x32xf32>
      %204 = arith.mulf %202, %203 : vector<8x32xf32>
      %205 = vector.broadcast %186 : vector<1x32xf32> to vector<8x32xf32>
      %206 = arith.addf %204, %205 : vector<8x32xf32>
      %c0_88 = arith.constant 0 : index
      %c0_89 = arith.constant 0 : index
      %c0_90 = arith.constant 0 : index
      %207 = vector.load %arg17[%c0_88, %c0_89, %c0_90] : memref<1x8x32xf32, #tpu.memory_space<vmem>>, vector<1x8x32xf32>
      %208 = vector.shape_cast %207 : vector<1x8x32xf32> to vector<8x32xf32>
      %209 = vector.shape_cast %206 : vector<8x32xf32> to vector<1x8x32xf32>
      tpu.vector_store %arg17[%c0_88, %c0_89, %c0_90], %209 {strides = array<i32>} : memref<1x8x32xf32, #tpu.memory_space<vmem>>, vector<1x8x32xf32>,
    } else {
    }
    return
  }
  func.func @transform_0(%arg0: i32, %arg1: i32) -> (i32, i32, i32) {
    %c0_i32 = arith.constant 0 : i32
    %c0_i32_0 = arith.constant 0 : i32
    %c0_i32_1 = arith.constant 0 : i32
    return %arg0, %c0_i32, %c0_i32_0 : i32, i32, i32
  }
  func.func @transform_1(%arg0: i32, %arg1: i32) -> (i32, i32, i32) {
    %c0_i32 = arith.constant 0 : i32
    %c0_i32_0 = arith.constant 0 : i32
    %c0_i32_1 = arith.constant 0 : i32
    return %arg1, %c0_i32, %c0_i32_0 : i32, i32, i32
  }
  func.func @transform_2(%arg0: i32, %arg1: i32) -> (i32, i32, i32) {
    %c0_i32 = arith.constant 0 : i32
    %c0_i32_0 = arith.constant 0 : i32
    %c0_i32_1 = arith.constant 0 : i32
    return %arg1, %c0_i32, %c0_i32_0 : i32, i32, i32
  }
  func.func @transform_3(%arg0: i32, %arg1: i32) -> (i32, i32, i32) {
    %c0_i32 = arith.constant 0 : i32
    %c0_i32_0 = arith.constant 0 : i32
    %c0_i32_1 = arith.constant 0 : i32
    return %arg1, %c0_i32, %c0_i32_0 : i32, i32, i32
  }
  func.func @transform_4(%arg0: i32, %arg1: i32) -> (i32, i32, i32) {
    %c0_i32 = arith.constant 0 : i32
    %c0_i32_0 = arith.constant 0 : i32
    %c0_i32_1 = arith.constant 0 : i32
    return %arg1, %c0_i32, %c0_i32_0 : i32, i32, i32
  }
  func.func @transform_5(%arg0: i32, %arg1: i32) -> (i32, i32, i32) {
    %c0_i32 = arith.constant 0 : i32
    %c0_i32_0 = arith.constant 0 : i32
    %c0_i32_1 = arith.constant 0 : i32
    return %arg1, %c0_i32, %c0_i32_0 : i32, i32, i32
  }
  func.func @transform_6(%arg0: i32, %arg1: i32) -> (i32, i32, i32) {
    %c0_i32 = arith.constant 0 : i32
    %c0_i32_0 = arith.constant 0 : i32
    %c0_i32_1 = arith.constant 0 : i32
    return %arg1, %c0_i32, %c0_i32_0 : i32, i32, i32
  }
  func.func @transform_7(%arg0: i32, %arg1: i32) -> (i32, i32, i32) {
    %c0_i32 = arith.constant 0 : i32
    %c0_i32_0 = arith.constant 0 : i32
    %c0_i32_1 = arith.constant 0 : i32
    return %arg1, %c0_i32, %c0_i32_0 : i32, i32, i32
  }
  func.func @transform_8(%arg0: i32, %arg1: i32) -> (i32, i32, i32) {
    %c0_i32 = arith.constant 0 : i32
    %c0_i32_0 = arith.constant 0 : i32
    %c0_i32_1 = arith.constant 0 : i32
    return %arg1, %c0_i32, %c0_i32_0 : i32, i32, i32
  }
  func.func @transform_9(%arg0: i32, %arg1: i32) -> (i32, i32, i32) {
    %c0_i32 = arith.constant 0 : i32
    %c0_i32_0 = arith.constant 0 : i32
    %c0_i32_1 = arith.constant 0 : i32
    return %arg1, %c0_i32, %c0_i32_0 : i32, i32, i32
  }
  func.func @transform_10(%arg0: i32, %arg1: i32) -> (i32, i32, i32) {
    %c0_i32 = arith.constant 0 : i32
    %c0_i32_0 = arith.constant 0 : i32
    %c0_i32_1 = arith.constant 0 : i32
    return %arg1, %c0_i32, %c0_i32_0 : i32, i32, i32
  }
  func.func @transform_11(%arg0: i32, %arg1: i32) -> (i32, i32, i32) {
    %c0_i32 = arith.constant 0 : i32
    %c0_i32_0 = arith.constant 0 : i32
    %c0_i32_1 = arith.constant 0 : i32
    return %arg1, %c0_i32, %c0_i32_0 : i32, i32, i32
  }
  func.func @transform_12(%arg0: i32, %arg1: i32) -> (i32, i32, i32) {
    %c0_i32 = arith.constant 0 : i32
    %c0_i32_0 = arith.constant 0 : i32
    %c0_i32_1 = arith.constant 0 : i32
    return %arg1, %c0_i32, %c0_i32_0 : i32, i32, i32
  }
  func.func @transform_13(%arg0: i32, %arg1: i32) -> (i32, i32) {
    %c0_i32 = arith.constant 0 : i32
    %c0_i32_0 = arith.constant 0 : i32
    %c0_i32_1 = arith.constant 0 : i32
    return %c0_i32, %c0_i32_0 : i32, i32
  }
  func.func @transform_14(%arg0: i32, %arg1: i32) -> (i32, i32) {
    %c0_i32 = arith.constant 0 : i32
    %c0_i32_0 = arith.constant 0 : i32
    %c0_i32_1 = arith.constant 0 : i32
    return %c0_i32, %c0_i32_0 : i32, i32
  }
  func.func @transform_15(%arg0: i32, %arg1: i32) -> (i32, i32, i32) {
    %c0_i32 = arith.constant 0 : i32
    %c0_i32_0 = arith.constant 0 : i32
    %c0_i32_1 = arith.constant 0 : i32
    return %arg0, %c0_i32, %c0_i32_0 : i32, i32, i32
  }
}

module attributes {stable_mosaic.version = 11 : i64} {
  func.func @_decoder_kernel(%arg0: i32, %arg1: i32, %arg2: memref<1x6x32xf32, #tpu.memory_space<vmem>>, %arg3: memref<1x8x32xf32, #tpu.memory_space<vmem>>, %arg4: memref<1x32x96xbf16, #tpu.memory_space<vmem>>, %arg5: memref<1x1x96xf32, #tpu.memory_space<vmem>>, %arg6: memref<1x32x32xbf16, #tpu.memory_space<vmem>>, %arg7: memref<1x1x32xf32, #tpu.memory_space<vmem>>, %arg8: memref<1x1x32xf32, #tpu.memory_space<vmem>>, %arg9: memref<1x1x32xf32, #tpu.memory_space<vmem>>, %arg10: memref<1x32x32xbf16, #tpu.memory_space<vmem>>, %arg11: memref<1x1x32xf32, #tpu.memory_space<vmem>>, %arg12: memref<1x32x64xbf16, #tpu.memory_space<vmem>>, %arg13: memref<1x1x64xf32, #tpu.memory_space<vmem>>, %arg14: memref<1x32x32xbf16, #tpu.memory_space<vmem>>, %arg15: memref<1x1x32xf32, #tpu.memory_space<vmem>>, %arg16: memref<1x1x32xf32, #tpu.memory_space<vmem>>, %arg17: memref<1x1x32xf32, #tpu.memory_space<vmem>>, %arg18: memref<1x32x64xbf16, #tpu.memory_space<vmem>>, %arg19: memref<1x1x64xf32, #tpu.memory_space<vmem>>, %arg20: memref<1x64x32xbf16, #tpu.memory_space<vmem>>, %arg21: memref<1x1x32xf32, #tpu.memory_space<vmem>>, %arg22: memref<1x1x32xf32, #tpu.memory_space<vmem>>, %arg23: memref<1x1x32xf32, #tpu.memory_space<vmem>>, %arg24: memref<1x32xf32, #tpu.memory_space<vmem>>, %arg25: memref<1x32xf32, #tpu.memory_space<vmem>>, %arg26: memref<32x128xbf16, #tpu.memory_space<vmem>>, %arg27: memref<1x128xf32, #tpu.memory_space<vmem>>, %arg28: memref<1x6x128xf32, #tpu.memory_space<vmem>>, %arg29: memref<6x32xf32, #tpu.memory_space<vmem>>) attributes {dimension_semantics = [#tpu.dimension_semantics<parallel>, #tpu.dimension_semantics<arbitrary>], iteration_bounds = array<i64: 2, 2>, scalar_prefetch = 0 : i64, scratch_operands = 1 : i64, tpu.core_type = #tpu.core_type<tc>, window_params = [{transform_indices = @transform_0, window_bounds = array<i64: 1, 6, 32>}, {transform_indices = @transform_1, window_bounds = array<i64: 1, 8, 32>}, {transform_indices = @transform_2, window_bounds = array<i64: 1, 32, 96>}, {transform_indices = @transform_3, window_bounds = array<i64: 1, 1, 96>}, {transform_indices = @transform_4, window_bounds = array<i64: 1, 32, 32>}, {transform_indices = @transform_5, window_bounds = array<i64: 1, 1, 32>}, {transform_indices = @transform_6, window_bounds = array<i64: 1, 1, 32>}, {transform_indices = @transform_7, window_bounds = array<i64: 1, 1, 32>}, {transform_indices = @transform_8, window_bounds = array<i64: 1, 32, 32>}, {transform_indices = @transform_9, window_bounds = array<i64: 1, 1, 32>}, {transform_indices = @transform_10, window_bounds = array<i64: 1, 32, 64>}, {transform_indices = @transform_11, window_bounds = array<i64: 1, 1, 64>}, {transform_indices = @transform_12, window_bounds = array<i64: 1, 32, 32>}, {transform_indices = @transform_13, window_bounds = array<i64: 1, 1, 32>}, {transform_indices = @transform_14, window_bounds = array<i64: 1, 1, 32>}, {transform_indices = @transform_15, window_bounds = array<i64: 1, 1, 32>}, {transform_indices = @transform_16, window_bounds = array<i64: 1, 32, 64>}, {transform_indices = @transform_17, window_bounds = array<i64: 1, 1, 64>}, {transform_indices = @transform_18, window_bounds = array<i64: 1, 64, 32>}, {transform_indices = @transform_19, window_bounds = array<i64: 1, 1, 32>}, {transform_indices = @transform_20, window_bounds = array<i64: 1, 1, 32>}, {transform_indices = @transform_21, window_bounds = array<i64: 1, 1, 32>}, {pipeline_mode = #tpu.pipeline_mode<synchronous>, transform_indices = @transform_22, window_bounds = array<i64: 1, 32>}, {pipeline_mode = #tpu.pipeline_mode<synchronous>, transform_indices = @transform_23, window_bounds = array<i64: 1, 32>}, {pipeline_mode = #tpu.pipeline_mode<synchronous>, transform_indices = @transform_24, window_bounds = array<i64: 32, 128>}, {pipeline_mode = #tpu.pipeline_mode<synchronous>, transform_indices = @transform_25, window_bounds = array<i64: 1, 128>}, {transform_indices = @transform_26, window_bounds = array<i64: 1, 6, 128>}]} {
    %c0_i32 = arith.constant 0 : i32
    %0 = arith.cmpi eq, %arg1, %c0_i32 : i32
    %1 = arith.extui %0 : i1 to i32
    %c0_i32_0 = arith.constant 0 : i32
    %2 = arith.cmpi ne, %1, %c0_i32_0 : i32
    scf.if %2 {
      %c0_138 = arith.constant 0 : index
      %c0_139 = arith.constant 0 : index
      %c0_140 = arith.constant 0 : index
      %328 = vector.load %arg2[%c0_138, %c0_139, %c0_140] : memref<1x6x32xf32, #tpu.memory_space<vmem>>, vector<1x6x32xf32>
      %329 = vector.shape_cast %328 : vector<1x6x32xf32> to vector<6x32xf32>
      %c0_141 = arith.constant 0 : index
      %c0_142 = arith.constant 0 : index
      %330 = vector.load %arg29[%c0_141, %c0_142] : memref<6x32xf32, #tpu.memory_space<vmem>>, vector<6x32xf32>
      tpu.vector_store %arg29[%c0_141, %c0_142], %329 {strides = array<i32>} : memref<6x32xf32, #tpu.memory_space<vmem>>, vector<6x32xf32>,
    } else {
    }
    %c0 = arith.constant 0 : index
    %c0_1 = arith.constant 0 : index
    %3 = vector.load %arg29[%c0, %c0_1] : memref<6x32xf32, #tpu.memory_space<vmem>>, vector<6x32xf32>
    %c0_2 = arith.constant 0 : index
    %c0_3 = arith.constant 0 : index
    %c0_4 = arith.constant 0 : index
    %4 = vector.load %arg3[%c0_2, %c0_3, %c0_4] : memref<1x8x32xf32, #tpu.memory_space<vmem>>, vector<1x8x32xf32>
    %5 = vector.shape_cast %4 : vector<1x8x32xf32> to vector<8x32xf32>
    %c0_5 = arith.constant 0 : index
    %c0_6 = arith.constant 0 : index
    %c0_7 = arith.constant 0 : index
    %6 = vector.load %arg4[%c0_5, %c0_6, %c0_7] : memref<1x32x96xbf16, #tpu.memory_space<vmem>>, vector<1x32x96xbf16>
    %7 = vector.shape_cast %6 : vector<1x32x96xbf16> to vector<32x96xbf16>
    %c0_8 = arith.constant 0 : index
    %c0_9 = arith.constant 0 : index
    %c0_10 = arith.constant 0 : index
    %8 = vector.load %arg5[%c0_8, %c0_9, %c0_10] : memref<1x1x96xf32, #tpu.memory_space<vmem>>, vector<1x1x96xf32>
    %9 = vector.shape_cast %8 : vector<1x1x96xf32> to vector<1x96xf32>
    %10 = arith.truncf %3 : vector<6x32xf32> to vector<6x32xbf16>
    %cst = arith.constant dense<0.000000e+00> : vector<6x96xf32>
    %11 = tpu.matmul %10, %7, %cst {dimension_numbers = #tpu.dot_dimension_numbers<[1], [0], [0], [1], [0, 0, 1, 1], [], []>} : vector<6x32xbf16>, vector<32x96xbf16>, vector<6x96xf32> -> vector<6x96xf32>
    %12 = vector.broadcast %9 : vector<1x96xf32> to vector<6x96xf32>
    %13 = arith.addf %11, %12 : vector<6x96xf32>
    %14 = vector.extract_strided_slice %13 {offsets = [0, 0], sizes = [6, 32], strides = [1, 1]} : vector<6x96xf32> to vector<6x32xf32>
    %15 = vector.extract_strided_slice %13 {offsets = [0, 32], sizes = [6, 32], strides = [1, 1]} : vector<6x96xf32> to vector<6x32xf32>
    %16 = vector.extract_strided_slice %13 {offsets = [0, 64], sizes = [6, 32], strides = [1, 1]} : vector<6x96xf32> to vector<6x32xf32>
    %c0_11 = arith.constant 0 : index
    %c0_12 = arith.constant 0 : index
    %c0_13 = arith.constant 0 : index
    %17 = vector.load %arg6[%c0_11, %c0_12, %c0_13] : memref<1x32x32xbf16, #tpu.memory_space<vmem>>, vector<1x32x32xbf16>
    %18 = vector.shape_cast %17 : vector<1x32x32xbf16> to vector<32x32xbf16>
    %c0_14 = arith.constant 0 : index
    %c0_15 = arith.constant 0 : index
    %c0_16 = arith.constant 0 : index
    %19 = vector.load %arg7[%c0_14, %c0_15, %c0_16] : memref<1x1x32xf32, #tpu.memory_space<vmem>>, vector<1x1x32xf32>
    %20 = vector.shape_cast %19 : vector<1x1x32xf32> to vector<1x32xf32>
    %21 = arith.truncf %14 : vector<6x32xf32> to vector<6x32xbf16>
    %22 = arith.truncf %15 : vector<6x32xf32> to vector<6x32xbf16>
    %23 = arith.truncf %16 : vector<6x32xf32> to vector<6x32xbf16>
    %cst_17 = arith.constant 0.000000e+00 : f32
    %24 = vector.broadcast %cst_17 : f32 to vector<6x32xf32>
    %25 = vector.broadcast %20 : vector<1x32xf32> to vector<6x32xf32>
    %26 = arith.addf %24, %25 : vector<6x32xf32>
    %27 = vector.extract_strided_slice %21 {offsets = [0, 0], sizes = [6, 8], strides = [1, 1]} : vector<6x32xbf16> to vector<6x8xbf16>
    %28 = vector.extract_strided_slice %22 {offsets = [0, 0], sizes = [6, 8], strides = [1, 1]} : vector<6x32xbf16> to vector<6x8xbf16>
    %cst_18 = arith.constant dense<0.000000e+00> : vector<6x6xf32>
    %29 = tpu.matmul %27, %28, %cst_18 {dimension_numbers = #tpu.dot_dimension_numbers<[1], [1], [0], [0], [0, 0, 1, 0], [], []>} : vector<6x8xbf16>, vector<6x8xbf16>, vector<6x6xf32> -> vector<6x6xf32>
    %cst_19 = arith.constant 0.353553385 : f32
    %30 = vector.broadcast %cst_19 : f32 to vector<6x6xf32>
    %31 = arith.mulf %29, %30 : vector<6x6xf32>
    %cst_20 = arith.constant dense<0xFF800000> : vector<6xf32>
    %32 = vector.multi_reduction <maximumf>, %31, %cst_20 [1] : vector<6x6xf32> to vector<6xf32>
    %33 = vector.shape_cast %32 : vector<6xf32> to vector<6x1xf32>
    %34 = vector.broadcast %33 : vector<6x1xf32> to vector<6x6xf32>
    %35 = arith.subf %31, %34 : vector<6x6xf32>
    %36 = math.exp %35 : vector<6x6xf32>
    %cst_21 = arith.constant dense<0.000000e+00> : vector<6xf32>
    %37 = vector.multi_reduction <add>, %36, %cst_21 [1] : vector<6x6xf32> to vector<6xf32>
    %38 = vector.shape_cast %37 : vector<6xf32> to vector<6x1xf32>
    %39 = tpu.reciprocal %38 {approx = true} : vector<6x1xf32> -> vector<6x1xf32>
    %40 = vector.broadcast %39 : vector<6x1xf32> to vector<6x6xf32>
    %41 = arith.mulf %36, %40 : vector<6x6xf32>
    %42 = arith.truncf %41 : vector<6x6xf32> to vector<6x6xbf16>
    %43 = vector.extract_strided_slice %23 {offsets = [0, 0], sizes = [6, 8], strides = [1, 1]} : vector<6x32xbf16> to vector<6x8xbf16>
    %cst_22 = arith.constant dense<0.000000e+00> : vector<6x8xf32>
    %44 = tpu.matmul %42, %43, %cst_22 {dimension_numbers = #tpu.dot_dimension_numbers<[1], [0], [0], [1], [0, 0, 1, 1], [], []>} : vector<6x6xbf16>, vector<6x8xbf16>, vector<6x8xf32> -> vector<6x8xf32>
    %45 = arith.truncf %44 : vector<6x8xf32> to vector<6x8xbf16>
    %46 = vector.extract_strided_slice %18 {offsets = [0, 0], sizes = [8, 32], strides = [1, 1]} : vector<32x32xbf16> to vector<8x32xbf16>
    %cst_23 = arith.constant dense<0.000000e+00> : vector<6x32xf32>
    %47 = tpu.matmul %45, %46, %cst_23 {dimension_numbers = #tpu.dot_dimension_numbers<[1], [0], [0], [1], [0, 0, 1, 1], [], []>} : vector<6x8xbf16>, vector<8x32xbf16>, vector<6x32xf32> -> vector<6x32xf32>
    %48 = arith.addf %26, %47 : vector<6x32xf32>
    %49 = vector.extract_strided_slice %21 {offsets = [0, 8], sizes = [6, 8], strides = [1, 1]} : vector<6x32xbf16> to vector<6x8xbf16>
    %50 = vector.extract_strided_slice %22 {offsets = [0, 8], sizes = [6, 8], strides = [1, 1]} : vector<6x32xbf16> to vector<6x8xbf16>
    %cst_24 = arith.constant dense<0.000000e+00> : vector<6x6xf32>
    %51 = tpu.matmul %49, %50, %cst_24 {dimension_numbers = #tpu.dot_dimension_numbers<[1], [1], [0], [0], [0, 0, 1, 0], [], []>} : vector<6x8xbf16>, vector<6x8xbf16>, vector<6x6xf32> -> vector<6x6xf32>
    %cst_25 = arith.constant 0.353553385 : f32
    %52 = vector.broadcast %cst_25 : f32 to vector<6x6xf32>
    %53 = arith.mulf %51, %52 : vector<6x6xf32>
    %cst_26 = arith.constant dense<0xFF800000> : vector<6xf32>
    %54 = vector.multi_reduction <maximumf>, %53, %cst_26 [1] : vector<6x6xf32> to vector<6xf32>
    %55 = vector.shape_cast %54 : vector<6xf32> to vector<6x1xf32>
    %56 = vector.broadcast %55 : vector<6x1xf32> to vector<6x6xf32>
    %57 = arith.subf %53, %56 : vector<6x6xf32>
    %58 = math.exp %57 : vector<6x6xf32>
    %cst_27 = arith.constant dense<0.000000e+00> : vector<6xf32>
    %59 = vector.multi_reduction <add>, %58, %cst_27 [1] : vector<6x6xf32> to vector<6xf32>
    %60 = vector.shape_cast %59 : vector<6xf32> to vector<6x1xf32>
    %61 = tpu.reciprocal %60 {approx = true} : vector<6x1xf32> -> vector<6x1xf32>
    %62 = vector.broadcast %61 : vector<6x1xf32> to vector<6x6xf32>
    %63 = arith.mulf %58, %62 : vector<6x6xf32>
    %64 = arith.truncf %63 : vector<6x6xf32> to vector<6x6xbf16>
    %65 = vector.extract_strided_slice %23 {offsets = [0, 8], sizes = [6, 8], strides = [1, 1]} : vector<6x32xbf16> to vector<6x8xbf16>
    %cst_28 = arith.constant dense<0.000000e+00> : vector<6x8xf32>
    %66 = tpu.matmul %64, %65, %cst_28 {dimension_numbers = #tpu.dot_dimension_numbers<[1], [0], [0], [1], [0, 0, 1, 1], [], []>} : vector<6x6xbf16>, vector<6x8xbf16>, vector<6x8xf32> -> vector<6x8xf32>
    %67 = arith.truncf %66 : vector<6x8xf32> to vector<6x8xbf16>
    %68 = vector.extract_strided_slice %18 {offsets = [8, 0], sizes = [8, 32], strides = [1, 1]} : vector<32x32xbf16> to vector<8x32xbf16>
    %cst_29 = arith.constant dense<0.000000e+00> : vector<6x32xf32>
    %69 = tpu.matmul %67, %68, %cst_29 {dimension_numbers = #tpu.dot_dimension_numbers<[1], [0], [0], [1], [0, 0, 1, 1], [], []>} : vector<6x8xbf16>, vector<8x32xbf16>, vector<6x32xf32> -> vector<6x32xf32>
    %70 = arith.addf %48, %69 : vector<6x32xf32>
    %71 = vector.extract_strided_slice %21 {offsets = [0, 16], sizes = [6, 8], strides = [1, 1]} : vector<6x32xbf16> to vector<6x8xbf16>
    %72 = vector.extract_strided_slice %22 {offsets = [0, 16], sizes = [6, 8], strides = [1, 1]} : vector<6x32xbf16> to vector<6x8xbf16>
    %cst_30 = arith.constant dense<0.000000e+00> : vector<6x6xf32>
    %73 = tpu.matmul %71, %72, %cst_30 {dimension_numbers = #tpu.dot_dimension_numbers<[1], [1], [0], [0], [0, 0, 1, 0], [], []>} : vector<6x8xbf16>, vector<6x8xbf16>, vector<6x6xf32> -> vector<6x6xf32>
    %cst_31 = arith.constant 0.353553385 : f32
    %74 = vector.broadcast %cst_31 : f32 to vector<6x6xf32>
    %75 = arith.mulf %73, %74 : vector<6x6xf32>
    %cst_32 = arith.constant dense<0xFF800000> : vector<6xf32>
    %76 = vector.multi_reduction <maximumf>, %75, %cst_32 [1] : vector<6x6xf32> to vector<6xf32>
    %77 = vector.shape_cast %76 : vector<6xf32> to vector<6x1xf32>
    %78 = vector.broadcast %77 : vector<6x1xf32> to vector<6x6xf32>
    %79 = arith.subf %75, %78 : vector<6x6xf32>
    %80 = math.exp %79 : vector<6x6xf32>
    %cst_33 = arith.constant dense<0.000000e+00> : vector<6xf32>
    %81 = vector.multi_reduction <add>, %80, %cst_33 [1] : vector<6x6xf32> to vector<6xf32>
    %82 = vector.shape_cast %81 : vector<6xf32> to vector<6x1xf32>
    %83 = tpu.reciprocal %82 {approx = true} : vector<6x1xf32> -> vector<6x1xf32>
    %84 = vector.broadcast %83 : vector<6x1xf32> to vector<6x6xf32>
    %85 = arith.mulf %80, %84 : vector<6x6xf32>
    %86 = arith.truncf %85 : vector<6x6xf32> to vector<6x6xbf16>
    %87 = vector.extract_strided_slice %23 {offsets = [0, 16], sizes = [6, 8], strides = [1, 1]} : vector<6x32xbf16> to vector<6x8xbf16>
    %cst_34 = arith.constant dense<0.000000e+00> : vector<6x8xf32>
    %88 = tpu.matmul %86, %87, %cst_34 {dimension_numbers = #tpu.dot_dimension_numbers<[1], [0], [0], [1], [0, 0, 1, 1], [], []>} : vector<6x6xbf16>, vector<6x8xbf16>, vector<6x8xf32> -> vector<6x8xf32>
    %89 = arith.truncf %88 : vector<6x8xf32> to vector<6x8xbf16>
    %90 = vector.extract_strided_slice %18 {offsets = [16, 0], sizes = [8, 32], strides = [1, 1]} : vector<32x32xbf16> to vector<8x32xbf16>
    %cst_35 = arith.constant dense<0.000000e+00> : vector<6x32xf32>
    %91 = tpu.matmul %89, %90, %cst_35 {dimension_numbers = #tpu.dot_dimension_numbers<[1], [0], [0], [1], [0, 0, 1, 1], [], []>} : vector<6x8xbf16>, vector<8x32xbf16>, vector<6x32xf32> -> vector<6x32xf32>
    %92 = arith.addf %70, %91 : vector<6x32xf32>
    %93 = vector.extract_strided_slice %21 {offsets = [0, 24], sizes = [6, 8], strides = [1, 1]} : vector<6x32xbf16> to vector<6x8xbf16>
    %94 = vector.extract_strided_slice %22 {offsets = [0, 24], sizes = [6, 8], strides = [1, 1]} : vector<6x32xbf16> to vector<6x8xbf16>
    %cst_36 = arith.constant dense<0.000000e+00> : vector<6x6xf32>
    %95 = tpu.matmul %93, %94, %cst_36 {dimension_numbers = #tpu.dot_dimension_numbers<[1], [1], [0], [0], [0, 0, 1, 0], [], []>} : vector<6x8xbf16>, vector<6x8xbf16>, vector<6x6xf32> -> vector<6x6xf32>
    %cst_37 = arith.constant 0.353553385 : f32
    %96 = vector.broadcast %cst_37 : f32 to vector<6x6xf32>
    %97 = arith.mulf %95, %96 : vector<6x6xf32>
    %cst_38 = arith.constant dense<0xFF800000> : vector<6xf32>
    %98 = vector.multi_reduction <maximumf>, %97, %cst_38 [1] : vector<6x6xf32> to vector<6xf32>
    %99 = vector.shape_cast %98 : vector<6xf32> to vector<6x1xf32>
    %100 = vector.broadcast %99 : vector<6x1xf32> to vector<6x6xf32>
    %101 = arith.subf %97, %100 : vector<6x6xf32>
    %102 = math.exp %101 : vector<6x6xf32>
    %cst_39 = arith.constant dense<0.000000e+00> : vector<6xf32>
    %103 = vector.multi_reduction <add>, %102, %cst_39 [1] : vector<6x6xf32> to vector<6xf32>
    %104 = vector.shape_cast %103 : vector<6xf32> to vector<6x1xf32>
    %105 = tpu.reciprocal %104 {approx = true} : vector<6x1xf32> -> vector<6x1xf32>
    %106 = vector.broadcast %105 : vector<6x1xf32> to vector<6x6xf32>
    %107 = arith.mulf %102, %106 : vector<6x6xf32>
    %108 = arith.truncf %107 : vector<6x6xf32> to vector<6x6xbf16>
    %109 = vector.extract_strided_slice %23 {offsets = [0, 24], sizes = [6, 8], strides = [1, 1]} : vector<6x32xbf16> to vector<6x8xbf16>
    %cst_40 = arith.constant dense<0.000000e+00> : vector<6x8xf32>
    %110 = tpu.matmul %108, %109, %cst_40 {dimension_numbers = #tpu.dot_dimension_numbers<[1], [0], [0], [1], [0, 0, 1, 1], [], []>} : vector<6x6xbf16>, vector<6x8xbf16>, vector<6x8xf32> -> vector<6x8xf32>
    %111 = arith.truncf %110 : vector<6x8xf32> to vector<6x8xbf16>
    %112 = vector.extract_strided_slice %18 {offsets = [24, 0], sizes = [8, 32], strides = [1, 1]} : vector<32x32xbf16> to vector<8x32xbf16>
    %cst_41 = arith.constant dense<0.000000e+00> : vector<6x32xf32>
    %113 = tpu.matmul %111, %112, %cst_41 {dimension_numbers = #tpu.dot_dimension_numbers<[1], [0], [0], [1], [0, 0, 1, 1], [], []>} : vector<6x8xbf16>, vector<8x32xbf16>, vector<6x32xf32> -> vector<6x32xf32>
    %114 = arith.addf %92, %113 : vector<6x32xf32>
    %115 = arith.addf %3, %114 : vector<6x32xf32>
    %c0_42 = arith.constant 0 : index
    %c0_43 = arith.constant 0 : index
    %c0_44 = arith.constant 0 : index
    %116 = vector.load %arg8[%c0_42, %c0_43, %c0_44] : memref<1x1x32xf32, #tpu.memory_space<vmem>>, vector<1x1x32xf32>
    %117 = vector.shape_cast %116 : vector<1x1x32xf32> to vector<1x32xf32>
    %c0_45 = arith.constant 0 : index
    %c0_46 = arith.constant 0 : index
    %c0_47 = arith.constant 0 : index
    %118 = vector.load %arg9[%c0_45, %c0_46, %c0_47] : memref<1x1x32xf32, #tpu.memory_space<vmem>>, vector<1x1x32xf32>
    %119 = vector.shape_cast %118 : vector<1x1x32xf32> to vector<1x32xf32>
    %cst_48 = arith.constant dense<0.000000e+00> : vector<6xf32>
    %120 = vector.multi_reduction <add>, %115, %cst_48 [1] : vector<6x32xf32> to vector<6xf32>
    %121 = vector.shape_cast %120 : vector<6xf32> to vector<6x1xf32>
    %cst_49 = arith.constant 3.200000e+01 : f32
    %122 = vector.broadcast %cst_49 : f32 to vector<6x1xf32>
    %123 = arith.divf %121, %122 : vector<6x1xf32>
    %124 = vector.broadcast %123 : vector<6x1xf32> to vector<6x32xf32>
    %125 = arith.subf %115, %124 : vector<6x32xf32>
    %126 = arith.mulf %125, %125 : vector<6x32xf32>
    %cst_50 = arith.constant dense<0.000000e+00> : vector<6xf32>
    %127 = vector.multi_reduction <add>, %126, %cst_50 [1] : vector<6x32xf32> to vector<6xf32>
    %128 = vector.shape_cast %127 : vector<6xf32> to vector<6x1xf32>
    %cst_51 = arith.constant 3.200000e+01 : f32
    %129 = vector.broadcast %cst_51 : f32 to vector<6x1xf32>
    %130 = arith.divf %128, %129 : vector<6x1xf32>
    %cst_52 = arith.constant 9.99999974E-6 : f32
    %131 = vector.broadcast %cst_52 : f32 to vector<6x1xf32>
    %132 = arith.addf %130, %131 : vector<6x1xf32>
    %133 = math.rsqrt %132 : vector<6x1xf32>
    %134 = vector.broadcast %133 : vector<6x1xf32> to vector<6x32xf32>
    %135 = arith.mulf %125, %134 : vector<6x32xf32>
    %136 = vector.broadcast %117 : vector<1x32xf32> to vector<6x32xf32>
    %137 = arith.mulf %135, %136 : vector<6x32xf32>
    %138 = vector.broadcast %119 : vector<1x32xf32> to vector<6x32xf32>
    %139 = arith.addf %137, %138 : vector<6x32xf32>
    %c0_53 = arith.constant 0 : index
    %c0_54 = arith.constant 0 : index
    %c0_55 = arith.constant 0 : index
    %140 = vector.load %arg10[%c0_53, %c0_54, %c0_55] : memref<1x32x32xbf16, #tpu.memory_space<vmem>>, vector<1x32x32xbf16>
    %141 = vector.shape_cast %140 : vector<1x32x32xbf16> to vector<32x32xbf16>
    %c0_56 = arith.constant 0 : index
    %c0_57 = arith.constant 0 : index
    %c0_58 = arith.constant 0 : index
    %142 = vector.load %arg11[%c0_56, %c0_57, %c0_58] : memref<1x1x32xf32, #tpu.memory_space<vmem>>, vector<1x1x32xf32>
    %143 = vector.shape_cast %142 : vector<1x1x32xf32> to vector<1x32xf32>
    %144 = arith.truncf %139 : vector<6x32xf32> to vector<6x32xbf16>
    %cst_59 = arith.constant dense<0.000000e+00> : vector<6x32xf32>
    %145 = tpu.matmul %144, %141, %cst_59 {dimension_numbers = #tpu.dot_dimension_numbers<[1], [0], [0], [1], [0, 0, 1, 1], [], []>} : vector<6x32xbf16>, vector<32x32xbf16>, vector<6x32xf32> -> vector<6x32xf32>
    %146 = vector.broadcast %143 : vector<1x32xf32> to vector<6x32xf32>
    %147 = arith.addf %145, %146 : vector<6x32xf32>
    %c0_60 = arith.constant 0 : index
    %c0_61 = arith.constant 0 : index
    %c0_62 = arith.constant 0 : index
    %148 = vector.load %arg12[%c0_60, %c0_61, %c0_62] : memref<1x32x64xbf16, #tpu.memory_space<vmem>>, vector<1x32x64xbf16>
    %149 = vector.shape_cast %148 : vector<1x32x64xbf16> to vector<32x64xbf16>
    %c0_63 = arith.constant 0 : index
    %c0_64 = arith.constant 0 : index
    %c0_65 = arith.constant 0 : index
    %150 = vector.load %arg13[%c0_63, %c0_64, %c0_65] : memref<1x1x64xf32, #tpu.memory_space<vmem>>, vector<1x1x64xf32>
    %151 = vector.shape_cast %150 : vector<1x1x64xf32> to vector<1x64xf32>
    %152 = arith.truncf %5 : vector<8x32xf32> to vector<8x32xbf16>
    %cst_66 = arith.constant dense<0.000000e+00> : vector<8x64xf32>
    %153 = tpu.matmul %152, %149, %cst_66 {dimension_numbers = #tpu.dot_dimension_numbers<[1], [0], [0], [1], [0, 0, 1, 1], [], []>} : vector<8x32xbf16>, vector<32x64xbf16>, vector<8x64xf32> -> vector<8x64xf32>
    %154 = vector.broadcast %151 : vector<1x64xf32> to vector<8x64xf32>
    %155 = arith.addf %153, %154 : vector<8x64xf32>
    %156 = vector.extract_strided_slice %155 {offsets = [0, 0], sizes = [8, 32], strides = [1, 1]} : vector<8x64xf32> to vector<8x32xf32>
    %157 = vector.extract_strided_slice %155 {offsets = [0, 32], sizes = [8, 32], strides = [1, 1]} : vector<8x64xf32> to vector<8x32xf32>
    %c0_67 = arith.constant 0 : index
    %c0_68 = arith.constant 0 : index
    %c0_69 = arith.constant 0 : index
    %158 = vector.load %arg14[%c0_67, %c0_68, %c0_69] : memref<1x32x32xbf16, #tpu.memory_space<vmem>>, vector<1x32x32xbf16>
    %159 = vector.shape_cast %158 : vector<1x32x32xbf16> to vector<32x32xbf16>
    %c0_70 = arith.constant 0 : index
    %c0_71 = arith.constant 0 : index
    %c0_72 = arith.constant 0 : index
    %160 = vector.load %arg15[%c0_70, %c0_71, %c0_72] : memref<1x1x32xf32, #tpu.memory_space<vmem>>, vector<1x1x32xf32>
    %161 = vector.shape_cast %160 : vector<1x1x32xf32> to vector<1x32xf32>
    %162 = arith.truncf %147 : vector<6x32xf32> to vector<6x32xbf16>
    %163 = arith.truncf %156 : vector<8x32xf32> to vector<8x32xbf16>
    %164 = arith.truncf %157 : vector<8x32xf32> to vector<8x32xbf16>
    %cst_73 = arith.constant 0.000000e+00 : f32
    %165 = vector.broadcast %cst_73 : f32 to vector<6x32xf32>
    %166 = vector.broadcast %161 : vector<1x32xf32> to vector<6x32xf32>
    %167 = arith.addf %165, %166 : vector<6x32xf32>
    %168 = vector.extract_strided_slice %162 {offsets = [0, 0], sizes = [6, 8], strides = [1, 1]} : vector<6x32xbf16> to vector<6x8xbf16>
    %169 = vector.extract_strided_slice %163 {offsets = [0, 0], sizes = [8, 8], strides = [1, 1]} : vector<8x32xbf16> to vector<8x8xbf16>
    %cst_74 = arith.constant dense<0.000000e+00> : vector<6x8xf32>
    %170 = tpu.matmul %168, %169, %cst_74 {dimension_numbers = #tpu.dot_dimension_numbers<[1], [1], [0], [0], [0, 0, 1, 0], [], []>} : vector<6x8xbf16>, vector<8x8xbf16>, vector<6x8xf32> -> vector<6x8xf32>
    %cst_75 = arith.constant 0.353553385 : f32
    %171 = vector.broadcast %cst_75 : f32 to vector<6x8xf32>
    %172 = arith.mulf %170, %171 : vector<6x8xf32>
    %cst_76 = arith.constant dense<0xFF800000> : vector<6xf32>
    %173 = vector.multi_reduction <maximumf>, %172, %cst_76 [1] : vector<6x8xf32> to vector<6xf32>
    %174 = vector.shape_cast %173 : vector<6xf32> to vector<6x1xf32>
    %175 = vector.broadcast %174 : vector<6x1xf32> to vector<6x8xf32>
    %176 = arith.subf %172, %175 : vector<6x8xf32>
    %177 = math.exp %176 : vector<6x8xf32>
    %cst_77 = arith.constant dense<0.000000e+00> : vector<6xf32>
    %178 = vector.multi_reduction <add>, %177, %cst_77 [1] : vector<6x8xf32> to vector<6xf32>
    %179 = vector.shape_cast %178 : vector<6xf32> to vector<6x1xf32>
    %180 = tpu.reciprocal %179 {approx = true} : vector<6x1xf32> -> vector<6x1xf32>
    %181 = vector.broadcast %180 : vector<6x1xf32> to vector<6x8xf32>
    %182 = arith.mulf %177, %181 : vector<6x8xf32>
    %183 = arith.truncf %182 : vector<6x8xf32> to vector<6x8xbf16>
    %184 = vector.extract_strided_slice %164 {offsets = [0, 0], sizes = [8, 8], strides = [1, 1]} : vector<8x32xbf16> to vector<8x8xbf16>
    %cst_78 = arith.constant dense<0.000000e+00> : vector<6x8xf32>
    %185 = tpu.matmul %183, %184, %cst_78 {dimension_numbers = #tpu.dot_dimension_numbers<[1], [0], [0], [1], [0, 0, 1, 1], [], []>} : vector<6x8xbf16>, vector<8x8xbf16>, vector<6x8xf32> -> vector<6x8xf32>
    %186 = arith.truncf %185 : vector<6x8xf32> to vector<6x8xbf16>
    %187 = vector.extract_strided_slice %159 {offsets = [0, 0], sizes = [8, 32], strides = [1, 1]} : vector<32x32xbf16> to vector<8x32xbf16>
    %cst_79 = arith.constant dense<0.000000e+00> : vector<6x32xf32>
    %188 = tpu.matmul %186, %187, %cst_79 {dimension_numbers = #tpu.dot_dimension_numbers<[1], [0], [0], [1], [0, 0, 1, 1], [], []>} : vector<6x8xbf16>, vector<8x32xbf16>, vector<6x32xf32> -> vector<6x32xf32>
    %189 = arith.addf %167, %188 : vector<6x32xf32>
    %190 = vector.extract_strided_slice %162 {offsets = [0, 8], sizes = [6, 8], strides = [1, 1]} : vector<6x32xbf16> to vector<6x8xbf16>
    %191 = vector.extract_strided_slice %163 {offsets = [0, 8], sizes = [8, 8], strides = [1, 1]} : vector<8x32xbf16> to vector<8x8xbf16>
    %cst_80 = arith.constant dense<0.000000e+00> : vector<6x8xf32>
    %192 = tpu.matmul %190, %191, %cst_80 {dimension_numbers = #tpu.dot_dimension_numbers<[1], [1], [0], [0], [0, 0, 1, 0], [], []>} : vector<6x8xbf16>, vector<8x8xbf16>, vector<6x8xf32> -> vector<6x8xf32>
    %cst_81 = arith.constant 0.353553385 : f32
    %193 = vector.broadcast %cst_81 : f32 to vector<6x8xf32>
    %194 = arith.mulf %192, %193 : vector<6x8xf32>
    %cst_82 = arith.constant dense<0xFF800000> : vector<6xf32>
    %195 = vector.multi_reduction <maximumf>, %194, %cst_82 [1] : vector<6x8xf32> to vector<6xf32>
    %196 = vector.shape_cast %195 : vector<6xf32> to vector<6x1xf32>
    %197 = vector.broadcast %196 : vector<6x1xf32> to vector<6x8xf32>
    %198 = arith.subf %194, %197 : vector<6x8xf32>
    %199 = math.exp %198 : vector<6x8xf32>
    %cst_83 = arith.constant dense<0.000000e+00> : vector<6xf32>
    %200 = vector.multi_reduction <add>, %199, %cst_83 [1] : vector<6x8xf32> to vector<6xf32>
    %201 = vector.shape_cast %200 : vector<6xf32> to vector<6x1xf32>
    %202 = tpu.reciprocal %201 {approx = true} : vector<6x1xf32> -> vector<6x1xf32>
    %203 = vector.broadcast %202 : vector<6x1xf32> to vector<6x8xf32>
    %204 = arith.mulf %199, %203 : vector<6x8xf32>
    %205 = arith.truncf %204 : vector<6x8xf32> to vector<6x8xbf16>
    %206 = vector.extract_strided_slice %164 {offsets = [0, 8], sizes = [8, 8], strides = [1, 1]} : vector<8x32xbf16> to vector<8x8xbf16>
    %cst_84 = arith.constant dense<0.000000e+00> : vector<6x8xf32>
    %207 = tpu.matmul %205, %206, %cst_84 {dimension_numbers = #tpu.dot_dimension_numbers<[1], [0], [0], [1], [0, 0, 1, 1], [], []>} : vector<6x8xbf16>, vector<8x8xbf16>, vector<6x8xf32> -> vector<6x8xf32>
    %208 = arith.truncf %207 : vector<6x8xf32> to vector<6x8xbf16>
    %209 = vector.extract_strided_slice %159 {offsets = [8, 0], sizes = [8, 32], strides = [1, 1]} : vector<32x32xbf16> to vector<8x32xbf16>
    %cst_85 = arith.constant dense<0.000000e+00> : vector<6x32xf32>
    %210 = tpu.matmul %208, %209, %cst_85 {dimension_numbers = #tpu.dot_dimension_numbers<[1], [0], [0], [1], [0, 0, 1, 1], [], []>} : vector<6x8xbf16>, vector<8x32xbf16>, vector<6x32xf32> -> vector<6x32xf32>
    %211 = arith.addf %189, %210 : vector<6x32xf32>
    %212 = vector.extract_strided_slice %162 {offsets = [0, 16], sizes = [6, 8], strides = [1, 1]} : vector<6x32xbf16> to vector<6x8xbf16>
    %213 = vector.extract_strided_slice %163 {offsets = [0, 16], sizes = [8, 8], strides = [1, 1]} : vector<8x32xbf16> to vector<8x8xbf16>
    %cst_86 = arith.constant dense<0.000000e+00> : vector<6x8xf32>
    %214 = tpu.matmul %212, %213, %cst_86 {dimension_numbers = #tpu.dot_dimension_numbers<[1], [1], [0], [0], [0, 0, 1, 0], [], []>} : vector<6x8xbf16>, vector<8x8xbf16>, vector<6x8xf32> -> vector<6x8xf32>
    %cst_87 = arith.constant 0.353553385 : f32
    %215 = vector.broadcast %cst_87 : f32 to vector<6x8xf32>
    %216 = arith.mulf %214, %215 : vector<6x8xf32>
    %cst_88 = arith.constant dense<0xFF800000> : vector<6xf32>
    %217 = vector.multi_reduction <maximumf>, %216, %cst_88 [1] : vector<6x8xf32> to vector<6xf32>
    %218 = vector.shape_cast %217 : vector<6xf32> to vector<6x1xf32>
    %219 = vector.broadcast %218 : vector<6x1xf32> to vector<6x8xf32>
    %220 = arith.subf %216, %219 : vector<6x8xf32>
    %221 = math.exp %220 : vector<6x8xf32>
    %cst_89 = arith.constant dense<0.000000e+00> : vector<6xf32>
    %222 = vector.multi_reduction <add>, %221, %cst_89 [1] : vector<6x8xf32> to vector<6xf32>
    %223 = vector.shape_cast %222 : vector<6xf32> to vector<6x1xf32>
    %224 = tpu.reciprocal %223 {approx = true} : vector<6x1xf32> -> vector<6x1xf32>
    %225 = vector.broadcast %224 : vector<6x1xf32> to vector<6x8xf32>
    %226 = arith.mulf %221, %225 : vector<6x8xf32>
    %227 = arith.truncf %226 : vector<6x8xf32> to vector<6x8xbf16>
    %228 = vector.extract_strided_slice %164 {offsets = [0, 16], sizes = [8, 8], strides = [1, 1]} : vector<8x32xbf16> to vector<8x8xbf16>
    %cst_90 = arith.constant dense<0.000000e+00> : vector<6x8xf32>
    %229 = tpu.matmul %227, %228, %cst_90 {dimension_numbers = #tpu.dot_dimension_numbers<[1], [0], [0], [1], [0, 0, 1, 1], [], []>} : vector<6x8xbf16>, vector<8x8xbf16>, vector<6x8xf32> -> vector<6x8xf32>
    %230 = arith.truncf %229 : vector<6x8xf32> to vector<6x8xbf16>
    %231 = vector.extract_strided_slice %159 {offsets = [16, 0], sizes = [8, 32], strides = [1, 1]} : vector<32x32xbf16> to vector<8x32xbf16>
    %cst_91 = arith.constant dense<0.000000e+00> : vector<6x32xf32>
    %232 = tpu.matmul %230, %231, %cst_91 {dimension_numbers = #tpu.dot_dimension_numbers<[1], [0], [0], [1], [0, 0, 1, 1], [], []>} : vector<6x8xbf16>, vector<8x32xbf16>, vector<6x32xf32> -> vector<6x32xf32>
    %233 = arith.addf %211, %232 : vector<6x32xf32>
    %234 = vector.extract_strided_slice %162 {offsets = [0, 24], sizes = [6, 8], strides = [1, 1]} : vector<6x32xbf16> to vector<6x8xbf16>
    %235 = vector.extract_strided_slice %163 {offsets = [0, 24], sizes = [8, 8], strides = [1, 1]} : vector<8x32xbf16> to vector<8x8xbf16>
    %cst_92 = arith.constant dense<0.000000e+00> : vector<6x8xf32>
    %236 = tpu.matmul %234, %235, %cst_92 {dimension_numbers = #tpu.dot_dimension_numbers<[1], [1], [0], [0], [0, 0, 1, 0], [], []>} : vector<6x8xbf16>, vector<8x8xbf16>, vector<6x8xf32> -> vector<6x8xf32>
    %cst_93 = arith.constant 0.353553385 : f32
    %237 = vector.broadcast %cst_93 : f32 to vector<6x8xf32>
    %238 = arith.mulf %236, %237 : vector<6x8xf32>
    %cst_94 = arith.constant dense<0xFF800000> : vector<6xf32>
    %239 = vector.multi_reduction <maximumf>, %238, %cst_94 [1] : vector<6x8xf32> to vector<6xf32>
    %240 = vector.shape_cast %239 : vector<6xf32> to vector<6x1xf32>
    %241 = vector.broadcast %240 : vector<6x1xf32> to vector<6x8xf32>
    %242 = arith.subf %238, %241 : vector<6x8xf32>
    %243 = math.exp %242 : vector<6x8xf32>
    %cst_95 = arith.constant dense<0.000000e+00> : vector<6xf32>
    %244 = vector.multi_reduction <add>, %243, %cst_95 [1] : vector<6x8xf32> to vector<6xf32>
    %245 = vector.shape_cast %244 : vector<6xf32> to vector<6x1xf32>
    %246 = tpu.reciprocal %245 {approx = true} : vector<6x1xf32> -> vector<6x1xf32>
    %247 = vector.broadcast %246 : vector<6x1xf32> to vector<6x8xf32>
    %248 = arith.mulf %243, %247 : vector<6x8xf32>
    %249 = arith.truncf %248 : vector<6x8xf32> to vector<6x8xbf16>
    %250 = vector.extract_strided_slice %164 {offsets = [0, 24], sizes = [8, 8], strides = [1, 1]} : vector<8x32xbf16> to vector<8x8xbf16>
    %cst_96 = arith.constant dense<0.000000e+00> : vector<6x8xf32>
    %251 = tpu.matmul %249, %250, %cst_96 {dimension_numbers = #tpu.dot_dimension_numbers<[1], [0], [0], [1], [0, 0, 1, 1], [], []>} : vector<6x8xbf16>, vector<8x8xbf16>, vector<6x8xf32> -> vector<6x8xf32>
    %252 = arith.truncf %251 : vector<6x8xf32> to vector<6x8xbf16>
    %253 = vector.extract_strided_slice %159 {offsets = [24, 0], sizes = [8, 32], strides = [1, 1]} : vector<32x32xbf16> to vector<8x32xbf16>
    %cst_97 = arith.constant dense<0.000000e+00> : vector<6x32xf32>
    %254 = tpu.matmul %252, %253, %cst_97 {dimension_numbers = #tpu.dot_dimension_numbers<[1], [0], [0], [1], [0, 0, 1, 1], [], []>} : vector<6x8xbf16>, vector<8x32xbf16>, vector<6x32xf32> -> vector<6x32xf32>
    %255 = arith.addf %233, %254 : vector<6x32xf32>
    %256 = arith.addf %139, %255 : vector<6x32xf32>
    %c0_98 = arith.constant 0 : index
    %c0_99 = arith.constant 0 : index
    %c0_100 = arith.constant 0 : index
    %257 = vector.load %arg16[%c0_98, %c0_99, %c0_100] : memref<1x1x32xf32, #tpu.memory_space<vmem>>, vector<1x1x32xf32>
    %258 = vector.shape_cast %257 : vector<1x1x32xf32> to vector<1x32xf32>
    %c0_101 = arith.constant 0 : index
    %c0_102 = arith.constant 0 : index
    %c0_103 = arith.constant 0 : index
    %259 = vector.load %arg17[%c0_101, %c0_102, %c0_103] : memref<1x1x32xf32, #tpu.memory_space<vmem>>, vector<1x1x32xf32>
    %260 = vector.shape_cast %259 : vector<1x1x32xf32> to vector<1x32xf32>
    %cst_104 = arith.constant dense<0.000000e+00> : vector<6xf32>
    %261 = vector.multi_reduction <add>, %256, %cst_104 [1] : vector<6x32xf32> to vector<6xf32>
    %262 = vector.shape_cast %261 : vector<6xf32> to vector<6x1xf32>
    %cst_105 = arith.constant 3.200000e+01 : f32
    %263 = vector.broadcast %cst_105 : f32 to vector<6x1xf32>
    %264 = arith.divf %262, %263 : vector<6x1xf32>
    %265 = vector.broadcast %264 : vector<6x1xf32> to vector<6x32xf32>
    %266 = arith.subf %256, %265 : vector<6x32xf32>
    %267 = arith.mulf %266, %266 : vector<6x32xf32>
    %cst_106 = arith.constant dense<0.000000e+00> : vector<6xf32>
    %268 = vector.multi_reduction <add>, %267, %cst_106 [1] : vector<6x32xf32> to vector<6xf32>
    %269 = vector.shape_cast %268 : vector<6xf32> to vector<6x1xf32>
    %cst_107 = arith.constant 3.200000e+01 : f32
    %270 = vector.broadcast %cst_107 : f32 to vector<6x1xf32>
    %271 = arith.divf %269, %270 : vector<6x1xf32>
    %cst_108 = arith.constant 9.99999974E-6 : f32
    %272 = vector.broadcast %cst_108 : f32 to vector<6x1xf32>
    %273 = arith.addf %271, %272 : vector<6x1xf32>
    %274 = math.rsqrt %273 : vector<6x1xf32>
    %275 = vector.broadcast %274 : vector<6x1xf32> to vector<6x32xf32>
    %276 = arith.mulf %266, %275 : vector<6x32xf32>
    %277 = vector.broadcast %258 : vector<1x32xf32> to vector<6x32xf32>
    %278 = arith.mulf %276, %277 : vector<6x32xf32>
    %279 = vector.broadcast %260 : vector<1x32xf32> to vector<6x32xf32>
    %280 = arith.addf %278, %279 : vector<6x32xf32>
    %c0_109 = arith.constant 0 : index
    %c0_110 = arith.constant 0 : index
    %c0_111 = arith.constant 0 : index
    %281 = vector.load %arg18[%c0_109, %c0_110, %c0_111] : memref<1x32x64xbf16, #tpu.memory_space<vmem>>, vector<1x32x64xbf16>
    %282 = vector.shape_cast %281 : vector<1x32x64xbf16> to vector<32x64xbf16>
    %c0_112 = arith.constant 0 : index
    %c0_113 = arith.constant 0 : index
    %c0_114 = arith.constant 0 : index
    %283 = vector.load %arg19[%c0_112, %c0_113, %c0_114] : memref<1x1x64xf32, #tpu.memory_space<vmem>>, vector<1x1x64xf32>
    %284 = vector.shape_cast %283 : vector<1x1x64xf32> to vector<1x64xf32>
    %285 = arith.truncf %280 : vector<6x32xf32> to vector<6x32xbf16>
    %cst_115 = arith.constant dense<0.000000e+00> : vector<6x64xf32>
    %286 = tpu.matmul %285, %282, %cst_115 {dimension_numbers = #tpu.dot_dimension_numbers<[1], [0], [0], [1], [0, 0, 1, 1], [], []>} : vector<6x32xbf16>, vector<32x64xbf16>, vector<6x64xf32> -> vector<6x64xf32>
    %287 = vector.broadcast %284 : vector<1x64xf32> to vector<6x64xf32>
    %288 = arith.addf %286, %287 : vector<6x64xf32>
    %cst_116 = arith.constant 0.000000e+00 : f32
    %289 = vector.broadcast %cst_116 : f32 to vector<6x64xf32>
    %290 = arith.maximumf %288, %289 : vector<6x64xf32>
    %c0_117 = arith.constant 0 : index
    %c0_118 = arith.constant 0 : index
    %c0_119 = arith.constant 0 : index
    %291 = vector.load %arg20[%c0_117, %c0_118, %c0_119] : memref<1x64x32xbf16, #tpu.memory_space<vmem>>, vector<1x64x32xbf16>
    %292 = vector.shape_cast %291 : vector<1x64x32xbf16> to vector<64x32xbf16>
    %c0_120 = arith.constant 0 : index
    %c0_121 = arith.constant 0 : index
    %c0_122 = arith.constant 0 : index
    %293 = vector.load %arg21[%c0_120, %c0_121, %c0_122] : memref<1x1x32xf32, #tpu.memory_space<vmem>>, vector<1x1x32xf32>
    %294 = vector.shape_cast %293 : vector<1x1x32xf32> to vector<1x32xf32>
    %295 = arith.truncf %290 : vector<6x64xf32> to vector<6x64xbf16>
    %cst_123 = arith.constant dense<0.000000e+00> : vector<6x32xf32>
    %296 = tpu.matmul %295, %292, %cst_123 {dimension_numbers = #tpu.dot_dimension_numbers<[1], [0], [0], [1], [0, 0, 1, 1], [], []>} : vector<6x64xbf16>, vector<64x32xbf16>, vector<6x32xf32> -> vector<6x32xf32>
    %297 = vector.broadcast %294 : vector<1x32xf32> to vector<6x32xf32>
    %298 = arith.addf %296, %297 : vector<6x32xf32>
    %299 = arith.addf %280, %298 : vector<6x32xf32>
    %c0_124 = arith.constant 0 : index
    %c0_125 = arith.constant 0 : index
    %c0_126 = arith.constant 0 : index
    %300 = vector.load %arg22[%c0_124, %c0_125, %c0_126] : memref<1x1x32xf32, #tpu.memory_space<vmem>>, vector<1x1x32xf32>
    %301 = vector.shape_cast %300 : vector<1x1x32xf32> to vector<1x32xf32>
    %c0_127 = arith.constant 0 : index
    %c0_128 = arith.constant 0 : index
    %c0_129 = arith.constant 0 : index
    %302 = vector.load %arg23[%c0_127, %c0_128, %c0_129] : memref<1x1x32xf32, #tpu.memory_space<vmem>>, vector<1x1x32xf32>
    %303 = vector.shape_cast %302 : vector<1x1x32xf32> to vector<1x32xf32>
    %cst_130 = arith.constant dense<0.000000e+00> : vector<6xf32>
    %304 = vector.multi_reduction <add>, %299, %cst_130 [1] : vector<6x32xf32> to vector<6xf32>
    %305 = vector.shape_cast %304 : vector<6xf32> to vector<6x1xf32>
    %cst_131 = arith.constant 3.200000e+01 : f32
    %306 = vector.broadcast %cst_131 : f32 to vector<6x1xf32>
    %307 = arith.divf %305, %306 : vector<6x1xf32>
    %308 = vector.broadcast %307 : vector<6x1xf32> to vector<6x32xf32>
    %309 = arith.subf %299, %308 : vector<6x32xf32>
    %310 = arith.mulf %309, %309 : vector<6x32xf32>
    %cst_132 = arith.constant dense<0.000000e+00> : vector<6xf32>
    %311 = vector.multi_reduction <add>, %310, %cst_132 [1] : vector<6x32xf32> to vector<6xf32>
    %312 = vector.shape_cast %311 : vector<6xf32> to vector<6x1xf32>
    %cst_133 = arith.constant 3.200000e+01 : f32
    %313 = vector.broadcast %cst_133 : f32 to vector<6x1xf32>
    %314 = arith.divf %312, %313 : vector<6x1xf32>
    %cst_134 = arith.constant 9.99999974E-6 : f32
    %315 = vector.broadcast %cst_134 : f32 to vector<6x1xf32>
    %316 = arith.addf %314, %315 : vector<6x1xf32>
    %317 = math.rsqrt %316 : vector<6x1xf32>
    %318 = vector.broadcast %317 : vector<6x1xf32> to vector<6x32xf32>
    %319 = arith.mulf %309, %318 : vector<6x32xf32>
    %320 = vector.broadcast %301 : vector<1x32xf32> to vector<6x32xf32>
    %321 = arith.mulf %319, %320 : vector<6x32xf32>
    %322 = vector.broadcast %303 : vector<1x32xf32> to vector<6x32xf32>
    %323 = arith.addf %321, %322 : vector<6x32xf32>
    %c0_135 = arith.constant 0 : index
    %c0_136 = arith.constant 0 : index
    %324 = vector.load %arg29[%c0_135, %c0_136] : memref<6x32xf32, #tpu.memory_space<vmem>>, vector<6x32xf32>
    tpu.vector_store %arg29[%c0_135, %c0_136], %323 {strides = array<i32>} : memref<6x32xf32, #tpu.memory_space<vmem>>, vector<6x32xf32>,
    %c1_i32 = arith.constant 1 : i32
    %325 = arith.cmpi eq, %arg1, %c1_i32 : i32
    %326 = arith.extui %325 : i1 to i32
    %c0_i32_137 = arith.constant 0 : i32
    %327 = arith.cmpi ne, %326, %c0_i32_137 : i32
    scf.if %327 {
      %c0_138 = arith.constant 0 : index
      %c0_139 = arith.constant 0 : index
      %328 = vector.load %arg24[%c0_138, %c0_139] : memref<1x32xf32, #tpu.memory_space<vmem>>, vector<1x32xf32>
      %c0_140 = arith.constant 0 : index
      %c0_141 = arith.constant 0 : index
      %329 = vector.load %arg25[%c0_140, %c0_141] : memref<1x32xf32, #tpu.memory_space<vmem>>, vector<1x32xf32>
      %cst_142 = arith.constant dense<0.000000e+00> : vector<6xf32>
      %330 = vector.multi_reduction <add>, %323, %cst_142 [1] : vector<6x32xf32> to vector<6xf32>
      %331 = vector.shape_cast %330 : vector<6xf32> to vector<6x1xf32>
      %cst_143 = arith.constant 3.200000e+01 : f32
      %332 = vector.broadcast %cst_143 : f32 to vector<6x1xf32>
      %333 = arith.divf %331, %332 : vector<6x1xf32>
      %334 = vector.broadcast %333 : vector<6x1xf32> to vector<6x32xf32>
      %335 = arith.subf %323, %334 : vector<6x32xf32>
      %336 = arith.mulf %335, %335 : vector<6x32xf32>
      %cst_144 = arith.constant dense<0.000000e+00> : vector<6xf32>
      %337 = vector.multi_reduction <add>, %336, %cst_144 [1] : vector<6x32xf32> to vector<6xf32>
      %338 = vector.shape_cast %337 : vector<6xf32> to vector<6x1xf32>
      %cst_145 = arith.constant 3.200000e+01 : f32
      %339 = vector.broadcast %cst_145 : f32 to vector<6x1xf32>
      %340 = arith.divf %338, %339 : vector<6x1xf32>
      %cst_146 = arith.constant 9.99999974E-6 : f32
      %341 = vector.broadcast %cst_146 : f32 to vector<6x1xf32>
      %342 = arith.addf %340, %341 : vector<6x1xf32>
      %343 = math.rsqrt %342 : vector<6x1xf32>
      %344 = vector.broadcast %343 : vector<6x1xf32> to vector<6x32xf32>
      %345 = arith.mulf %335, %344 : vector<6x32xf32>
      %346 = vector.broadcast %328 : vector<1x32xf32> to vector<6x32xf32>
      %347 = arith.mulf %345, %346 : vector<6x32xf32>
      %348 = vector.broadcast %329 : vector<1x32xf32> to vector<6x32xf32>
      %349 = arith.addf %347, %348 : vector<6x32xf32>
      %c0_147 = arith.constant 0 : index
      %c0_148 = arith.constant 0 : index
      %350 = vector.load %arg26[%c0_147, %c0_148] : memref<32x128xbf16, #tpu.memory_space<vmem>>, vector<32x128xbf16>
      %c0_149 = arith.constant 0 : index
      %c0_150 = arith.constant 0 : index
      %351 = vector.load %arg27[%c0_149, %c0_150] : memref<1x128xf32, #tpu.memory_space<vmem>>, vector<1x128xf32>
      %352 = arith.truncf %349 : vector<6x32xf32> to vector<6x32xbf16>
      %cst_151 = arith.constant dense<0.000000e+00> : vector<6x128xf32>
      %353 = tpu.matmul %352, %350, %cst_151 {dimension_numbers = #tpu.dot_dimension_numbers<[1], [0], [0], [1], [0, 0, 1, 1], [], []>} : vector<6x32xbf16>, vector<32x128xbf16>, vector<6x128xf32> -> vector<6x128xf32>
      %354 = vector.broadcast %351 : vector<1x128xf32> to vector<6x128xf32>
      %355 = arith.addf %353, %354 : vector<6x128xf32>
      %c0_152 = arith.constant 0 : index
      %c0_153 = arith.constant 0 : index
      %c0_154 = arith.constant 0 : index
      %356 = vector.load %arg28[%c0_152, %c0_153, %c0_154] : memref<1x6x128xf32, #tpu.memory_space<vmem>>, vector<1x6x128xf32>
      %357 = vector.shape_cast %356 : vector<1x6x128xf32> to vector<6x128xf32>
      %358 = vector.shape_cast %355 : vector<6x128xf32> to vector<1x6x128xf32>
      tpu.vector_store %arg28[%c0_152, %c0_153, %c0_154], %358 {strides = array<i32>} : memref<1x6x128xf32, #tpu.memory_space<vmem>>, vector<1x6x128xf32>,
    } else {
    }
    return
  }
  func.func @transform_0(%arg0: i32, %arg1: i32) -> (i32, i32, i32) {
    %c0_i32 = arith.constant 0 : i32
    %c0_i32_0 = arith.constant 0 : i32
    %c0_i32_1 = arith.constant 0 : i32
    return %arg0, %c0_i32, %c0_i32_0 : i32, i32, i32
  }
  func.func @transform_1(%arg0: i32, %arg1: i32) -> (i32, i32, i32) {
    %c0_i32 = arith.constant 0 : i32
    %c0_i32_0 = arith.constant 0 : i32
    %c0_i32_1 = arith.constant 0 : i32
    return %arg0, %c0_i32, %c0_i32_0 : i32, i32, i32
  }
  func.func @transform_2(%arg0: i32, %arg1: i32) -> (i32, i32, i32) {
    %c0_i32 = arith.constant 0 : i32
    %c0_i32_0 = arith.constant 0 : i32
    %c0_i32_1 = arith.constant 0 : i32
    return %arg1, %c0_i32, %c0_i32_0 : i32, i32, i32
  }
  func.func @transform_3(%arg0: i32, %arg1: i32) -> (i32, i32, i32) {
    %c0_i32 = arith.constant 0 : i32
    %c0_i32_0 = arith.constant 0 : i32
    %c0_i32_1 = arith.constant 0 : i32
    return %arg1, %c0_i32, %c0_i32_0 : i32, i32, i32
  }
  func.func @transform_4(%arg0: i32, %arg1: i32) -> (i32, i32, i32) {
    %c0_i32 = arith.constant 0 : i32
    %c0_i32_0 = arith.constant 0 : i32
    %c0_i32_1 = arith.constant 0 : i32
    return %arg1, %c0_i32, %c0_i32_0 : i32, i32, i32
  }
  func.func @transform_5(%arg0: i32, %arg1: i32) -> (i32, i32, i32) {
    %c0_i32 = arith.constant 0 : i32
    %c0_i32_0 = arith.constant 0 : i32
    %c0_i32_1 = arith.constant 0 : i32
    return %arg1, %c0_i32, %c0_i32_0 : i32, i32, i32
  }
  func.func @transform_6(%arg0: i32, %arg1: i32) -> (i32, i32, i32) {
    %c0_i32 = arith.constant 0 : i32
    %c0_i32_0 = arith.constant 0 : i32
    %c0_i32_1 = arith.constant 0 : i32
    return %arg1, %c0_i32, %c0_i32_0 : i32, i32, i32
  }
  func.func @transform_7(%arg0: i32, %arg1: i32) -> (i32, i32, i32) {
    %c0_i32 = arith.constant 0 : i32
    %c0_i32_0 = arith.constant 0 : i32
    %c0_i32_1 = arith.constant 0 : i32
    return %arg1, %c0_i32, %c0_i32_0 : i32, i32, i32
  }
  func.func @transform_8(%arg0: i32, %arg1: i32) -> (i32, i32, i32) {
    %c0_i32 = arith.constant 0 : i32
    %c0_i32_0 = arith.constant 0 : i32
    %c0_i32_1 = arith.constant 0 : i32
    return %arg1, %c0_i32, %c0_i32_0 : i32, i32, i32
  }
  func.func @transform_9(%arg0: i32, %arg1: i32) -> (i32, i32, i32) {
    %c0_i32 = arith.constant 0 : i32
    %c0_i32_0 = arith.constant 0 : i32
    %c0_i32_1 = arith.constant 0 : i32
    return %arg1, %c0_i32, %c0_i32_0 : i32, i32, i32
  }
  func.func @transform_10(%arg0: i32, %arg1: i32) -> (i32, i32, i32) {
    %c0_i32 = arith.constant 0 : i32
    %c0_i32_0 = arith.constant 0 : i32
    %c0_i32_1 = arith.constant 0 : i32
    return %arg1, %c0_i32, %c0_i32_0 : i32, i32, i32
  }
  func.func @transform_11(%arg0: i32, %arg1: i32) -> (i32, i32, i32) {
    %c0_i32 = arith.constant 0 : i32
    %c0_i32_0 = arith.constant 0 : i32
    %c0_i32_1 = arith.constant 0 : i32
    return %arg1, %c0_i32, %c0_i32_0 : i32, i32, i32
  }
  func.func @transform_12(%arg0: i32, %arg1: i32) -> (i32, i32, i32) {
    %c0_i32 = arith.constant 0 : i32
    %c0_i32_0 = arith.constant 0 : i32
    %c0_i32_1 = arith.constant 0 : i32
    return %arg1, %c0_i32, %c0_i32_0 : i32, i32, i32
  }
  func.func @transform_13(%arg0: i32, %arg1: i32) -> (i32, i32, i32) {
    %c0_i32 = arith.constant 0 : i32
    %c0_i32_0 = arith.constant 0 : i32
    %c0_i32_1 = arith.constant 0 : i32
    return %arg1, %c0_i32, %c0_i32_0 : i32, i32, i32
  }
  func.func @transform_14(%arg0: i32, %arg1: i32) -> (i32, i32, i32) {
    %c0_i32 = arith.constant 0 : i32
    %c0_i32_0 = arith.constant 0 : i32
    %c0_i32_1 = arith.constant 0 : i32
    return %arg1, %c0_i32, %c0_i32_0 : i32, i32, i32
  }
  func.func @transform_15(%arg0: i32, %arg1: i32) -> (i32, i32, i32) {
    %c0_i32 = arith.constant 0 : i32
    %c0_i32_0 = arith.constant 0 : i32
    %c0_i32_1 = arith.constant 0 : i32
    return %arg1, %c0_i32, %c0_i32_0 : i32, i32, i32
  }
  func.func @transform_16(%arg0: i32, %arg1: i32) -> (i32, i32, i32) {
    %c0_i32 = arith.constant 0 : i32
    %c0_i32_0 = arith.constant 0 : i32
    %c0_i32_1 = arith.constant 0 : i32
    return %arg1, %c0_i32, %c0_i32_0 : i32, i32, i32
  }
  func.func @transform_17(%arg0: i32, %arg1: i32) -> (i32, i32, i32) {
    %c0_i32 = arith.constant 0 : i32
    %c0_i32_0 = arith.constant 0 : i32
    %c0_i32_1 = arith.constant 0 : i32
    return %arg1, %c0_i32, %c0_i32_0 : i32, i32, i32
  }
  func.func @transform_18(%arg0: i32, %arg1: i32) -> (i32, i32, i32) {
    %c0_i32 = arith.constant 0 : i32
    %c0_i32_0 = arith.constant 0 : i32
    %c0_i32_1 = arith.constant 0 : i32
    return %arg1, %c0_i32, %c0_i32_0 : i32, i32, i32
  }
  func.func @transform_19(%arg0: i32, %arg1: i32) -> (i32, i32, i32) {
    %c0_i32 = arith.constant 0 : i32
    %c0_i32_0 = arith.constant 0 : i32
    %c0_i32_1 = arith.constant 0 : i32
    return %arg1, %c0_i32, %c0_i32_0 : i32, i32, i32
  }
  func.func @transform_20(%arg0: i32, %arg1: i32) -> (i32, i32, i32) {
    %c0_i32 = arith.constant 0 : i32
    %c0_i32_0 = arith.constant 0 : i32
    %c0_i32_1 = arith.constant 0 : i32
    return %arg1, %c0_i32, %c0_i32_0 : i32, i32, i32
  }
  func.func @transform_21(%arg0: i32, %arg1: i32) -> (i32, i32, i32) {
    %c0_i32 = arith.constant 0 : i32
    %c0_i32_0 = arith.constant 0 : i32
    %c0_i32_1 = arith.constant 0 : i32
    return %arg1, %c0_i32, %c0_i32_0 : i32, i32, i32
  }
  func.func @transform_22(%arg0: i32, %arg1: i32) -> (i32, i32) {
    %c0_i32 = arith.constant 0 : i32
    %c0_i32_0 = arith.constant 0 : i32
    %c0_i32_1 = arith.constant 0 : i32
    return %c0_i32, %c0_i32_0 : i32, i32
  }
  func.func @transform_23(%arg0: i32, %arg1: i32) -> (i32, i32) {
    %c0_i32 = arith.constant 0 : i32
    %c0_i32_0 = arith.constant 0 : i32
    %c0_i32_1 = arith.constant 0 : i32
    return %c0_i32, %c0_i32_0 : i32, i32
  }
  func.func @transform_24(%arg0: i32, %arg1: i32) -> (i32, i32) {
    %c0_i32 = arith.constant 0 : i32
    %c0_i32_0 = arith.constant 0 : i32
    %c0_i32_1 = arith.constant 0 : i32
    return %c0_i32, %c0_i32_0 : i32, i32
  }
  func.func @transform_25(%arg0: i32, %arg1: i32) -> (i32, i32) {
    %c0_i32 = arith.constant 0 : i32
    %c0_i32_0 = arith.constant 0 : i32
    %c0_i32_1 = arith.constant 0 : i32
    return %c0_i32, %c0_i32_0 : i32, i32
  }
  func.func @transform_26(%arg0: i32, %arg1: i32) -> (i32, i32, i32) {
    %c0_i32 = arith.constant 0 : i32
    %c0_i32_0 = arith.constant 0 : i32
    %c0_i32_1 = arith.constant 0 : i32
    return %arg0, %c0_i32, %c0_i32_0 : i32, i32, i32
  }
}

</mosaic_0001>

<llo_original>
// kernel: transformer_forward.2
$region0: #{transformer_forward.2}
  #allocation0 [shape = 'u32[]', space=smem, size = 0x4, offset = 0x4, fixed_abs, tag = 'smem constant byte address 0x4 - core index']
  #allocation1 [shape = 'u32[144,128]{1,0:T(1,128)}', space=vmem, size = 0x12000, scoped, tag = 'internal scratch']
  #allocation2 [shape = 'f32[8,32]{1,0:T(8,128)}', space=vmem, size = 0x1000, scoped, tag = 'scratch operand']
  %s0 = inlined_call_operand.vmem [shape: f32[2,8,32], index: 0, kind: input, shape index: {}]
  %s1 = inlined_call_operand.vmem [shape: bf16[2,32,96], index: 1, kind: input, shape index: {}]
  %s2 = inlined_call_operand.vmem [shape: f32[2,1,96], index: 2, kind: input, shape index: {}]
  %s3 = inlined_call_operand.vmem [shape: bf16[2,32,32], index: 3, kind: input, shape index: {}]
  %s4 = inlined_call_operand.vmem [shape: f32[2,1,32], index: 4, kind: input, shape index: {}]
  %s5 = inlined_call_operand.vmem [shape: f32[2,1,32], index: 5, kind: input, shape index: {}]
  %s6 = inlined_call_operand.vmem [shape: f32[2,1,32], index: 6, kind: input, shape index: {}]
  %s7 = inlined_call_operand.vmem [shape: bf16[2,32,64], index: 7, kind: input, shape index: {}]
  %s8 = inlined_call_operand.vmem [shape: f32[2,1,64], index: 8, kind: input, shape index: {}]
  %s9 = inlined_call_operand.vmem [shape: bf16[2,64,32], index: 9, kind: input, shape index: {}]
  %s10 = inlined_call_operand.vmem [shape: f32[2,1,32], index: 10, kind: input, shape index: {}]
  %s11 = inlined_call_operand.vmem [shape: f32[2,1,32], index: 11, kind: input, shape index: {}]
  %s12 = inlined_call_operand.vmem [shape: f32[2,1,32], index: 12, kind: input, shape index: {}]
  %s13 = inlined_call_operand.vmem [shape: f32[1,32], index: 13, kind: input, shape index: {}]
  %s14 = inlined_call_operand.vmem [shape: f32[1,32], index: 14, kind: input, shape index: {}]
  %s15 = inlined_call_operand.vmem [shape: f32[2,8,32], index: 15, kind: output, shape index: {}]
  %s16 = sld [smem:[#allocation0]]
  $region101: #{transformer_forward.2} parent=0
    _
  %s18 = ssub.s32 1, %s16
  %s19 = scalar_select 0, %s18, %s16
  loop: start=0, step=1, limit=6
  $region2: #{transformer_forward.2} parent=0 // loop_pre_header
    _
  $region3: #{transformer_forward.2} parent=0 // loop_header
    %s21 = sphi 0, %s25
    %p22 = scmp.ge.s32.totalorder %s21, 6
    %s28 = sphi 0, %s40
    %s29 = sphi 0, %s36
    %s30 = sphi 0, %s28
    %s31 = sphi 0, %s29
    %s32 = sphi 0, %s30
    %s33 = sphi 0, %s31
    %s43 = sphi 0, %s45
    %s46 = sphi 0, %s43
    %s47 = sphi 0, %s46
    %s63 = sphi 0, %s47
    %s69 = sphi 0, %s71
    %s72 = sphi 0, %s69
    %s73 = sphi 0, %s72
    %s89 = sphi 0, %s73
    %s95 = sphi 0, %s97
    %s98 = sphi 0, %s95
    %s99 = sphi 0, %s98
    %s115 = sphi 0, %s99
    %s121 = sphi 0, %s123
    %s124 = sphi 0, %s121
    %s125 = sphi 0, %s124
    %s141 = sphi 0, %s125
    %s147 = sphi 0, %s149
    %s150 = sphi 0, %s147
    %s151 = sphi 0, %s150
    %s167 = sphi 0, %s151
    %s173 = sphi 0, %s175
    %s176 = sphi 0, %s173
    %s177 = sphi 0, %s176
    %s193 = sphi 0, %s177
    %s199 = sphi 0, %s201
    %s202 = sphi 0, %s199
    %s203 = sphi 0, %s202
    %s219 = sphi 0, %s203
    %s225 = sphi 0, %s227
    %s228 = sphi 0, %s225
    %s229 = sphi 0, %s228
    %s245 = sphi 0, %s229
    %s251 = sphi 0, %s253
    %s254 = sphi 0, %s251
    %s255 = sphi 0, %s254
    %s271 = sphi 0, %s255
    %s277 = sphi 0, %s279
    %s280 = sphi 0, %s277
    %s281 = sphi 0, %s280
    %s297 = sphi 0, %s281
    %s303 = sphi 0, %s305
    %s306 = sphi 0, %s303
    %s307 = sphi 0, %s306
    %s323 = sphi 0, %s307
    %s329 = sphi 0, %s331
    %s332 = sphi 0, %s329
    %s333 = sphi 0, %s332
    %s349 = sphi 0, %s333
    %s355 = sphi 0, %s357
    %s358 = sphi 0, %s355
    %s359 = sphi 0, %s358
    %s375 = sphi 0, %s359
    %s379 = sphi 0, %s379
    %s381 = sphi 0, %s379
    %s382 = sphi 0, %s381
    %s396 = sphi 0, %s382
    %s400 = sphi 0, %s400
    %s402 = sphi 0, %s400
    %s403 = sphi 0, %s402
    %s417 = sphi 0, %s403
    %s423 = sphi 0, %s425
    %s426 = sphi 0, %s423
    %s427 = sphi 0, %s426
    %s443 = sphi 0, %s427
  $region4: #{transformer_forward.2} parent=0 // loop_header_branch
    %24 = sbr.rel (%p22) target = $region8
  $region5: #{transformer_forward.2} parent=0 // loop_body
    %s26 = ssub.s32 %s21, 1
    %s27 = ssub.s32 %s21, 2
    %s34 = sadd.s32 1, %s29
    %p35 = scmp.ge.s32.totalorder %s34, 2
    %s36 = scalar_select %p35, 0, %s34
    %s37 = sadd.s32 1, %s28
    %s38 = scalar_select %p35, %s37, %s28
    %p39 = scmp.ge.s32.totalorder %s38, 2
    %s40 = scalar_select %p39, 0, %s38
    %s41 = ssub.s32 %s28, %s40
    %p42 = scmp.eq.s32.totalorder %s41, 0
    %s44 = sadd.s32 %s43, 1
    %s45 = scalar_select %p42, %s43, %s44
    %p48 = pneg %p42
    %p49 = scmp.eq.s32.totalorder %s21, 3
    %p50 = por %p48, %p49
    %p51 = scmp.ne.s32.totalorder %s43, %s46
    %p52 = scmp.eq.s32.totalorder %s21, 0
    %p53 = por %p51, %p52
    %p54 = scmp.ne.s32.totalorder %s43, %s46
    %p55 = scmp.eq.s32.totalorder %s26, 3
    %p56 = por %p54, %p55
    %p57 = scmp.ne.s32.totalorder %s46, %s47
    %p58 = scmp.eq.s32.totalorder %s26, 0
    %p59 = por %p57, %p58
    %p60 = scmp.ne.s32.totalorder %s46, %s47
    %p61 = scmp.eq.s32.totalorder %s27, 3
    %p62 = por %p60, %p61
    %p64 = scmp.ne.s32.totalorder %s47, %s63
    %p65 = scmp.eq.s32.totalorder %s27, 0
    %p66 = por %p64, %p65
    %s67 = ssub.s32 %s29, %s36
    %p68 = scmp.eq.s32.totalorder %s67, 0
    %s70 = sadd.s32 %s69, 1
    %s71 = scalar_select %p68, %s69, %s70
    %p74 = pneg %p68
    %p75 = scmp.eq.s32.totalorder %s21, 3
    %p76 = por %p74, %p75
    %p77 = scmp.ne.s32.totalorder %s69, %s72
    %p78 = scmp.eq.s32.totalorder %s21, 0
    %p79 = por %p77, %p78
    %p80 = scmp.ne.s32.totalorder %s69, %s72
    %p81 = scmp.eq.s32.totalorder %s26, 3
    %p82 = por %p80, %p81
    %p83 = scmp.ne.s32.totalorder %s72, %s73
    %p84 = scmp.eq.s32.totalorder %s26, 0
    %p85 = por %p83, %p84
    %p86 = scmp.ne.s32.totalorder %s72, %s73
    %p87 = scmp.eq.s32.totalorder %s27, 3
    %p88 = por %p86, %p87
    %p90 = scmp.ne.s32.totalorder %s73, %s89
    %p91 = scmp.eq.s32.totalorder %s27, 0
    %p92 = por %p90, %p91
    %s93 = ssub.s32 %s29, %s36
    %p94 = scmp.eq.s32.totalorder %s93, 0
    %s96 = sadd.s32 %s95, 1
    %s97 = scalar_select %p94, %s95, %s96
    %p100 = pneg %p94
    %p101 = scmp.eq.s32.totalorder %s21, 3
    %p102 = por %p100, %p101
    %p103 = scmp.ne.s32.totalorder %s95, %s98
    %p104 = scmp.eq.s32.totalorder %s21, 0
    %p105 = por %p103, %p104
    %p106 = scmp.ne.s32.totalorder %s95, %s98
    %p107 = scmp.eq.s32.totalorder %s26, 3
    %p108 = por %p106, %p107
    %p109 = scmp.ne.s32.totalorder %s98, %s99
    %p110 = scmp.eq.s32.totalorder %s26, 0
    %p111 = por %p109, %p110
    %p112 = scmp.ne.s32.totalorder %s98, %s99
    %p113 = scmp.eq.s32.totalorder %s27, 3
    %p114 = por %p112, %p113
    %p116 = scmp.ne.s32.totalorder %s99, %s115
    %p117 = scmp.eq.s32.totalorder %s27, 0
    %p118 = por %p116, %p117
    %s119 = ssub.s32 %s29, %s36
    %p120 = scmp.eq.s32.totalorder %s119, 0
    %s122 = sadd.s32 %s121, 1
    %s123 = scalar_select %p120, %s121, %s122
    %p126 = pneg %p120
    %p127 = scmp.eq.s32.totalorder %s21, 3
    %p128 = por %p126, %p127
    %p129 = scmp.ne.s32.totalorder %s121, %s124
    %p130 = scmp.eq.s32.totalorder %s21, 0
    %p131 = por %p129, %p130
    %p132 = scmp.ne.s32.totalorder %s121, %s124
    %p133 = scmp.eq.s32.totalorder %s26, 3
    %p134 = por %p132, %p133
    %p135 = scmp.ne.s32.totalorder %s124, %s125
    %p136 = scmp.eq.s32.totalorder %s26, 0
    %p137 = por %p135, %p136
    %p138 = scmp.ne.s32.totalorder %s124, %s125
    %p139 = scmp.eq.s32.totalorder %s27, 3
    %p140 = por %p138, %p139
    %p142 = scmp.ne.s32.totalorder %s125, %s141
    %p143 = scmp.eq.s32.totalorder %s27, 0
    %p144 = por %p142, %p143
    %s145 = ssub.s32 %s29, %s36
    %p146 = scmp.eq.s32.totalorder %s145, 0
    %s148 = sadd.s32 %s147, 1
    %s149 = scalar_select %p146, %s147, %s148
    %p152 = pneg %p146
    %p153 = scmp.eq.s32.totalorder %s21, 3
    %p154 = por %p152, %p153
    %p155 = scmp.ne.s32.totalorder %s147, %s150
    %p156 = scmp.eq.s32.totalorder %s21, 0
    %p157 = por %p155, %p156
    %p158 = scmp.ne.s32.totalorder %s147, %s150
    %p159 = scmp.eq.s32.totalorder %s26, 3
    %p160 = por %p158, %p159
    %p161 = scmp.ne.s32.totalorder %s150, %s151
    %p162 = scmp.eq.s32.totalorder %s26, 0
    %p163 = por %p161, %p162
    %p164 = scmp.ne.s32.totalorder %s150, %s151
    %p165 = scmp.eq.s32.totalorder %s27, 3
    %p166 = por %p164, %p165
    %p168 = scmp.ne.s32.totalorder %s151, %s167
    %p169 = scmp.eq.s32.totalorder %s27, 0
    %p170 = por %p168, %p169
    %s171 = ssub.s32 %s29, %s36
    %p172 = scmp.eq.s32.totalorder %s171, 0
    %s174 = sadd.s32 %s173, 1
    %s175 = scalar_select %p172, %s173, %s174
    %p178 = pneg %p172
    %p179 = scmp.eq.s32.totalorder %s21, 3
    %p180 = por %p178, %p179
    %p181 = scmp.ne.s32.totalorder %s173, %s176
    %p182 = scmp.eq.s32.totalorder %s21, 0
    %p183 = por %p181, %p182
    %p184 = scmp.ne.s32.totalorder %s173, %s176
    %p185 = scmp.eq.s32.totalorder %s26, 3
    %p186 = por %p184, %p185
    %p187 = scmp.ne.s32.totalorder %s176, %s177
    %p188 = scmp.eq.s32.totalorder %s26, 0
    %p189 = por %p187, %p188
    %p190 = scmp.ne.s32.totalorder %s176, %s177
    %p191 = scmp.eq.s32.totalorder %s27, 3
    %p192 = por %p190, %p191
    %p194 = scmp.ne.s32.totalorder %s177, %s193
    %p195 = scmp.eq.s32.totalorder %s27, 0
    %p196 = por %p194, %p195
    %s197 = ssub.s32 %s29, %s36
    %p198 = scmp.eq.s32.totalorder %s197, 0
    %s200 = sadd.s32 %s199, 1
    %s201 = scalar_select %p198, %s199, %s200
    %p204 = pneg %p198
    %p205 = scmp.eq.s32.totalorder %s21, 3
    %p206 = por %p204, %p205
    %p207 = scmp.ne.s32.totalorder %s199, %s202
    %p208 = scmp.eq.s32.totalorder %s21, 0
    %p209 = por %p207, %p208
    %p210 = scmp.ne.s32.totalorder %s199, %s202
    %p211 = scmp.eq.s32.totalorder %s26, 3
    %p212 = por %p210, %p211
    %p213 = scmp.ne.s32.totalorder %s202, %s203
    %p214 = scmp.eq.s32.totalorder %s26, 0
    %p215 = por %p213, %p214
    %p216 = scmp.ne.s32.totalorder %s202, %s203
    %p217 = scmp.eq.s32.totalorder %s27, 3
    %p218 = por %p216, %p217
    %p220 = scmp.ne.s32.totalorder %s203, %s219
    %p221 = scmp.eq.s32.totalorder %s27, 0
    %p222 = por %p220, %p221
    %s223 = ssub.s32 %s29, %s36
    %p224 = scmp.eq.s32.totalorder %s223, 0
    %s226 = sadd.s32 %s225, 1
    %s227 = scalar_select %p224, %s225, %s226
    %p230 = pneg %p224
    %p231 = scmp.eq.s32.totalorder %s21, 3
    %p232 = por %p230, %p231
    %p233 = scmp.ne.s32.totalorder %s225, %s228
    %p234 = scmp.eq.s32.totalorder %s21, 0
    %p235 = por %p233, %p234
    %p236 = scmp.ne.s32.totalorder %s225, %s228
    %p237 = scmp.eq.s32.totalorder %s26, 3
    %p238 = por %p236, %p237
    %p239 = scmp.ne.s32.totalorder %s228, %s229
    %p240 = scmp.eq.s32.totalorder %s26, 0
    %p241 = por %p239, %p240
    %p242 = scmp.ne.s32.totalorder %s228, %s229
    %p243 = scmp.eq.s32.totalorder %s27, 3
    %p244 = por %p242, %p243
    %p246 = scmp.ne.s32.totalorder %s229, %s245
    %p247 = scmp.eq.s32.totalorder %s27, 0
    %p248 = por %p246, %p247
    %s249 = ssub.s32 %s29, %s36
    %p250 = scmp.eq.s32.totalorder %s249, 0
    %s252 = sadd.s32 %s251, 1
    %s253 = scalar_select %p250, %s251, %s252
    %p256 = pneg %p250
    %p257 = scmp.eq.s32.totalorder %s21, 3
    %p258 = por %p256, %p257
    %p259 = scmp.ne.s32.totalorder %s251, %s254
    %p260 = scmp.eq.s32.totalorder %s21, 0
    %p261 = por %p259, %p260
    %p262 = scmp.ne.s32.totalorder %s251, %s254
    %p263 = scmp.eq.s32.totalorder %s26, 3
    %p264 = por %p262, %p263
    %p265 = scmp.ne.s32.totalorder %s254, %s255
    %p266 = scmp.eq.s32.totalorder %s26, 0
    %p267 = por %p265, %p266
    %p268 = scmp.ne.s32.totalorder %s254, %s255
    %p269 = scmp.eq.s32.totalorder %s27, 3
    %p270 = por %p268, %p269
    %p272 = scmp.ne.s32.totalorder %s255, %s271
    %p273 = scmp.eq.s32.totalorder %s27, 0
    %p274 = por %p272, %p273
    %s275 = ssub.s32 %s29, %s36
    %p276 = scmp.eq.s32.totalorder %s275, 0
    %s278 = sadd.s32 %s277, 1
    %s279 = scalar_select %p276, %s277, %s278
    %p282 = pneg %p276
    %p283 = scmp.eq.s32.totalorder %s21, 3
    %p284 = por %p282, %p283
    %p285 = scmp.ne.s32.totalorder %s277, %s280
    %p286 = scmp.eq.s32.totalorder %s21, 0
    %p287 = por %p285, %p286
    %p288 = scmp.ne.s32.totalorder %s277, %s280
    %p289 = scmp.eq.s32.totalorder %s26, 3
    %p290 = por %p288, %p289
    %p291 = scmp.ne.s32.totalorder %s280, %s281
    %p292 = scmp.eq.s32.totalorder %s26, 0
    %p293 = por %p291, %p292
    %p294 = scmp.ne.s32.totalorder %s280, %s281
    %p295 = scmp.eq.s32.totalorder %s27, 3
    %p296 = por %p294, %p295
    %p298 = scmp.ne.s32.totalorder %s281, %s297
    %p299 = scmp.eq.s32.totalorder %s27, 0
    %p300 = por %p298, %p299
    %s301 = ssub.s32 %s29, %s36
    %p302 = scmp.eq.s32.totalorder %s301, 0
    %s304 = sadd.s32 %s303, 1
    %s305 = scalar_select %p302, %s303, %s304
    %p308 = pneg %p302
    %p309 = scmp.eq.s32.totalorder %s21, 3
    %p310 = por %p308, %p309
    %p311 = scmp.ne.s32.totalorder %s303, %s306
    %p312 = scmp.eq.s32.totalorder %s21, 0
    %p313 = por %p311, %p312
    %p314 = scmp.ne.s32.totalorder %s303, %s306
    %p315 = scmp.eq.s32.totalorder %s26, 3
    %p316 = por %p314, %p315
    %p317 = scmp.ne.s32.totalorder %s306, %s307
    %p318 = scmp.eq.s32.totalorder %s26, 0
    %p319 = por %p317, %p318
    %p320 = scmp.ne.s32.totalorder %s306, %s307
    %p321 = scmp.eq.s32.totalorder %s27, 3
    %p322 = por %p320, %p321
    %p324 = scmp.ne.s32.totalorder %s307, %s323
    %p325 = scmp.eq.s32.totalorder %s27, 0
    %p326 = por %p324, %p325
    %s327 = ssub.s32 %s29, %s36
    %p328 = scmp.eq.s32.totalorder %s327, 0
    %s330 = sadd.s32 %s329, 1
    %s331 = scalar_select %p328, %s329, %s330
    %p334 = pneg %p328
    %p335 = scmp.eq.s32.totalorder %s21, 3
    %p336 = por %p334, %p335
    %p337 = scmp.ne.s32.totalorder %s329, %s332
    %p338 = scmp.eq.s32.totalorder %s21, 0
    %p339 = por %p337, %p338
    %p340 = scmp.ne.s32.totalorder %s329, %s332
    %p341 = scmp.eq.s32.totalorder %s26, 3
    %p342 = por %p340, %p341
    %p343 = scmp.ne.s32.totalorder %s332, %s333
    %p344 = scmp.eq.s32.totalorder %s26, 0
    %p345 = por %p343, %p344
    %p346 = scmp.ne.s32.totalorder %s332, %s333
    %p347 = scmp.eq.s32.totalorder %s27, 3
    %p348 = por %p346, %p347
    %p350 = scmp.ne.s32.totalorder %s333, %s349
    %p351 = scmp.eq.s32.totalorder %s27, 0
    %p352 = por %p350, %p351
    %s353 = ssub.s32 %s29, %s36
    %p354 = scmp.eq.s32.totalorder %s353, 0
    %s356 = sadd.s32 %s355, 1
    %s357 = scalar_select %p354, %s355, %s356
    %p360 = pneg %p354
    %p361 = scmp.eq.s32.totalorder %s21, 3
    %p362 = por %p360, %p361
    %p363 = scmp.ne.s32.totalorder %s355, %s358
    %p364 = scmp.eq.s32.totalorder %s21, 0
    %p365 = por %p363, %p364
    %p366 = scmp.ne.s32.totalorder %s355, %s358
    %p367 = scmp.eq.s32.totalorder %s26, 3
    %p368 = por %p366, %p367
    %p369 = scmp.ne.s32.totalorder %s358, %s359
    %p370 = scmp.eq.s32.totalorder %s26, 0
    %p371 = por %p369, %p370
    %p372 = scmp.ne.s32.totalorder %s358, %s359
    %p373 = scmp.eq.s32.totalorder %s27, 3
    %p374 = por %p372, %p373
    %p376 = scmp.ne.s32.totalorder %s359, %s375
    %p377 = scmp.eq.s32.totalorder %s27, 0
    %p378 = por %p376, %p377
    %s380 = sadd.s32 %s379, 1
    %p383 = scmp.eq.s32.totalorder %s21, 3
    %p384 = scmp.ne.s32.totalorder %s379, %s381
    %p385 = scmp.eq.s32.totalorder %s21, 0
    %p386 = por %p384, %p385
    %p387 = scmp.ne.s32.totalorder %s379, %s381
    %p388 = scmp.eq.s32.totalorder %s26, 3
    %p389 = por %p387, %p388
    %p390 = scmp.ne.s32.totalorder %s381, %s382
    %p391 = scmp.eq.s32.totalorder %s26, 0
    %p392 = por %p390, %p391
    %p393 = scmp.ne.s32.totalorder %s381, %s382
    %p394 = scmp.eq.s32.totalorder %s27, 3
    %p395 = por %p393, %p394
    %p397 = scmp.ne.s32.totalorder %s382, %s396
    %p398 = scmp.eq.s32.totalorder %s27, 0
    %p399 = por %p397, %p398
    %s401 = sadd.s32 %s400, 1
    %p404 = scmp.eq.s32.totalorder %s21, 3
    %p405 = scmp.ne.s32.totalorder %s400, %s402
    %p406 = scmp.eq.s32.totalorder %s21, 0
    %p407 = por %p405, %p406
    %p408 = scmp.ne.s32.totalorder %s400, %s402
    %p409 = scmp.eq.s32.totalorder %s26, 3
    %p410 = por %p408, %p409
    %p411 = scmp.ne.s32.totalorder %s402, %s403
    %p412 = scmp.eq.s32.totalorder %s26, 0
    %p413 = por %p411, %p412
    %p414 = scmp.ne.s32.totalorder %s402, %s403
    %p415 = scmp.eq.s32.totalorder %s27, 3
    %p416 = por %p414, %p415
    %p418 = scmp.ne.s32.totalorder %s403, %s417
    %p419 = scmp.eq.s32.totalorder %s27, 0
    %p420 = por %p418, %p419
    %s421 = ssub.s32 %s28, %s40
    %p422 = scmp.eq.s32.totalorder %s421, 0
    %s424 = sadd.s32 %s423, 1
    %s425 = scalar_select %p422, %s423, %s424
    %p428 = pneg %p422
    %p429 = scmp.eq.s32.totalorder %s21, 3
    %p430 = por %p428, %p429
    %p431 = scmp.ne.s32.totalorder %s423, %s426
    %p432 = scmp.eq.s32.totalorder %s21, 0
    %p433 = por %p431, %p432
    %p434 = scmp.ne.s32.totalorder %s423, %s426
    %p435 = scmp.eq.s32.totalorder %s26, 3
    %p436 = por %p434, %p435
    %p437 = scmp.ne.s32.totalorder %s426, %s427
    %p438 = scmp.eq.s32.totalorder %s26, 0
    %p439 = por %p437, %p438
    %p440 = scmp.ne.s32.totalorder %s426, %s427
    %p441 = scmp.eq.s32.totalorder %s27, 3
    %p442 = por %p440, %p441
    %p444 = scmp.ne.s32.totalorder %s427, %s443
    %p445 = scmp.eq.s32.totalorder %s27, 0
    %p446 = por %p444, %p445
    %p447 = scmp.le.s32.totalorder 1, %s21
    %p448 = scmp.lt.s32.totalorder %s21, 5
    %p449 = pnand %p447, %p448
    %p450 = pneg %p449
    // Predicated region
    $region9: #{transformer_forward.2} parent=5 // pred_check
      _
    $region10: #{transformer_forward.2} parent=5 // pred_check_branch
      %452 = sbr.rel (%p449) target = $region12
    $region11: #{transformer_forward.2} parent=5 // pred_region
      %s453 = ssub.s32 %s21, 1
      // Predicated region
      $region13: #{transformer_forward.2} parent=11 // pred_check
        %p454 = pneg %p392
      $region14: #{transformer_forward.2} parent=11 // pred_check_branch
        %456 = sbr.rel (%p454) target = $region16
      $region15: #{transformer_forward.2} parent=11 // pred_region
        _
      $region16: #{transformer_forward.2} parent=11 // pred_fallthru
        _
      // Predicated region
      $region17: #{transformer_forward.2} parent=11 // pred_check
        %p457 = pneg %p413
      $region18: #{transformer_forward.2} parent=11 // pred_check_branch
        %459 = sbr.rel (%p457) target = $region20
      $region19: #{transformer_forward.2} parent=11 // pred_region
        _
      $region20: #{transformer_forward.2} parent=11 // pred_fallthru
        _
    $region12: #{transformer_forward.2} parent=5 // pred_fallthru
      _
    %p460 = scmp.lt.s32.totalorder %s21, 4
    // Predicated region
    $region21: #{transformer_forward.2} parent=5 // pred_check
      %p461 = pneg %p460
    $region22: #{transformer_forward.2} parent=5 // pred_check_branch
      %463 = sbr.rel (%p461) target = $region24
    $region23: #{transformer_forward.2} parent=5 // pred_region
      // Predicated region
      $region25: #{transformer_forward.2} parent=23 // pred_check
        %p464 = pneg %p53
      $region26: #{transformer_forward.2} parent=23 // pred_check_branch
        %466 = sbr.rel (%p464) target = $region28
      $region27: #{transformer_forward.2} parent=23 // pred_region
        %p467 = scmp.lt.s32.totalorder %s28, 1
        %s468 = scalar_select %p467, %s28, 1
        %s469 = smul.addr %s468, 8
        %s470 = scalar_lea.vmem %s0, %s469
      $region28: #{transformer_forward.2} parent=23 // pred_fallthru
        _
      // Predicated region
      $region29: #{transformer_forward.2} parent=23 // pred_check
        %p471 = pneg %p79
      $region30: #{transformer_forward.2} parent=23 // pred_check_branch
        %473 = sbr.rel (%p471) target = $region32
      $region31: #{transformer_forward.2} parent=23 // pred_region
        %p474 = scmp.lt.s32.totalorder %s29, 1
        %s475 = scalar_select %p474, %s29, 1
        %s476 = smul.addr %s475, 4
        %s477 = smul.addr %s476, 4
        %s478 = scalar_lea.vmem %s1, %s477
      $region32: #{transformer_forward.2} parent=23 // pred_fallthru
        _
      // Predicated region
      $region33: #{transformer_forward.2} parent=23 // pred_check
        %p479 = pneg %p105
      $region34: #{transformer_forward.2} parent=23 // pred_check_branch
        %481 = sbr.rel (%p479) target = $region36
      $region35: #{transformer_forward.2} parent=23 // pred_region
        %p482 = scmp.lt.s32.totalorder %s29, 1
        %s483 = scalar_select %p482, %s29, 1
        %s484 = scalar_lea.vmem %s2, %s483
      $region36: #{transformer_forward.2} parent=23 // pred_fallthru
        _
      // Predicated region
      $region37: #{transformer_forward.2} parent=23 // pred_check
        %p485 = pneg %p131
      $region38: #{transformer_forward.2} parent=23 // pred_check_branch
        %487 = sbr.rel (%p485) target = $region40
      $region39: #{transformer_forward.2} parent=23 // pred_region
        %p488 = scmp.lt.s32.totalorder %s29, 1
        %s489 = scalar_select %p488, %s29, 1
        %s490 = smul.addr %s489, 4
        %s491 = smul.addr %s490, 4
        %s492 = scalar_lea.vmem %s3, %s491
      $region40: #{transformer_forward.2} parent=23 // pred_fallthru
        _
      // Predicated region
      $region41: #{transformer_forward.2} parent=23 // pred_check
        %p493 = pneg %p157
      $region42: #{transformer_forward.2} parent=23 // pred_check_branch
        %495 = sbr.rel (%p493) target = $region44
      $region43: #{transformer_forward.2} parent=23 // pred_region
        %p496 = scmp.lt.s32.totalorder %s29, 1
        %s497 = scalar_select %p496, %s29, 1
        %s498 = scalar_lea.vmem %s4, %s497
      $region44: #{transformer_forward.2} parent=23 // pred_fallthru
        _
      // Predicated region
      $region45: #{transformer_forward.2} parent=23 // pred_check
        %p499 = pneg %p183
      $region46: #{transformer_forward.2} parent=23 // pred_check_branch
        %501 = sbr.rel (%p499) target = $region48
      $region47: #{transformer_forward.2} parent=23 // pred_region
        %p502 = scmp.lt.s32.totalorder %s29, 1
        %s503 = scalar_select %p502, %s29, 1
        %s504 = scalar_lea.vmem %s5, %s503
      $region48: #{transformer_forward.2} parent=23 // pred_fallthru
        _
      // Predicated region
      $region49: #{transformer_forward.2} parent=23 // pred_check
        %p505 = pneg %p209
      $region50: #{transformer_forward.2} parent=23 // pred_check_branch
        %507 = sbr.rel (%p505) target = $region52
      $region51: #{transformer_forward.2} parent=23 // pred_region
        %p508 = scmp.lt.s32.totalorder %s29, 1
        %s509 = scalar_select %p508, %s29, 1
        %s510 = scalar_lea.vmem %s6, %s509
      $region52: #{transformer_forward.2} parent=23 // pred_fallthru
        _
      // Predicated region
      $region53: #{transformer_forward.2} parent=23 // pred_check
        %p511 = pneg %p235
      $region54: #{transformer_forward.2} parent=23 // pred_check_branch
        %513 = sbr.rel (%p511) target = $region56
      $region55: #{transformer_forward.2} parent=23 // pred_region
        %p514 = scmp.lt.s32.totalorder %s29, 1
        %s515 = scalar_select %p514, %s29, 1
        %s516 = smul.addr %s515, 4
        %s517 = smul.addr %s516, 4
        %s518 = scalar_lea.vmem %s7, %s517
      $region56: #{transformer_forward.2} parent=23 // pred_fallthru
        _
      // Predicated region
      $region57: #{transformer_forward.2} parent=23 // pred_check
        %p519 = pneg %p261
      $region58: #{transformer_forward.2} parent=23 // pred_check_branch
        %521 = sbr.rel (%p519) target = $region60
      $region59: #{transformer_forward.2} parent=23 // pred_region
        %p522 = scmp.lt.s32.totalorder %s29, 1
        %s523 = scalar_select %p522, %s29, 1
        %s524 = scalar_lea.vmem %s8, %s523
      $region60: #{transformer_forward.2} parent=23 // pred_fallthru
        _
      // Predicated region
      $region61: #{transformer_forward.2} parent=23 // pred_check
        %p525 = pneg %p287
      $region62: #{transformer_forward.2} parent=23 // pred_check_branch
        %527 = sbr.rel (%p525) target = $region64
      $region63: #{transformer_forward.2} parent=23 // pred_region
        %p528 = scmp.lt.s32.totalorder %s29, 1
        %s529 = scalar_select %p528, %s29, 1
        %s530 = smul.addr %s529, 8
        %s531 = smul.addr %s530, 4
        %s532 = scalar_lea.vmem %s9, %s531
      $region64: #{transformer_forward.2} parent=23 // pred_fallthru
        _
      // Predicated region
      $region65: #{transformer_forward.2} parent=23 // pred_check
        %p533 = pneg %p313
      $region66: #{transformer_forward.2} parent=23 // pred_check_branch
        %535 = sbr.rel (%p533) target = $region68
      $region67: #{transformer_forward.2} parent=23 // pred_region
        %p536 = scmp.lt.s32.totalorder %s29, 1
        %s537 = scalar_select %p536, %s29, 1
        %s538 = scalar_lea.vmem %s10, %s537
      $region68: #{transformer_forward.2} parent=23 // pred_fallthru
        _
      // Predicated region
      $region69: #{transformer_forward.2} parent=23 // pred_check
        %p539 = pneg %p339
      $region70: #{transformer_forward.2} parent=23 // pred_check_branch
        %541 = sbr.rel (%p539) target = $region72
      $region71: #{transformer_forward.2} parent=23 // pred_region
        %p542 = scmp.lt.s32.totalorder %s29, 1
        %s543 = scalar_select %p542, %s29, 1
        %s544 = scalar_lea.vmem %s11, %s543
      $region72: #{transformer_forward.2} parent=23 // pred_fallthru
        _
      // Predicated region
      $region73: #{transformer_forward.2} parent=23 // pred_check
        %p545 = pneg %p365
      $region74: #{transformer_forward.2} parent=23 // pred_check_branch
        %547 = sbr.rel (%p545) target = $region76
      $region75: #{transformer_forward.2} parent=23 // pred_region
        %p548 = scmp.lt.s32.totalorder %s29, 1
        %s549 = scalar_select %p548, %s29, 1
        %s550 = scalar_lea.vmem %s12, %s549
      $region76: #{transformer_forward.2} parent=23 // pred_fallthru
        _
    $region24: #{transformer_forward.2} parent=5 // pred_fallthru
      _
    %p551 = scmp.le.s32.totalorder 1, %s21
    %p552 = scmp.lt.s32.totalorder %s21, 5
    %p553 = pnand %p551, %p552
    %p554 = pneg %p553
    // Predicated region
    $region77: #{transformer_forward.2} parent=5 // pred_check
      _
    $region78: #{transformer_forward.2} parent=5 // pred_check_branch
      %556 = sbr.rel (%p553) target = $region80
    $region79: #{transformer_forward.2} parent=5 // pred_region
      %s557 = ssub.s32 %s21, 1
      %p558 = scmp.lt.s32.totalorder %s30, 1
      %s559 = scalar_select %p558, %s30, 1
      %s560 = smul.addr %s559, 8
      %s561 = scalar_lea.vmem %s0, %s560
      %p562 = pneg %p59
      %p563 = pneg %p56
      %p564 = scmp.lt.s32.totalorder %s31, 1
      %s565 = scalar_select %p564, %s31, 1
      %s566 = smul.addr %s565, 4
      %s567 = smul.addr %s566, 4
      %s568 = scalar_lea.vmem %s1, %s567
      %p569 = pneg %p85
      %p570 = pneg %p82
      %p571 = scmp.lt.s32.totalorder %s31, 1
      %s572 = scalar_select %p571, %s31, 1
      %s573 = scalar_lea.vmem %s2, %s572
      %p574 = pneg %p111
      %p575 = pneg %p108
      %p576 = scmp.lt.s32.totalorder %s31, 1
      %s577 = scalar_select %p576, %s31, 1
      %s578 = smul.addr %s577, 4
      %s579 = smul.addr %s578, 4
      %s580 = scalar_lea.vmem %s3, %s579
      %p581 = pneg %p137
      %p582 = pneg %p134
      %p583 = scmp.lt.s32.totalorder %s31, 1
      %s584 = scalar_select %p583, %s31, 1
      %s585 = scalar_lea.vmem %s4, %s584
      %p586 = pneg %p163
      %p587 = pneg %p160
      %p588 = scmp.lt.s32.totalorder %s31, 1
      %s589 = scalar_select %p588, %s31, 1
      %s590 = scalar_lea.vmem %s5, %s589
      %p591 = pneg %p189
      %p592 = pneg %p186
      %p593 = scmp.lt.s32.totalorder %s31, 1
      %s594 = scalar_select %p593, %s31, 1
      %s595 = scalar_lea.vmem %s6, %s594
      %p596 = pneg %p215
      %p597 = pneg %p212
      %p598 = scmp.lt.s32.totalorder %s31, 1
      %s599 = scalar_select %p598, %s31, 1
      %s600 = smul.addr %s599, 4
      %s601 = smul.addr %s600, 4
      %s602 = scalar_lea.vmem %s7, %s601
      %p603 = pneg %p241
      %p604 = pneg %p238
      %p605 = scmp.lt.s32.totalorder %s31, 1
      %s606 = scalar_select %p605, %s31, 1
      %s607 = scalar_lea.vmem %s8, %s606
      %p608 = pneg %p267
      %p609 = pneg %p264
      %p610 = scmp.lt.s32.totalorder %s31, 1
      %s611 = scalar_select %p610, %s31, 1
      %s612 = smul.addr %s611, 8
      %s613 = smul.addr %s612, 4
      %s614 = scalar_lea.vmem %s9, %s613
      %p615 = pneg %p293
      %p616 = pneg %p290
      %p617 = scmp.lt.s32.totalorder %s31, 1
      %s618 = scalar_select %p617, %s31, 1
      %s619 = scalar_lea.vmem %s10, %s618
      %p620 = pneg %p319
      %p621 = pneg %p316
      %p622 = scmp.lt.s32.totalorder %s31, 1
      %s623 = scalar_select %p622, %s31, 1
      %s624 = scalar_lea.vmem %s11, %s623
      %p625 = pneg %p345
      %p626 = pneg %p342
      %p627 = scmp.lt.s32.totalorder %s31, 1
      %s628 = scalar_select %p627, %s31, 1
      %s629 = scalar_lea.vmem %s12, %s628
      %p630 = pneg %p371
      %p631 = pneg %p368
      %p632 = pneg %p392
      %p633 = pneg %p389
      %p634 = pneg %p413
      %p635 = pneg %p410
      %p636 = pneg %p439
      %p637 = pneg %p436
      %p638 = scmp.lt.s32.totalorder %s30, 1
      %s639 = scalar_select %p638, %s30, 1
      %s640 = smul.addr %s639, 8
      %s641 = scalar_lea.vmem %s15, %s640
      %p642 = scmp.lt.s32.totalorder %s30, 1
      %s643 = scalar_select %p642, %s30, 1
      %s644 = smul.addr %s643, 8
      %s645 = scalar_lea.vmem %s0, %s644
      %p646 = scmp.lt.s32.totalorder %s31, 1
      %s647 = scalar_select %p646, %s31, 1
      %s648 = smul.addr %s647, 4
      %s649 = smul.addr %s648, 4
      %s650 = scalar_lea.vmem %s1, %s649
      %p651 = scmp.lt.s32.totalorder %s31, 1
      %s652 = scalar_select %p651, %s31, 1
      %s653 = scalar_lea.vmem %s2, %s652
      %p654 = scmp.lt.s32.totalorder %s31, 1
      %s655 = scalar_select %p654, %s31, 1
      %s656 = smul.addr %s655, 4
      %s657 = smul.addr %s656, 4
      %s658 = scalar_lea.vmem %s3, %s657
      %p659 = scmp.lt.s32.totalorder %s31, 1
      %s660 = scalar_select %p659, %s31, 1
      %s661 = scalar_lea.vmem %s4, %s660
      %p662 = scmp.lt.s32.totalorder %s31, 1
      %s663 = scalar_select %p662, %s31, 1
      %s664 = scalar_lea.vmem %s5, %s663
      %p665 = scmp.lt.s32.totalorder %s31, 1
      %s666 = scalar_select %p665, %s31, 1
      %s667 = scalar_lea.vmem %s6, %s666
      %p668 = scmp.lt.s32.totalorder %s31, 1
      %s669 = scalar_select %p668, %s31, 1
      %s670 = smul.addr %s669, 4
      %s671 = smul.addr %s670, 4
      %s672 = scalar_lea.vmem %s7, %s671
      %p673 = scmp.lt.s32.totalorder %s31, 1
      %s674 = scalar_select %p673, %s31, 1
      %s675 = scalar_lea.vmem %s8, %s674
      %p676 = scmp.lt.s32.totalorder %s31, 1
      %s677 = scalar_select %p676, %s31, 1
      %s678 = smul.addr %s677, 8
      %s679 = smul.addr %s678, 4
      %s680 = scalar_lea.vmem %s9, %s679
      %p681 = scmp.lt.s32.totalorder %s31, 1
      %s682 = scalar_select %p681, %s31, 1
      %s683 = scalar_lea.vmem %s10, %s682
      %p684 = scmp.lt.s32.totalorder %s31, 1
      %s685 = scalar_select %p684, %s31, 1
      %s686 = scalar_lea.vmem %s11, %s685
      %p687 = scmp.lt.s32.totalorder %s31, 1
      %s688 = scalar_select %p687, %s31, 1
      %s689 = scalar_lea.vmem %s12, %s688
      %p690 = scmp.lt.s32.totalorder %s30, 1
      %s691 = scalar_select %p690, %s30, 1
      %s692 = smul.addr %s691, 8
      %s693 = scalar_lea.vmem %s15, %s692
      %p695 = scmp.eq.s32.totalorder %s31, 0
      // Predicated region
      $region81: #{transformer_forward.2} parent=79 // pred_check
        %p696 = pneg %p695
      $region82: #{transformer_forward.2} parent=79 // pred_check_branch
        %698 = sbr.rel (%p696) target = $region84
      $region83: #{transformer_forward.2} parent=79 // pred_region
        %v699 = vld [vmem:[%s645] sm:$0xff]
        %vm700 = vcmask 261120
        %701 = vst.msk [vmem:[#allocation2] sm:$0xff] %vm700, %v699
      $region84: #{transformer_forward.2} parent=79 // pred_fallthru
        _
      %v702 = vld [vmem:[#allocation2] sm:$0xff]
      %v703 = vld [vmem:[%s650] sm:$0xf]
      %v704 = vld [vmem:[%s650 + $0x4] sm:$0xf]
      %v705 = vld [vmem:[%s650 + $0x8] sm:$0xf]
      %v706 = vld [vmem:[%s650 + $0xc] sm:$0xf]
      %v707 = vld [vmem:[%s653] sm:$0x1]
      %v708 = vpack.c.bf16 %v702, %v702
      %v710 = vlaneseq
      %v711 = vshrl.u32 %v710, 7
      %v712 = vsub.s32 0, %v711
      %v713 = vrot.slane %v707, %v712
      %v719 = vunpack.c.l.b16 %v703
      %v720 = vunpack.c.l.b16 %v704
      %v721 = vunpack.c.l.b16 %v705
      %v722 = vunpack.c.l.b16 %v706
      %v723 = vpack.c.b16 %v720, %v719
      %v724 = vpack.c.b16 %v722, %v721
      %vm727 = vcmask 261120
      %v729 = vsel %vm727, %v708, 0
      %731 = vmatprep.subr.bf16.mxu0 0
      %732 = vmatpush1.bf16.msra.mxu0 %v723
      %733 = vmatprep.subr.bf16.mxu0 0
      %734 = vmatpush1.bf16.msra.mxu0 %v724
      %735 = vmatprep.subr.bf16.mxu0 0
      %736 = vmatpush1.bf16.msra.mxu0 0
      %737 = vmatprep.subr.bf16.mxu0 0
      %738 = vmatpush1.bf16.msra.mxu0 0
      %739 = vmatprep.subr.bf16.mxu0 0
      %740 = vmatpush1.bf16.msra.mxu0 0
      %741 = vmatprep.subr.bf16.mxu0 0
      %742 = vmatpush1.bf16.msra.mxu0 0
      %743 = vmatprep.subr.bf16.mxu0 0
      %744 = vmatpush1.bf16.msra.mxu0 0
      %745 = vmatprep.subr.bf16.mxu0 0
      %746 = vmatpush1.bf16.msra.mxu0 0
      %747 = vmatprep.subr.bf16.mxu0 0
      %748 = vmatpush1.bf16.msra.mxu0 0
      %749 = vmatprep.subr.bf16.mxu0 0
      %750 = vmatpush1.bf16.msra.mxu0 0
      %751 = vmatprep.subr.bf16.mxu0 0
      %752 = vmatpush1.bf16.msra.mxu0 0
      %753 = vmatprep.subr.bf16.mxu0 0
      %754 = vmatpush1.bf16.msra.mxu0 0
      %755 = vmatprep.subr.bf16.mxu0 0
      %756 = vmatpush1.bf16.msra.mxu0 0
      %757 = vmatprep.subr.bf16.mxu0 0
      %758 = vmatpush1.bf16.msra.mxu0 0
      %759 = vmatprep.subr.bf16.mxu0 0
      %760 = vmatpush1.bf16.msra.mxu0 0
      %761 = vmatprep.subr.bf16.mxu0 0
      %762 = vmatpush1.bf16.msra.mxu0 0
      %763 = vmatprep.mubr.bf16.mxu0 0
      %764 = vmatmul.mubr.bf16.gmra.mrb[0].mxu0 %v729
      %v765 = vpop.f32.mrb[0].mxu0
      %v766 = vadd.f32 %v713, %v765
      %v767 = vpop.f32.mrb[0].mxu0
      %v768 = vpop.f32.mrb[0].mxu0
      %v769 = vpop.f32.mrb[0].mxu0
      %770 = vdwg.mxu0
      %v771 = vld [vmem:[%s658] sm:$0xf]
      %v772 = vld [vmem:[%s658 + $0x4] sm:$0xf]
      %v773 = vld [vmem:[%s658 + $0x8] sm:$0xf]
      %v774 = vld [vmem:[%s658 + $0xc] sm:$0xf]
      %v775 = vld [vmem:[%s661] sm:$0x1]
      %v776 = vpack.c.bf16 %v766, %v766
      %v778 = vlaneseq
      %v779 = vshrl.u32 %v778, 7
      %v780 = vsub.s32 0, %v779
      %v781 = vrot.slane %v775, %v780
      %v783 = vadd.f32 %v781, 0.0
      %785 = vrot.lane.b32.xlu0 %v776, 96
      %v786 = vpop.permute.xlu0 %785
      %vm787 = vcmask 64512
      %v789 = vsel %vm787, %v776, 0
      %v792 = vsel %vm787, %v786, 0
      %794 = vmatprep.subr.bf16.mxu0 0
      %795 = vmatpush1.bf16.xpose.msra.mxu0 %v792
      %796 = vmatprep.subr.bf16.mxu0 0
      %797 = vmatpush1.bf16.xpose.msra.mxu0 0
      %798 = vmatprep.subr.bf16.mxu0 0
      %799 = vmatpush1.bf16.xpose.msra.mxu0 0
      %800 = vmatprep.subr.bf16.mxu0 0
      %801 = vmatpush1.bf16.xpose.msra.mxu0 0
      %802 = vmatprep.subr.bf16.mxu0 0
      %803 = vmatpush1.bf16.xpose.msra.mxu0 0
      %804 = vmatprep.subr.bf16.mxu0 0
      %805 = vmatpush1.bf16.xpose.msra.mxu0 0
      %806 = vmatprep.subr.bf16.mxu0 0
      %807 = vmatpush1.bf16.xpose.msra.mxu0 0
      %808 = vmatprep.subr.bf16.mxu0 0
      %809 = vmatpush1.bf16.xpose.msra.mxu0 0
      %810 = vmatprep.subr.bf16.mxu0 0
      %811 = vmatpush1.bf16.xpose.msra.mxu0 0
      %812 = vmatprep.subr.bf16.mxu0 0
      %813 = vmatpush1.bf16.xpose.msra.mxu0 0
      %814 = vmatprep.subr.bf16.mxu0 0
      %815 = vmatpush1.bf16.xpose.msra.mxu0 0
      %816 = vmatprep.subr.bf16.mxu0 0
      %817 = vmatpush1.bf16.xpose.msra.mxu0 0
      %818 = vmatprep.subr.bf16.mxu0 0
      %819 = vmatpush1.bf16.xpose.msra.mxu0 0
      %820 = vmatprep.subr.bf16.mxu0 0
      %821 = vmatpush1.bf16.xpose.msra.mxu0 0
      %822 = vmatprep.subr.bf16.mxu0 0
      %823 = vmatpush1.bf16.xpose.msra.mxu0 0
      %824 = vmatprep.subr.bf16.mxu0 0
      %825 = vmatpush1.bf16.xpose.msra.mxu0 0
      %826 = vmatprep.mubr.bf16.mxu0 0
      %827 = vmatmul.mubr.bf16.gmra.mrb[0].mxu0 %v789
      %v828 = vpop.f32.mrb[0].mxu0
      %v829 = vadd.f32 0.0, %v828
      %v830 = vpop.f32.mrb[0].mxu0
      %v831 = vpop.f32.mrb[0].mxu0
      %v832 = vpop.f32.mrb[0].mxu0
      %833 = vdwg.mxu0
      %v834 = vmul.f32 %v829, 0.35355338
      %v835 = vsel %vm787, %v834, -inf
      %836 = vmax.xlane.f32.xlu0 %v835
      %v837 = vpop.xlane.xlu0 %836
      %v838 = vsub.f32 %v834, %v837
      %v839 = vmul.f32 %v838, 1.442695
      %v840 = vpow.pop %v839
      %v841 = vsel %vm787, %v840, 0.0
      %842 = vadd.xlane.f32.xlu0 %v841
      %v843 = vpop.xlane.xlu0 %842
      %v844 = vrcp.pop %v843
      %v845 = vmul.f32 %v840, %v844
      %v846 = vpack.c.bf16 %v845, %v845
      %847 = vrot.lane.b32.xlu0 %v776, 64
      %v848 = vpop.permute.xlu0 %847
      %v850 = vsel %vm787, %v846, 0
      %vm852 = vcmask 1043456
      %v854 = vsel %vm852, %v848, 0
      %856 = vmatprep.subr.bf16.mxu0 0
      %857 = vmatpush1.bf16.msra.mxu0 %v854
      %858 = vmatprep.subr.bf16.mxu0 0
      %859 = vmatpush1.bf16.msra.mxu0 0
      %860 = vmatprep.subr.bf16.mxu0 0
      %861 = vmatpush1.bf16.msra.mxu0 0
      %862 = vmatprep.subr.bf16.mxu0 0
      %863 = vmatpush1.bf16.msra.mxu0 0
      %864 = vmatprep.subr.bf16.mxu0 0
      %865 = vmatpush1.bf16.msra.mxu0 0
      %866 = vmatprep.subr.bf16.mxu0 0
      %867 = vmatpush1.bf16.msra.mxu0 0
      %868 = vmatprep.subr.bf16.mxu0 0
      %869 = vmatpush1.bf16.msra.mxu0 0
      %870 = vmatprep.subr.bf16.mxu0 0
      %871 = vmatpush1.bf16.msra.mxu0 0
      %872 = vmatprep.subr.bf16.mxu0 0
      %873 = vmatpush1.bf16.msra.mxu0 0
      %874 = vmatprep.subr.bf16.mxu0 0
      %875 = vmatpush1.bf16.msra.mxu0 0
      %876 = vmatprep.subr.bf16.mxu0 0
      %877 = vmatpush1.bf16.msra.mxu0 0
      %878 = vmatprep.subr.bf16.mxu0 0
      %879 = vmatpush1.bf16.msra.mxu0 0
      %880 = vmatprep.subr.bf16.mxu0 0
      %881 = vmatpush1.bf16.msra.mxu0 0
      %882 = vmatprep.subr.bf16.mxu0 0
      %883 = vmatpush1.bf16.msra.mxu0 0
      %884 = vmatprep.subr.bf16.mxu0 0
      %885 = vmatpush1.bf16.msra.mxu0 0
      %886 = vmatprep.subr.bf16.mxu0 0
      %887 = vmatpush1.bf16.msra.mxu0 0
      %888 = vmatprep.mubr.bf16.mxu0 0
      %889 = vmatmul.mubr.bf16.gmra.mrb[0].mxu0 %v850
      %v890 = vpop.f32.mrb[0].mxu0
      %v891 = vadd.f32 0.0, %v890
      %v892 = vpop.f32.mrb[0].mxu0
      %v893 = vpop.f32.mrb[0].mxu0
      %v894 = vpop.f32.mrb[0].mxu0
      %895 = vdwg.mxu0
      %v896 = vpack.c.bf16 %v891, %v891
      %v898 = vsel %vm787, %v896, 0
      %v901 = vsel %vm852, %v771, 0
      %903 = vmatprep.subr.bf16.mxu0 0
      %904 = vmatpush1.bf16.msra.mxu0 %v901
      %905 = vmatprep.subr.bf16.mxu0 0
      %906 = vmatpush1.bf16.msra.mxu0 0
      %907 = vmatprep.subr.bf16.mxu0 0
      %908 = vmatpush1.bf16.msra.mxu0 0
      %909 = vmatprep.subr.bf16.mxu0 0
      %910 = vmatpush1.bf16.msra.mxu0 0
      %911 = vmatprep.subr.bf16.mxu0 0
      %912 = vmatpush1.bf16.msra.mxu0 0
      %913 = vmatprep.subr.bf16.mxu0 0
      %914 = vmatpush1.bf16.msra.mxu0 0
      %915 = vmatprep.subr.bf16.mxu0 0
      %916 = vmatpush1.bf16.msra.mxu0 0
      %917 = vmatprep.subr.bf16.mxu0 0
      %918 = vmatpush1.bf16.msra.mxu0 0
      %919 = vmatprep.subr.bf16.mxu0 0
      %920 = vmatpush1.bf16.msra.mxu0 0
      %921 = vmatprep.subr.bf16.mxu0 0
      %922 = vmatpush1.bf16.msra.mxu0 0
      %923 = vmatprep.subr.bf16.mxu0 0
      %924 = vmatpush1.bf16.msra.mxu0 0
      %925 = vmatprep.subr.bf16.mxu0 0
      %926 = vmatpush1.bf16.msra.mxu0 0
      %927 = vmatprep.subr.bf16.mxu0 0
      %928 = vmatpush1.bf16.msra.mxu0 0
      %929 = vmatprep.subr.bf16.mxu0 0
      %930 = vmatpush1.bf16.msra.mxu0 0
      %931 = vmatprep.subr.bf16.mxu0 0
      %932 = vmatpush1.bf16.msra.mxu0 0
      %933 = vmatprep.subr.bf16.mxu0 0
      %934 = vmatpush1.bf16.msra.mxu0 0
      %935 = vmatprep.mubr.bf16.mxu0 0
      %936 = vmatmul.mubr.bf16.gmra.mrb[0].mxu0 %v898
      %v937 = vpop.f32.mrb[0].mxu0
      %v938 = vadd.f32 0.0, %v937
      %v939 = vpop.f32.mrb[0].mxu0
      %v940 = vpop.f32.mrb[0].mxu0
      %v941 = vpop.f32.mrb[0].mxu0
      %942 = vdwg.mxu0
      %v943 = vadd.f32 %v783, %v938
      %944 = vrot.lane.b32.xlu0 %v776, 120
      %v945 = vpop.permute.xlu0 %944
      %946 = vrot.lane.b32.xlu0 %v776, 88
      %v947 = vpop.permute.xlu0 %946
      %v949 = vsel %vm787, %v945, 0
      %v952 = vsel %vm787, %v947, 0
      %954 = vmatprep.subr.bf16.mxu0 0
      %955 = vmatpush1.bf16.xpose.msra.mxu0 %v952
      %956 = vmatprep.subr.bf16.mxu0 0
      %957 = vmatpush1.bf16.xpose.msra.mxu0 0
      %958 = vmatprep.subr.bf16.mxu0 0
      %959 = vmatpush1.bf16.xpose.msra.mxu0 0
      %960 = vmatprep.subr.bf16.mxu0 0
      %961 = vmatpush1.bf16.xpose.msra.mxu0 0
      %962 = vmatprep.subr.bf16.mxu0 0
      %963 = vmatpush1.bf16.xpose.msra.mxu0 0
      %964 = vmatprep.subr.bf16.mxu0 0
      %965 = vmatpush1.bf16.xpose.msra.mxu0 0
      %966 = vmatprep.subr.bf16.mxu0 0
      %967 = vmatpush1.bf16.xpose.msra.mxu0 0
      %968 = vmatprep.subr.bf16.mxu0 0
      %969 = vmatpush1.bf16.xpose.msra.mxu0 0
      %970 = vmatprep.subr.bf16.mxu0 0
      %971 = vmatpush1.bf16.xpose.msra.mxu0 0
      %972 = vmatprep.subr.bf16.mxu0 0
      %973 = vmatpush1.bf16.xpose.msra.mxu0 0
      %974 = vmatprep.subr.bf16.mxu0 0
      %975 = vmatpush1.bf16.xpose.msra.mxu0 0
      %976 = vmatprep.subr.bf16.mxu0 0
      %977 = vmatpush1.bf16.xpose.msra.mxu0 0
      %978 = vmatprep.subr.bf16.mxu0 0
      %979 = vmatpush1.bf16.xpose.msra.mxu0 0
      %980 = vmatprep.subr.bf16.mxu0 0
      %981 = vmatpush1.bf16.xpose.msra.mxu0 0
      %982 = vmatprep.subr.bf16.mxu0 0
      %983 = vmatpush1.bf16.xpose.msra.mxu0 0
      %984 = vmatprep.subr.bf16.mxu0 0
      %985 = vmatpush1.bf16.xpose.msra.mxu0 0
      %986 = vmatprep.mubr.bf16.mxu0 0
      %987 = vmatmul.mubr.bf16.gmra.mrb[0].mxu0 %v949
      %v988 = vpop.f32.mrb[0].mxu0
      %v989 = vadd.f32 0.0, %v988
      %v990 = vpop.f32.mrb[0].mxu0
      %v991 = vpop.f32.mrb[0].mxu0
      %v992 = vpop.f32.mrb[0].mxu0
      %993 = vdwg.mxu0
      %v994 = vmul.f32 %v989, 0.35355338
      %v995 = vsel %vm787, %v994, -inf
      %996 = vmax.xlane.f32.xlu0 %v995
      %v997 = vpop.xlane.xlu0 %996
      %v998 = vsub.f32 %v994, %v997
      %v999 = vmul.f32 %v998, 1.442695
      %v1000 = vpow.pop %v999
      %v1001 = vsel %vm787, %v1000, 0.0
      %1002 = vadd.xlane.f32.xlu0 %v1001
      %v1003 = vpop.xlane.xlu0 %1002
      %v1004 = vrcp.pop %v1003
      %v1005 = vmul.f32 %v1000, %v1004
      %v1006 = vpack.c.bf16 %v1005, %v1005
      %1007 = vrot.lane.b32.xlu0 %v776, 56
      %v1008 = vpop.permute.xlu0 %1007
      %v1010 = vsel %vm787, %v1006, 0
      %v1013 = vsel %vm852, %v1008, 0
      %1015 = vmatprep.subr.bf16.mxu0 0
      %1016 = vmatpush1.bf16.msra.mxu0 %v1013
      %1017 = vmatprep.subr.bf16.mxu0 0
      %1018 = vmatpush1.bf16.msra.mxu0 0
      %1019 = vmatprep.subr.bf16.mxu0 0
      %1020 = vmatpush1.bf16.msra.mxu0 0
      %1021 = vmatprep.subr.bf16.mxu0 0
      %1022 = vmatpush1.bf16.msra.mxu0 0
      %1023 = vmatprep.subr.bf16.mxu0 0
      %1024 = vmatpush1.bf16.msra.mxu0 0
      %1025 = vmatprep.subr.bf16.mxu0 0
      %1026 = vmatpush1.bf16.msra.mxu0 0
      %1027 = vmatprep.subr.bf16.mxu0 0
      %1028 = vmatpush1.bf16.msra.mxu0 0
      %1029 = vmatprep.subr.bf16.mxu0 0
      %1030 = vmatpush1.bf16.msra.mxu0 0
      %1031 = vmatprep.subr.bf16.mxu0 0
      %1032 = vmatpush1.bf16.msra.mxu0 0
      %1033 = vmatprep.subr.bf16.mxu0 0
      %1034 = vmatpush1.bf16.msra.mxu0 0
      %1035 = vmatprep.subr.bf16.mxu0 0
      %1036 = vmatpush1.bf16.msra.mxu0 0
      %1037 = vmatprep.subr.bf16.mxu0 0
      %1038 = vmatpush1.bf16.msra.mxu0 0
      %1039 = vmatprep.subr.bf16.mxu0 0
      %1040 = vmatpush1.bf16.msra.mxu0 0
      %1041 = vmatprep.subr.bf16.mxu0 0
      %1042 = vmatpush1.bf16.msra.mxu0 0
      %1043 = vmatprep.subr.bf16.mxu0 0
      %1044 = vmatpush1.bf16.msra.mxu0 0
      %1045 = vmatprep.subr.bf16.mxu0 0
      %1046 = vmatpush1.bf16.msra.mxu0 0
      %1047 = vmatprep.mubr.bf16.mxu0 0
      %1048 = vmatmul.mubr.bf16.gmra.mrb[0].mxu0 %v1010
      %v1049 = vpop.f32.mrb[0].mxu0
      %v1050 = vadd.f32 0.0, %v1049
      %v1051 = vpop.f32.mrb[0].mxu0
      %v1052 = vpop.f32.mrb[0].mxu0
      %v1053 = vpop.f32.mrb[0].mxu0
      %1054 = vdwg.mxu0
      %v1055 = vpack.c.bf16 %v1050, %v1050
      %v1057 = vsel %vm787, %v1055, 0
      %v1060 = vsel %vm852, %v772, 0
      %1062 = vmatprep.subr.bf16.mxu0 0
      %1063 = vmatpush1.bf16.msra.mxu0 %v1060
      %1064 = vmatprep.subr.bf16.mxu0 0
      %1065 = vmatpush1.bf16.msra.mxu0 0
      %1066 = vmatprep.subr.bf16.mxu0 0
      %1067 = vmatpush1.bf16.msra.mxu0 0
      %1068 = vmatprep.subr.bf16.mxu0 0
      %1069 = vmatpush1.bf16.msra.mxu0 0
      %1070 = vmatprep.subr.bf16.mxu0 0
      %1071 = vmatpush1.bf16.msra.mxu0 0
      %1072 = vmatprep.subr.bf16.mxu0 0
      %1073 = vmatpush1.bf16.msra.mxu0 0
      %1074 = vmatprep.subr.bf16.mxu0 0
      %1075 = vmatpush1.bf16.msra.mxu0 0
      %1076 = vmatprep.subr.bf16.mxu0 0
      %1077 = vmatpush1.bf16.msra.mxu0 0
      %1078 = vmatprep.subr.bf16.mxu0 0
      %1079 = vmatpush1.bf16.msra.mxu0 0
      %1080 = vmatprep.subr.bf16.mxu0 0
      %1081 = vmatpush1.bf16.msra.mxu0 0
      %1082 = vmatprep.subr.bf16.mxu0 0
      %1083 = vmatpush1.bf16.msra.mxu0 0
      %1084 = vmatprep.subr.bf16.mxu0 0
      %1085 = vmatpush1.bf16.msra.mxu0 0
      %1086 = vmatprep.subr.bf16.mxu0 0
      %1087 = vmatpush1.bf16.msra.mxu0 0
      %1088 = vmatprep.subr.bf16.mxu0 0
      %1089 = vmatpush1.bf16.msra.mxu0 0
      %1090 = vmatprep.subr.bf16.mxu0 0
      %1091 = vmatpush1.bf16.msra.mxu0 0
      %1092 = vmatprep.subr.bf16.mxu0 0
      %1093 = vmatpush1.bf16.msra.mxu0 0
      %1094 = vmatprep.mubr.bf16.mxu0 0
      %1095 = vmatmul.mubr.bf16.gmra.mrb[0].mxu0 %v1057
      %v1096 = vpop.f32.mrb[0].mxu0
      %v1097 = vadd.f32 0.0, %v1096
      %v1098 = vpop.f32.mrb[0].mxu0
      %v1099 = vpop.f32.mrb[0].mxu0
      %v1100 = vpop.f32.mrb[0].mxu0
      %1101 = vdwg.mxu0
      %v1102 = vadd.f32 %v943, %v1097
      %1103 = vrot.lane.b32.xlu0 %v776, 112
      %v1104 = vpop.permute.xlu0 %1103
      %1105 = vrot.lane.b32.xlu0 %v776, 80
      %v1106 = vpop.permute.xlu0 %1105
      %v1108 = vsel %vm787, %v1104, 0
      %v1111 = vsel %vm787, %v1106, 0
      %1113 = vmatprep.subr.bf16.mxu0 0
      %1114 = vmatpush1.bf16.xpose.msra.mxu0 %v1111
      %1115 = vmatprep.subr.bf16.mxu0 0
      %1116 = vmatpush1.bf16.xpose.msra.mxu0 0
      %1117 = vmatprep.subr.bf16.mxu0 0
      %1118 = vmatpush1.bf16.xpose.msra.mxu0 0
      %1119 = vmatprep.subr.bf16.mxu0 0
      %1120 = vmatpush1.bf16.xpose.msra.mxu0 0
      %1121 = vmatprep.subr.bf16.mxu0 0
      %1122 = vmatpush1.bf16.xpose.msra.mxu0 0
      %1123 = vmatprep.subr.bf16.mxu0 0
      %1124 = vmatpush1.bf16.xpose.msra.mxu0 0
      %1125 = vmatprep.subr.bf16.mxu0 0
      %1126 = vmatpush1.bf16.xpose.msra.mxu0 0
      %1127 = vmatprep.subr.bf16.mxu0 0
      %1128 = vmatpush1.bf16.xpose.msra.mxu0 0
      %1129 = vmatprep.subr.bf16.mxu0 0
      %1130 = vmatpush1.bf16.xpose.msra.mxu0 0
      %1131 = vmatprep.subr.bf16.mxu0 0
      %1132 = vmatpush1.bf16.xpose.msra.mxu0 0
      %1133 = vmatprep.subr.bf16.mxu0 0
      %1134 = vmatpush1.bf16.xpose.msra.mxu0 0
      %1135 = vmatprep.subr.bf16.mxu0 0
      %1136 = vmatpush1.bf16.xpose.msra.mxu0 0
      %1137 = vmatprep.subr.bf16.mxu0 0
      %1138 = vmatpush1.bf16.xpose.msra.mxu0 0
      %1139 = vmatprep.subr.bf16.mxu0 0
      %1140 = vmatpush1.bf16.xpose.msra.mxu0 0
      %1141 = vmatprep.subr.bf16.mxu0 0
      %1142 = vmatpush1.bf16.xpose.msra.mxu0 0
      %1143 = vmatprep.subr.bf16.mxu0 0
      %1144 = vmatpush1.bf16.xpose.msra.mxu0 0
      %1145 = vmatprep.mubr.bf16.mxu0 0
      %1146 = vmatmul.mubr.bf16.gmra.mrb[0].mxu0 %v1108
      %v1147 = vpop.f32.mrb[0].mxu0
      %v1148 = vadd.f32 0.0, %v1147
      %v1149 = vpop.f32.mrb[0].mxu0
      %v1150 = vpop.f32.mrb[0].mxu0
      %v1151 = vpop.f32.mrb[0].mxu0
      %1152 = vdwg.mxu0
      %v1153 = vmul.f32 %v1148, 0.35355338
      %v1154 = vsel %vm787, %v1153, -inf
      %1155 = vmax.xlane.f32.xlu0 %v1154
      %v1156 = vpop.xlane.xlu0 %1155
      %v1157 = vsub.f32 %v1153, %v1156
      %v1158 = vmul.f32 %v1157, 1.442695
      %v1159 = vpow.pop %v1158
      %v1160 = vsel %vm787, %v1159, 0.0
      %1161 = vadd.xlane.f32.xlu0 %v1160
      %v1162 = vpop.xlane.xlu0 %1161
      %v1163 = vrcp.pop %v1162
      %v1164 = vmul.f32 %v1159, %v1163
      %v1165 = vpack.c.bf16 %v1164, %v1164
      %1166 = vrot.lane.b32.xlu0 %v776, 48
      %v1167 = vpop.permute.xlu0 %1166
      %v1169 = vsel %vm787, %v1165, 0
      %v1172 = vsel %vm852, %v1167, 0
      %1174 = vmatprep.subr.bf16.mxu0 0
      %1175 = vmatpush1.bf16.msra.mxu0 %v1172
      %1176 = vmatprep.subr.bf16.mxu0 0
      %1177 = vmatpush1.bf16.msra.mxu0 0
      %1178 = vmatprep.subr.bf16.mxu0 0
      %1179 = vmatpush1.bf16.msra.mxu0 0
      %1180 = vmatprep.subr.bf16.mxu0 0
      %1181 = vmatpush1.bf16.msra.mxu0 0
      %1182 = vmatprep.subr.bf16.mxu0 0
      %1183 = vmatpush1.bf16.msra.mxu0 0
      %1184 = vmatprep.subr.bf16.mxu0 0
      %1185 = vmatpush1.bf16.msra.mxu0 0
      %1186 = vmatprep.subr.bf16.mxu0 0
      %1187 = vmatpush1.bf16.msra.mxu0 0
      %1188 = vmatprep.subr.bf16.mxu0 0
      %1189 = vmatpush1.bf16.msra.mxu0 0
      %1190 = vmatprep.subr.bf16.mxu0 0
      %1191 = vmatpush1.bf16.msra.mxu0 0
      %1192 = vmatprep.subr.bf16.mxu0 0
      %1193 = vmatpush1.bf16.msra.mxu0 0
      %1194 = vmatprep.subr.bf16.mxu0 0
      %1195 = vmatpush1.bf16.msra.mxu0 0
      %1196 = vmatprep.subr.bf16.mxu0 0
      %1197 = vmatpush1.bf16.msra.mxu0 0
      %1198 = vmatprep.subr.bf16.mxu0 0
      %1199 = vmatpush1.bf16.msra.mxu0 0
      %1200 = vmatprep.subr.bf16.mxu0 0
      %1201 = vmatpush1.bf16.msra.mxu0 0
      %1202 = vmatprep.subr.bf16.mxu0 0
      %1203 = vmatpush1.bf16.msra.mxu0 0
      %1204 = vmatprep.subr.bf16.mxu0 0
      %1205 = vmatpush1.bf16.msra.mxu0 0
      %1206 = vmatprep.mubr.bf16.mxu0 0
      %1207 = vmatmul.mubr.bf16.gmra.mrb[0].mxu0 %v1169
      %v1208 = vpop.f32.mrb[0].mxu0
      %v1209 = vadd.f32 0.0, %v1208
      %v1210 = vpop.f32.mrb[0].mxu0
      %v1211 = vpop.f32.mrb[0].mxu0
      %v1212 = vpop.f32.mrb[0].mxu0
      %1213 = vdwg.mxu0
      %v1214 = vpack.c.bf16 %v1209, %v1209
      %v1216 = vsel %vm787, %v1214, 0
      %v1219 = vsel %vm852, %v773, 0
      %1221 = vmatprep.subr.bf16.mxu0 0
      %1222 = vmatpush1.bf16.msra.mxu0 %v1219
      %1223 = vmatprep.subr.bf16.mxu0 0
      %1224 = vmatpush1.bf16.msra.mxu0 0
      %1225 = vmatprep.subr.bf16.mxu0 0
      %1226 = vmatpush1.bf16.msra.mxu0 0
      %1227 = vmatprep.subr.bf16.mxu0 0
      %1228 = vmatpush1.bf16.msra.mxu0 0
      %1229 = vmatprep.subr.bf16.mxu0 0
      %1230 = vmatpush1.bf16.msra.mxu0 0
      %1231 = vmatprep.subr.bf16.mxu0 0
      %1232 = vmatpush1.bf16.msra.mxu0 0
      %1233 = vmatprep.subr.bf16.mxu0 0
      %1234 = vmatpush1.bf16.msra.mxu0 0
      %1235 = vmatprep.subr.bf16.mxu0 0
      %1236 = vmatpush1.bf16.msra.mxu0 0
      %1237 = vmatprep.subr.bf16.mxu0 0
      %1238 = vmatpush1.bf16.msra.mxu0 0
      %1239 = vmatprep.subr.bf16.mxu0 0
      %1240 = vmatpush1.bf16.msra.mxu0 0
      %1241 = vmatprep.subr.bf16.mxu0 0
      %1242 = vmatpush1.bf16.msra.mxu0 0
      %1243 = vmatprep.subr.bf16.mxu0 0
      %1244 = vmatpush1.bf16.msra.mxu0 0
      %1245 = vmatprep.subr.bf16.mxu0 0
      %1246 = vmatpush1.bf16.msra.mxu0 0
      %1247 = vmatprep.subr.bf16.mxu0 0
      %1248 = vmatpush1.bf16.msra.mxu0 0
      %1249 = vmatprep.subr.bf16.mxu0 0
      %1250 = vmatpush1.bf16.msra.mxu0 0
      %1251 = vmatprep.subr.bf16.mxu0 0
      %1252 = vmatpush1.bf16.msra.mxu0 0
      %1253 = vmatprep.mubr.bf16.mxu0 0
      %1254 = vmatmul.mubr.bf16.gmra.mrb[0].mxu0 %v1216
      %v1255 = vpop.f32.mrb[0].mxu0
      %v1256 = vadd.f32 0.0, %v1255
      %v1257 = vpop.f32.mrb[0].mxu0
      %v1258 = vpop.f32.mrb[0].mxu0
      %v1259 = vpop.f32.mrb[0].mxu0
      %1260 = vdwg.mxu0
      %v1261 = vadd.f32 %v1102, %v1256
      %1262 = vrot.lane.b32.xlu0 %v776, 104
      %v1263 = vpop.permute.xlu0 %1262
      %1264 = vrot.lane.b32.xlu0 %v776, 72
      %v1265 = vpop.permute.xlu0 %1264
      %v1267 = vsel %vm787, %v1263, 0
      %v1270 = vsel %vm787, %v1265, 0
      %1272 = vmatprep.subr.bf16.mxu0 0
      %1273 = vmatpush1.bf16.xpose.msra.mxu0 %v1270
      %1274 = vmatprep.subr.bf16.mxu0 0
      %1275 = vmatpush1.bf16.xpose.msra.mxu0 0
      %1276 = vmatprep.subr.bf16.mxu0 0
      %1277 = vmatpush1.bf16.xpose.msra.mxu0 0
      %1278 = vmatprep.subr.bf16.mxu0 0
      %1279 = vmatpush1.bf16.xpose.msra.mxu0 0
      %1280 = vmatprep.subr.bf16.mxu0 0
      %1281 = vmatpush1.bf16.xpose.msra.mxu0 0
      %1282 = vmatprep.subr.bf16.mxu0 0
      %1283 = vmatpush1.bf16.xpose.msra.mxu0 0
      %1284 = vmatprep.subr.bf16.mxu0 0
      %1285 = vmatpush1.bf16.xpose.msra.mxu0 0
      %1286 = vmatprep.subr.bf16.mxu0 0
      %1287 = vmatpush1.bf16.xpose.msra.mxu0 0
      %1288 = vmatprep.subr.bf16.mxu0 0
      %1289 = vmatpush1.bf16.xpose.msra.mxu0 0
      %1290 = vmatprep.subr.bf16.mxu0 0
      %1291 = vmatpush1.bf16.xpose.msra.mxu0 0
      %1292 = vmatprep.subr.bf16.mxu0 0
      %1293 = vmatpush1.bf16.xpose.msra.mxu0 0
      %1294 = vmatprep.subr.bf16.mxu0 0
      %1295 = vmatpush1.bf16.xpose.msra.mxu0 0
      %1296 = vmatprep.subr.bf16.mxu0 0
      %1297 = vmatpush1.bf16.xpose.msra.mxu0 0
      %1298 = vmatprep.subr.bf16.mxu0 0
      %1299 = vmatpush1.bf16.xpose.msra.mxu0 0
      %1300 = vmatprep.subr.bf16.mxu0 0
      %1301 = vmatpush1.bf16.xpose.msra.mxu0 0
      %1302 = vmatprep.subr.bf16.mxu0 0
      %1303 = vmatpush1.bf16.xpose.msra.mxu0 0
      %1304 = vmatprep.mubr.bf16.mxu0 0
      %1305 = vmatmul.mubr.bf16.gmra.mrb[0].mxu0 %v1267
      %v1306 = vpop.f32.mrb[0].mxu0
      %v1307 = vadd.f32 0.0, %v1306
      %v1308 = vpop.f32.mrb[0].mxu0
      %v1309 = vpop.f32.mrb[0].mxu0
      %v1310 = vpop.f32.mrb[0].mxu0
      %1311 = vdwg.mxu0
      %v1312 = vmul.f32 %v1307, 0.35355338
      %v1313 = vsel %vm787, %v1312, -inf
      %1314 = vmax.xlane.f32.xlu0 %v1313
      %v1315 = vpop.xlane.xlu0 %1314
      %v1316 = vsub.f32 %v1312, %v1315
      %v1317 = vmul.f32 %v1316, 1.442695
      %v1318 = vpow.pop %v1317
      %v1319 = vsel %vm787, %v1318, 0.0
      %1320 = vadd.xlane.f32.xlu0 %v1319
      %v1321 = vpop.xlane.xlu0 %1320
      %v1322 = vrcp.pop %v1321
      %v1323 = vmul.f32 %v1318, %v1322
      %v1324 = vpack.c.bf16 %v1323, %v1323
      %1325 = vrot.lane.b32.xlu0 %v776, 40
      %v1326 = vpop.permute.xlu0 %1325
      %v1328 = vsel %vm787, %v1324, 0
      %v1331 = vsel %vm852, %v1326, 0
      %1333 = vmatprep.subr.bf16.mxu0 0
      %1334 = vmatpush1.bf16.msra.mxu0 %v1331
      %1335 = vmatprep.subr.bf16.mxu0 0
      %1336 = vmatpush1.bf16.msra.mxu0 0
      %1337 = vmatprep.subr.bf16.mxu0 0
      %1338 = vmatpush1.bf16.msra.mxu0 0
      %1339 = vmatprep.subr.bf16.mxu0 0
      %1340 = vmatpush1.bf16.msra.mxu0 0
      %1341 = vmatprep.subr.bf16.mxu0 0
      %1342 = vmatpush1.bf16.msra.mxu0 0
      %1343 = vmatprep.subr.bf16.mxu0 0
      %1344 = vmatpush1.bf16.msra.mxu0 0
      %1345 = vmatprep.subr.bf16.mxu0 0
      %1346 = vmatpush1.bf16.msra.mxu0 0
      %1347 = vmatprep.subr.bf16.mxu0 0
      %1348 = vmatpush1.bf16.msra.mxu0 0
      %1349 = vmatprep.subr.bf16.mxu0 0
      %1350 = vmatpush1.bf16.msra.mxu0 0
      %1351 = vmatprep.subr.bf16.mxu0 0
      %1352 = vmatpush1.bf16.msra.mxu0 0
      %1353 = vmatprep.subr.bf16.mxu0 0
      %1354 = vmatpush1.bf16.msra.mxu0 0
      %1355 = vmatprep.subr.bf16.mxu0 0
      %1356 = vmatpush1.bf16.msra.mxu0 0
      %1357 = vmatprep.subr.bf16.mxu0 0
      %1358 = vmatpush1.bf16.msra.mxu0 0
      %1359 = vmatprep.subr.bf16.mxu0 0
      %1360 = vmatpush1.bf16.msra.mxu0 0
      %1361 = vmatprep.subr.bf16.mxu0 0
      %1362 = vmatpush1.bf16.msra.mxu0 0
      %1363 = vmatprep.subr.bf16.mxu0 0
      %1364 = vmatpush1.bf16.msra.mxu0 0
      %1365 = vmatprep.mubr.bf16.mxu0 0
      %1366 = vmatmul.mubr.bf16.gmra.mrb[0].mxu0 %v1328
      %v1367 = vpop.f32.mrb[0].mxu0
      %v1368 = vadd.f32 0.0, %v1367
      %v1369 = vpop.f32.mrb[0].mxu0
      %v1370 = vpop.f32.mrb[0].mxu0
      %v1371 = vpop.f32.mrb[0].mxu0
      %1372 = vdwg.mxu0
      %v1373 = vpack.c.bf16 %v1368, %v1368
      %v1375 = vsel %vm787, %v1373, 0
      %v1378 = vsel %vm852, %v774, 0
      %1380 = vmatprep.subr.bf16.mxu0 0
      %1381 = vmatpush1.bf16.msra.mxu0 %v1378
      %1382 = vmatprep.subr.bf16.mxu0 0
      %1383 = vmatpush1.bf16.msra.mxu0 0
      %1384 = vmatprep.subr.bf16.mxu0 0
      %1385 = vmatpush1.bf16.msra.mxu0 0
      %1386 = vmatprep.subr.bf16.mxu0 0
      %1387 = vmatpush1.bf16.msra.mxu0 0
      %1388 = vmatprep.subr.bf16.mxu0 0
      %1389 = vmatpush1.bf16.msra.mxu0 0
      %1390 = vmatprep.subr.bf16.mxu0 0
      %1391 = vmatpush1.bf16.msra.mxu0 0
      %1392 = vmatprep.subr.bf16.mxu0 0
      %1393 = vmatpush1.bf16.msra.mxu0 0
      %1394 = vmatprep.subr.bf16.mxu0 0
      %1395 = vmatpush1.bf16.msra.mxu0 0
      %1396 = vmatprep.subr.bf16.mxu0 0
      %1397 = vmatpush1.bf16.msra.mxu0 0
      %1398 = vmatprep.subr.bf16.mxu0 0
      %1399 = vmatpush1.bf16.msra.mxu0 0
      %1400 = vmatprep.subr.bf16.mxu0 0
      %1401 = vmatpush1.bf16.msra.mxu0 0
      %1402 = vmatprep.subr.bf16.mxu0 0
      %1403 = vmatpush1.bf16.msra.mxu0 0
      %1404 = vmatprep.subr.bf16.mxu0 0
      %1405 = vmatpush1.bf16.msra.mxu0 0
      %1406 = vmatprep.subr.bf16.mxu0 0
      %1407 = vmatpush1.bf16.msra.mxu0 0
      %1408 = vmatprep.subr.bf16.mxu0 0
      %1409 = vmatpush1.bf16.msra.mxu0 0
      %1410 = vmatprep.subr.bf16.mxu0 0
      %1411 = vmatpush1.bf16.msra.mxu0 0
      %1412 = vmatprep.mubr.bf16.mxu0 0
      %1413 = vmatmul.mubr.bf16.gmra.mrb[0].mxu0 %v1375
      %v1414 = vpop.f32.mrb[0].mxu0
      %v1415 = vadd.f32 0.0, %v1414
      %v1416 = vpop.f32.mrb[0].mxu0
      %v1417 = vpop.f32.mrb[0].mxu0
      %v1418 = vpop.f32.mrb[0].mxu0
      %1419 = vdwg.mxu0
      %v1420 = vadd.f32 %v1261, %v1415
      %v1421 = vadd.f32 %v702, %v1420
      %v1422 = vld [vmem:[%s664] sm:$0x1]
      %v1423 = vld [vmem:[%s667] sm:$0x1]
      %v1424 = vsel %vm727, %v1421, 0.0
      %1425 = vadd.xlane.f32.xlu0 %v1424
      %v1426 = vpop.xlane.xlu0 %1425
      %v1427 = vrcp.pop 32.0
      %v1428 = vmul.f32 %v1426, %v1427
      %v1429 = vsub.f32 %v1421, %v1428
      %v1430 = vmul.f32 %v1429, %v1429
      %v1431 = vsel %vm727, %v1430, 0.0
      %1432 = vadd.xlane.f32.xlu0 %v1431
      %v1433 = vpop.xlane.xlu0 %1432
      %v1434 = vmul.f32 %v1433, %v1427
      %v1435 = vadd.f32 %v1434, 1e-05
      %v1436 = vrsqrt.pop %v1435
      %v1437 = vmul.f32 %v1429, %v1436
      %v1439 = vlaneseq
      %v1440 = vshrl.u32 %v1439, 7
      %v1441 = vsub.s32 0, %v1440
      %v1442 = vrot.slane %v1422, %v1441
      %v1444 = vmul.f32 %v1437, %v1442
      %v1446 = vlaneseq
      %v1447 = vshrl.u32 %v1446, 7
      %v1448 = vsub.s32 0, %v1447
      %v1449 = vrot.slane %v1423, %v1448
      %v1451 = vadd.f32 %v1444, %v1449
      %v1452 = vld [vmem:[%s672] sm:$0xf]
      %v1453 = vld [vmem:[%s672 + $0x4] sm:$0xf]
      %v1454 = vld [vmem:[%s672 + $0x8] sm:$0xf]
      %v1455 = vld [vmem:[%s672 + $0xc] sm:$0xf]
      %v1456 = vld [vmem:[%s675] sm:$0x1]
      %v1457 = vpack.c.bf16 %v1451, %v1451
      %v1459 = vlaneseq
      %v1460 = vshrl.u32 %v1459, 7
      %v1461 = vsub.s32 0, %v1460
      %v1462 = vrot.slane %v1456, %v1461
      %v1468 = vunpack.c.l.b16 %v1452
      %v1469 = vunpack.c.l.b16 %v1453
      %v1470 = vunpack.c.l.b16 %v1454
      %v1471 = vunpack.c.l.b16 %v1455
      %v1472 = vpack.c.b16 %v1469, %v1468
      %v1473 = vpack.c.b16 %v1471, %v1470
      %v1477 = vsel %vm727, %v1457, 0
      %1479 = vmatprep.subr.bf16.mxu0 0
      %1480 = vmatpush1.bf16.msra.mxu0 %v1472
      %1481 = vmatprep.subr.bf16.mxu0 0
      %1482 = vmatpush1.bf16.msra.mxu0 %v1473
      %1483 = vmatprep.subr.bf16.mxu0 0
      %1484 = vmatpush1.bf16.msra.mxu0 0
      %1485 = vmatprep.subr.bf16.mxu0 0
      %1486 = vmatpush1.bf16.msra.mxu0 0
      %1487 = vmatprep.subr.bf16.mxu0 0
      %1488 = vmatpush1.bf16.msra.mxu0 0
      %1489 = vmatprep.subr.bf16.mxu0 0
      %1490 = vmatpush1.bf16.msra.mxu0 0
      %1491 = vmatprep.subr.bf16.mxu0 0
      %1492 = vmatpush1.bf16.msra.mxu0 0
      %1493 = vmatprep.subr.bf16.mxu0 0
      %1494 = vmatpush1.bf16.msra.mxu0 0
      %1495 = vmatprep.subr.bf16.mxu0 0
      %1496 = vmatpush1.bf16.msra.mxu0 0
      %1497 = vmatprep.subr.bf16.mxu0 0
      %1498 = vmatpush1.bf16.msra.mxu0 0
      %1499 = vmatprep.subr.bf16.mxu0 0
      %1500 = vmatpush1.bf16.msra.mxu0 0
      %1501 = vmatprep.subr.bf16.mxu0 0
      %1502 = vmatpush1.bf16.msra.mxu0 0
      %1503 = vmatprep.subr.bf16.mxu0 0
      %1504 = vmatpush1.bf16.msra.mxu0 0
      %1505 = vmatprep.subr.bf16.mxu0 0
      %1506 = vmatpush1.bf16.msra.mxu0 0
      %1507 = vmatprep.subr.bf16.mxu0 0
      %1508 = vmatpush1.bf16.msra.mxu0 0
      %1509 = vmatprep.subr.bf16.mxu0 0
      %1510 = vmatpush1.bf16.msra.mxu0 0
      %1511 = vmatprep.mubr.bf16.mxu0 0
      %1512 = vmatmul.mubr.bf16.gmra.mrb[0].mxu0 %v1477
      %v1513 = vpop.f32.mrb[0].mxu0
      %v1514 = vadd.f32 %v1462, %v1513
      %v1515 = vpop.f32.mrb[0].mxu0
      %v1516 = vpop.f32.mrb[0].mxu0
      %v1517 = vpop.f32.mrb[0].mxu0
      %1518 = vdwg.mxu0
      %v1519 = vmax.f32 %v1514, 0.0
      %v1520 = vld [vmem:[%s680] sm:$0xf]
      %v1521 = vld [vmem:[%s680 + $0x4] sm:$0xf]
      %v1522 = vld [vmem:[%s680 + $0x8] sm:$0xf]
      %v1523 = vld [vmem:[%s680 + $0xc] sm:$0xf]
      %v1524 = vld [vmem:[%s680 + $0x10] sm:$0xf]
      %v1525 = vld [vmem:[%s680 + $0x14] sm:$0xf]
      %v1526 = vld [vmem:[%s680 + $0x18] sm:$0xf]
      %v1527 = vld [vmem:[%s680 + $0x1c] sm:$0xf]
      %v1528 = vld [vmem:[%s683] sm:$0x1]
      %v1529 = vpack.c.bf16 %v1519, %v1519
      %v1531 = vlaneseq
      %v1532 = vshrl.u32 %v1531, 7
      %v1533 = vsub.s32 0, %v1532
      %v1534 = vrot.slane %v1528, %v1533
      %v1544 = vunpack.c.l.b16 %v1520
      %v1545 = vunpack.c.l.b16 %v1521
      %v1546 = vunpack.c.l.b16 %v1522
      %v1547 = vunpack.c.l.b16 %v1523
      %v1548 = vunpack.c.l.b16 %v1524
      %v1549 = vunpack.c.l.b16 %v1525
      %v1550 = vunpack.c.l.b16 %v1526
      %v1551 = vunpack.c.l.b16 %v1527
      %v1552 = vpack.c.b16 %v1545, %v1544
      %v1553 = vpack.c.b16 %v1547, %v1546
      %v1554 = vpack.c.b16 %v1549, %v1548
      %v1555 = vpack.c.b16 %v1551, %v1550
      %vm1560 = vcmask 523264
      %v1562 = vsel %vm1560, %v1529, 0
      %1564 = vmatprep.subr.bf16.mxu0 0
      %1565 = vmatpush1.bf16.msra.mxu0 %v1552
      %1566 = vmatprep.subr.bf16.mxu0 0
      %1567 = vmatpush1.bf16.msra.mxu0 %v1553
      %1568 = vmatprep.subr.bf16.mxu0 0
      %1569 = vmatpush1.bf16.msra.mxu0 %v1554
      %1570 = vmatprep.subr.bf16.mxu0 0
      %1571 = vmatpush1.bf16.msra.mxu0 %v1555
      %1572 = vmatprep.subr.bf16.mxu0 0
      %1573 = vmatpush1.bf16.msra.mxu0 0
      %1574 = vmatprep.subr.bf16.mxu0 0
      %1575 = vmatpush1.bf16.msra.mxu0 0
      %1576 = vmatprep.subr.bf16.mxu0 0
      %1577 = vmatpush1.bf16.msra.mxu0 0
      %1578 = vmatprep.subr.bf16.mxu0 0
      %1579 = vmatpush1.bf16.msra.mxu0 0
      %1580 = vmatprep.subr.bf16.mxu0 0
      %1581 = vmatpush1.bf16.msra.mxu0 0
      %1582 = vmatprep.subr.bf16.mxu0 0
      %1583 = vmatpush1.bf16.msra.mxu0 0
      %1584 = vmatprep.subr.bf16.mxu0 0
      %1585 = vmatpush1.bf16.msra.mxu0 0
      %1586 = vmatprep.subr.bf16.mxu0 0
      %1587 = vmatpush1.bf16.msra.mxu0 0
      %1588 = vmatprep.subr.bf16.mxu0 0
      %1589 = vmatpush1.bf16.msra.mxu0 0
      %1590 = vmatprep.subr.bf16.mxu0 0
      %1591 = vmatpush1.bf16.msra.mxu0 0
      %1592 = vmatprep.subr.bf16.mxu0 0
      %1593 = vmatpush1.bf16.msra.mxu0 0
      %1594 = vmatprep.subr.bf16.mxu0 0
      %1595 = vmatpush1.bf16.msra.mxu0 0
      %1596 = vmatprep.mubr.bf16.mxu0 0
      %1597 = vmatmul.mubr.bf16.gmra.mrb[0].mxu0 %v1562
      %v1598 = vpop.f32.mrb[0].mxu0
      %v1599 = vadd.f32 %v1534, %v1598
      %v1600 = vpop.f32.mrb[0].mxu0
      %v1601 = vpop.f32.mrb[0].mxu0
      %v1602 = vpop.f32.mrb[0].mxu0
      %1603 = vdwg.mxu0
      %v1604 = vadd.f32 %v1451, %v1599
      %v1605 = vld [vmem:[%s686] sm:$0x1]
      %v1606 = vld [vmem:[%s689] sm:$0x1]
      %v1607 = vsel %vm727, %v1604, 0.0
      %1608 = vadd.xlane.f32.xlu0 %v1607
      %v1609 = vpop.xlane.xlu0 %1608
      %v1610 = vmul.f32 %v1609, %v1427
      %v1611 = vsub.f32 %v1604, %v1610
      %v1612 = vmul.f32 %v1611, %v1611
      %v1613 = vsel %vm727, %v1612, 0.0
      %1614 = vadd.xlane.f32.xlu0 %v1613
      %v1615 = vpop.xlane.xlu0 %1614
      %v1616 = vmul.f32 %v1615, %v1427
      %v1617 = vadd.f32 %v1616, 1e-05
      %v1618 = vrsqrt.pop %v1617
      %v1619 = vmul.f32 %v1611, %v1618
      %v1621 = vlaneseq
      %v1622 = vshrl.u32 %v1621, 7
      %v1623 = vsub.s32 0, %v1622
      %v1624 = vrot.slane %v1605, %v1623
      %v1626 = vmul.f32 %v1619, %v1624
      %v1628 = vlaneseq
      %v1629 = vshrl.u32 %v1628, 7
      %v1630 = vsub.s32 0, %v1629
      %v1631 = vrot.slane %v1606, %v1630
      %v1633 = vadd.f32 %v1626, %v1631
      %1634 = vst.msk [vmem:[#allocation2] sm:$0xff] %vm727, %v1633
      %p1635 = scmp.eq.s32.totalorder %s31, 1
      // Predicated region
      $region85: #{transformer_forward.2} parent=79 // pred_check
        %p1636 = pneg %p1635
      $region86: #{transformer_forward.2} parent=79 // pred_check_branch
        %1638 = sbr.rel (%p1636) target = $region88
      $region87: #{transformer_forward.2} parent=79 // pred_region
        %v1639 = vld [vmem:[%s13] sm:$0x1]
        %v1640 = vld [vmem:[%s14] sm:$0x1]
        %v1641 = vsel %vm727, %v1633, 0.0
        %1642 = vadd.xlane.f32.xlu0 %v1641
        %v1643 = vpop.xlane.xlu0 %1642
        %v1644 = vmul.f32 %v1643, %v1427
        %v1645 = vsub.f32 %v1633, %v1644
        %v1646 = vmul.f32 %v1645, %v1645
        %v1647 = vsel %vm727, %v1646, 0.0
        %1648 = vadd.xlane.f32.xlu0 %v1647
        %v1649 = vpop.xlane.xlu0 %1648
        %v1650 = vmul.f32 %v1649, %v1427
        %v1651 = vadd.f32 %v1650, 1e-05
        %v1652 = vrsqrt.pop %v1651
        %v1653 = vmul.f32 %v1645, %v1652
        %v1655 = vlaneseq
        %v1656 = vshrl.u32 %v1655, 7
        %v1657 = vsub.s32 0, %v1656
        %v1658 = vrot.slane %v1639, %v1657
        %v1660 = vmul.f32 %v1653, %v1658
        %v1662 = vlaneseq
        %v1663 = vshrl.u32 %v1662, 7
        %v1664 = vsub.s32 0, %v1663
        %v1665 = vrot.slane %v1640, %v1664
        %v1667 = vadd.f32 %v1660, %v1665
        %1668 = vst.msk [vmem:[%s693] sm:$0xff] %vm727, %v1667
      $region88: #{transformer_forward.2} parent=79 // pred_fallthru
        _
      %p1669 = scmp.lt.s32.totalorder %s30, 1
      %s1670 = scalar_select %p1669, %s30, 1
      %s1671 = smul.addr %s1670, 8
      %s1672 = scalar_lea.vmem %s15, %s1671
      // Predicated region
      $region89: #{transformer_forward.2} parent=79 // pred_check
        %p1673 = pneg %p436
      $region90: #{transformer_forward.2} parent=79 // pred_check_branch
        %1675 = sbr.rel (%p1673) target = $region92
      $region91: #{transformer_forward.2} parent=79 // pred_region
        _
      $region92: #{transformer_forward.2} parent=79 // pred_fallthru
        _
    $region80: #{transformer_forward.2} parent=5 // pred_fallthru
      _
    %p1676 = scmp.le.s32.totalorder 2, %s21
    // Predicated region
    $region93: #{transformer_forward.2} parent=5 // pred_check
      %p1677 = pneg %p1676
    $region94: #{transformer_forward.2} parent=5 // pred_check_branch
      %1679 = sbr.rel (%p1677) target = $region96
    $region95: #{transformer_forward.2} parent=5 // pred_region
      %s1680 = ssub.s32 %s21, 2
      // Predicated region
      $region97: #{transformer_forward.2} parent=95 // pred_check
        %p1681 = pneg %p442
      $region98: #{transformer_forward.2} parent=95 // pred_check_branch
        %1683 = sbr.rel (%p1681) target = $region100
      $region99: #{transformer_forward.2} parent=95 // pred_region
        %p1684 = scmp.lt.s32.totalorder %s32, 1
        %s1685 = scalar_select %p1684, %s32, 1
        %s1686 = smul.addr %s1685, 8
        %s1687 = scalar_lea.vmem %s15, %s1686
      $region100: #{transformer_forward.2} parent=95 // pred_fallthru
        _
    $region96: #{transformer_forward.2} parent=5 // pred_fallthru
      _
  $region6: #{transformer_forward.2} parent=0 // loop_footer
    %s25 = sadd.s32 1, %s21
  $region7: #{transformer_forward.2} parent=0 // loop_footer_branch
    %20 = sbr.rel target = $region3
  $region8: #{transformer_forward.2} parent=0 // loop_exit
    _

// kernel: transformer_forward.3
$region0: #{transformer_forward.3}
  #allocation0 [shape = 'u32[]', space=smem, size = 0x4, offset = 0x4, fixed_abs, tag = 'smem constant byte address 0x4 - core index']
  #allocation1 [shape = 'u32[144,128]{1,0:T(1,128)}', space=vmem, size = 0x12000, scoped, tag = 'internal scratch']
  #allocation2 [shape = 'f32[6,32]{1,0:T(8,128)}', space=vmem, size = 0x1000, scoped, tag = 'scratch operand']
  %s0 = inlined_call_operand.vmem [shape: f32[2,6,32], index: 0, kind: input, shape index: {}]
  %s1 = inlined_call_operand.vmem [shape: f32[2,8,32], index: 1, kind: input, shape index: {}]
  %s2 = inlined_call_operand.vmem [shape: bf16[2,32,96], index: 2, kind: input, shape index: {}]
  %s3 = inlined_call_operand.vmem [shape: f32[2,1,96], index: 3, kind: input, shape index: {}]
  %s4 = inlined_call_operand.vmem [shape: bf16[2,32,32], index: 4, kind: input, shape index: {}]
  %s5 = inlined_call_operand.vmem [shape: f32[2,1,32], index: 5, kind: input, shape index: {}]
  %s6 = inlined_call_operand.vmem [shape: f32[2,1,32], index: 6, kind: input, shape index: {}]
  %s7 = inlined_call_operand.vmem [shape: f32[2,1,32], index: 7, kind: input, shape index: {}]
  %s8 = inlined_call_operand.vmem [shape: bf16[2,32,32], index: 8, kind: input, shape index: {}]
  %s9 = inlined_call_operand.vmem [shape: f32[2,1,32], index: 9, kind: input, shape index: {}]
  %s10 = inlined_call_operand.vmem [shape: bf16[2,32,64], index: 10, kind: input, shape index: {}]
  %s11 = inlined_call_operand.vmem [shape: f32[2,1,64], index: 11, kind: input, shape index: {}]
  %s12 = inlined_call_operand.vmem [shape: bf16[2,32,32], index: 12, kind: input, shape index: {}]
  %s13 = inlined_call_operand.vmem [shape: f32[2,1,32], index: 13, kind: input, shape index: {}]
  %s14 = inlined_call_operand.vmem [shape: f32[2,1,32], index: 14, kind: input, shape index: {}]
  %s15 = inlined_call_operand.vmem [shape: f32[2,1,32], index: 15, kind: input, shape index: {}]
  %s16 = inlined_call_operand.vmem [shape: bf16[2,32,64], index: 16, kind: input, shape index: {}]
  %s17 = inlined_call_operand.vmem [shape: f32[2,1,64], index: 17, kind: input, shape index: {}]
  %s18 = inlined_call_operand.vmem [shape: bf16[2,64,32], index: 18, kind: input, shape index: {}]
  %s19 = inlined_call_operand.vmem [shape: f32[2,1,32], index: 19, kind: input, shape index: {}]
  %s20 = inlined_call_operand.vmem [shape: f32[2,1,32], index: 20, kind: input, shape index: {}]
  %s21 = inlined_call_operand.vmem [shape: f32[2,1,32], index: 21, kind: input, shape index: {}]
  %s22 = inlined_call_operand.vmem [shape: f32[1,32], index: 22, kind: input, shape index: {}]
  %s23 = inlined_call_operand.vmem [shape: f32[1,32], index: 23, kind: input, shape index: {}]
  %s24 = inlined_call_operand.vmem [shape: bf16[32,128], index: 24, kind: input, shape index: {}]
  %s25 = inlined_call_operand.vmem [shape: f32[1,128], index: 25, kind: input, shape index: {}]
  %s26 = inlined_call_operand.vmem [shape: f32[2,6,128], index: 26, kind: output, shape index: {}]
  %s27 = sld [smem:[#allocation0]]
  $region145: #{transformer_forward.3} parent=0
    _
  %s29 = ssub.s32 1, %s27
  %s30 = scalar_select 0, %s29, %s27
  loop: start=0, step=1, limit=6
  $region2: #{transformer_forward.3} parent=0 // loop_pre_header
    _
  $region3: #{transformer_forward.3} parent=0 // loop_header
    %s32 = sphi 0, %s36
    %p33 = scmp.ge.s32.totalorder %s32, 6
    %s39 = sphi 0, %s51
    %s40 = sphi 0, %s47
    %s41 = sphi 0, %s39
    %s42 = sphi 0, %s40
    %s43 = sphi 0, %s41
    %s44 = sphi 0, %s42
    %s54 = sphi 0, %s56
    %s57 = sphi 0, %s54
    %s58 = sphi 0, %s57
    %s74 = sphi 0, %s58
    %s80 = sphi 0, %s82
    %s83 = sphi 0, %s80
    %s84 = sphi 0, %s83
    %s100 = sphi 0, %s84
    %s106 = sphi 0, %s108
    %s109 = sphi 0, %s106
    %s110 = sphi 0, %s109
    %s126 = sphi 0, %s110
    %s132 = sphi 0, %s134
    %s135 = sphi 0, %s132
    %s136 = sphi 0, %s135
    %s152 = sphi 0, %s136
    %s158 = sphi 0, %s160
    %s161 = sphi 0, %s158
    %s162 = sphi 0, %s161
    %s178 = sphi 0, %s162
    %s184 = sphi 0, %s186
    %s187 = sphi 0, %s184
    %s188 = sphi 0, %s187
    %s204 = sphi 0, %s188
    %s210 = sphi 0, %s212
    %s213 = sphi 0, %s210
    %s214 = sphi 0, %s213
    %s230 = sphi 0, %s214
    %s236 = sphi 0, %s238
    %s239 = sphi 0, %s236
    %s240 = sphi 0, %s239
    %s256 = sphi 0, %s240
    %s262 = sphi 0, %s264
    %s265 = sphi 0, %s262
    %s266 = sphi 0, %s265
    %s282 = sphi 0, %s266
    %s288 = sphi 0, %s290
    %s291 = sphi 0, %s288
    %s292 = sphi 0, %s291
    %s308 = sphi 0, %s292
    %s314 = sphi 0, %s316
    %s317 = sphi 0, %s314
    %s318 = sphi 0, %s317
    %s334 = sphi 0, %s318
    %s340 = sphi 0, %s342
    %s343 = sphi 0, %s340
    %s344 = sphi 0, %s343
    %s360 = sphi 0, %s344
    %s366 = sphi 0, %s368
    %s369 = sphi 0, %s366
    %s370 = sphi 0, %s369
    %s386 = sphi 0, %s370
    %s392 = sphi 0, %s394
    %s395 = sphi 0, %s392
    %s396 = sphi 0, %s395
    %s412 = sphi 0, %s396
    %s418 = sphi 0, %s420
    %s421 = sphi 0, %s418
    %s422 = sphi 0, %s421
    %s438 = sphi 0, %s422
    %s444 = sphi 0, %s446
    %s447 = sphi 0, %s444
    %s448 = sphi 0, %s447
    %s464 = sphi 0, %s448
    %s470 = sphi 0, %s472
    %s473 = sphi 0, %s470
    %s474 = sphi 0, %s473
    %s490 = sphi 0, %s474
    %s496 = sphi 0, %s498
    %s499 = sphi 0, %s496
    %s500 = sphi 0, %s499
    %s516 = sphi 0, %s500
    %s522 = sphi 0, %s524
    %s525 = sphi 0, %s522
    %s526 = sphi 0, %s525
    %s542 = sphi 0, %s526
    %s548 = sphi 0, %s550
    %s551 = sphi 0, %s548
    %s552 = sphi 0, %s551
    %s568 = sphi 0, %s552
    %s574 = sphi 0, %s576
    %s577 = sphi 0, %s574
    %s578 = sphi 0, %s577
    %s594 = sphi 0, %s578
    %s600 = sphi 0, %s602
    %s603 = sphi 0, %s600
    %s604 = sphi 0, %s603
    %s620 = sphi 0, %s604
    %s624 = sphi 0, %s624
    %s626 = sphi 0, %s624
    %s627 = sphi 0, %s626
    %s641 = sphi 0, %s627
    %s645 = sphi 0, %s645
    %s647 = sphi 0, %s645
    %s648 = sphi 0, %s647
    %s662 = sphi 0, %s648
    %s666 = sphi 0, %s666
    %s668 = sphi 0, %s666
    %s669 = sphi 0, %s668
    %s683 = sphi 0, %s669
    %s687 = sphi 0, %s687
    %s689 = sphi 0, %s687
    %s690 = sphi 0, %s689
    %s704 = sphi 0, %s690
    %s710 = sphi 0, %s712
    %s713 = sphi 0, %s710
    %s714 = sphi 0, %s713
    %s730 = sphi 0, %s714
  $region4: #{transformer_forward.3} parent=0 // loop_header_branch
    %35 = sbr.rel (%p33) target = $region8
  $region5: #{transformer_forward.3} parent=0 // loop_body
    %s37 = ssub.s32 %s32, 1
    %s38 = ssub.s32 %s32, 2
    %s45 = sadd.s32 1, %s40
    %p46 = scmp.ge.s32.totalorder %s45, 2
    %s47 = scalar_select %p46, 0, %s45
    %s48 = sadd.s32 1, %s39
    %s49 = scalar_select %p46, %s48, %s39
    %p50 = scmp.ge.s32.totalorder %s49, 2
    %s51 = scalar_select %p50, 0, %s49
    %s52 = ssub.s32 %s39, %s51
    %p53 = scmp.eq.s32.totalorder %s52, 0
    %s55 = sadd.s32 %s54, 1
    %s56 = scalar_select %p53, %s54, %s55
    %p59 = pneg %p53
    %p60 = scmp.eq.s32.totalorder %s32, 3
    %p61 = por %p59, %p60
    %p62 = scmp.ne.s32.totalorder %s54, %s57
    %p63 = scmp.eq.s32.totalorder %s32, 0
    %p64 = por %p62, %p63
    %p65 = scmp.ne.s32.totalorder %s54, %s57
    %p66 = scmp.eq.s32.totalorder %s37, 3
    %p67 = por %p65, %p66
    %p68 = scmp.ne.s32.totalorder %s57, %s58
    %p69 = scmp.eq.s32.totalorder %s37, 0
    %p70 = por %p68, %p69
    %p71 = scmp.ne.s32.totalorder %s57, %s58
    %p72 = scmp.eq.s32.totalorder %s38, 3
    %p73 = por %p71, %p72
    %p75 = scmp.ne.s32.totalorder %s58, %s74
    %p76 = scmp.eq.s32.totalorder %s38, 0
    %p77 = por %p75, %p76
    %s78 = ssub.s32 %s39, %s51
    %p79 = scmp.eq.s32.totalorder %s78, 0
    %s81 = sadd.s32 %s80, 1
    %s82 = scalar_select %p79, %s80, %s81
    %p85 = pneg %p79
    %p86 = scmp.eq.s32.totalorder %s32, 3
    %p87 = por %p85, %p86
    %p88 = scmp.ne.s32.totalorder %s80, %s83
    %p89 = scmp.eq.s32.totalorder %s32, 0
    %p90 = por %p88, %p89
    %p91 = scmp.ne.s32.totalorder %s80, %s83
    %p92 = scmp.eq.s32.totalorder %s37, 3
    %p93 = por %p91, %p92
    %p94 = scmp.ne.s32.totalorder %s83, %s84
    %p95 = scmp.eq.s32.totalorder %s37, 0
    %p96 = por %p94, %p95
    %p97 = scmp.ne.s32.totalorder %s83, %s84
    %p98 = scmp.eq.s32.totalorder %s38, 3
    %p99 = por %p97, %p98
    %p101 = scmp.ne.s32.totalorder %s84, %s100
    %p102 = scmp.eq.s32.totalorder %s38, 0
    %p103 = por %p101, %p102
    %s104 = ssub.s32 %s40, %s47
    %p105 = scmp.eq.s32.totalorder %s104, 0
    %s107 = sadd.s32 %s106, 1
    %s108 = scalar_select %p105, %s106, %s107
    %p111 = pneg %p105
    %p112 = scmp.eq.s32.totalorder %s32, 3
    %p113 = por %p111, %p112
    %p114 = scmp.ne.s32.totalorder %s106, %s109
    %p115 = scmp.eq.s32.totalorder %s32, 0
    %p116 = por %p114, %p115
    %p117 = scmp.ne.s32.totalorder %s106, %s109
    %p118 = scmp.eq.s32.totalorder %s37, 3
    %p119 = por %p117, %p118
    %p120 = scmp.ne.s32.totalorder %s109, %s110
    %p121 = scmp.eq.s32.totalorder %s37, 0
    %p122 = por %p120, %p121
    %p123 = scmp.ne.s32.totalorder %s109, %s110
    %p124 = scmp.eq.s32.totalorder %s38, 3
    %p125 = por %p123, %p124
    %p127 = scmp.ne.s32.totalorder %s110, %s126
    %p128 = scmp.eq.s32.totalorder %s38, 0
    %p129 = por %p127, %p128
    %s130 = ssub.s32 %s40, %s47
    %p131 = scmp.eq.s32.totalorder %s130, 0
    %s133 = sadd.s32 %s132, 1
    %s134 = scalar_select %p131, %s132, %s133
    %p137 = pneg %p131
    %p138 = scmp.eq.s32.totalorder %s32, 3
    %p139 = por %p137, %p138
    %p140 = scmp.ne.s32.totalorder %s132, %s135
    %p141 = scmp.eq.s32.totalorder %s32, 0
    %p142 = por %p140, %p141
    %p143 = scmp.ne.s32.totalorder %s132, %s135
    %p144 = scmp.eq.s32.totalorder %s37, 3
    %p145 = por %p143, %p144
    %p146 = scmp.ne.s32.totalorder %s135, %s136
    %p147 = scmp.eq.s32.totalorder %s37, 0
    %p148 = por %p146, %p147
    %p149 = scmp.ne.s32.totalorder %s135, %s136
    %p150 = scmp.eq.s32.totalorder %s38, 3
    %p151 = por %p149, %p150
    %p153 = scmp.ne.s32.totalorder %s136, %s152
    %p154 = scmp.eq.s32.totalorder %s38, 0
    %p155 = por %p153, %p154
    %s156 = ssub.s32 %s40, %s47
    %p157 = scmp.eq.s32.totalorder %s156, 0
    %s159 = sadd.s32 %s158, 1
    %s160 = scalar_select %p157, %s158, %s159
    %p163 = pneg %p157
    %p164 = scmp.eq.s32.totalorder %s32, 3
    %p165 = por %p163, %p164
    %p166 = scmp.ne.s32.totalorder %s158, %s161
    %p167 = scmp.eq.s32.totalorder %s32, 0
    %p168 = por %p166, %p167
    %p169 = scmp.ne.s32.totalorder %s158, %s161
    %p170 = scmp.eq.s32.totalorder %s37, 3
    %p171 = por %p169, %p170
    %p172 = scmp.ne.s32.totalorder %s161, %s162
    %p173 = scmp.eq.s32.totalorder %s37, 0
    %p174 = por %p172, %p173
    %p175 = scmp.ne.s32.totalorder %s161, %s162
    %p176 = scmp.eq.s32.totalorder %s38, 3
    %p177 = por %p175, %p176
    %p179 = scmp.ne.s32.totalorder %s162, %s178
    %p180 = scmp.eq.s32.totalorder %s38, 0
    %p181 = por %p179, %p180
    %s182 = ssub.s32 %s40, %s47
    %p183 = scmp.eq.s32.totalorder %s182, 0
    %s185 = sadd.s32 %s184, 1
    %s186 = scalar_select %p183, %s184, %s185
    %p189 = pneg %p183
    %p190 = scmp.eq.s32.totalorder %s32, 3
    %p191 = por %p189, %p190
    %p192 = scmp.ne.s32.totalorder %s184, %s187
    %p193 = scmp.eq.s32.totalorder %s32, 0
    %p194 = por %p192, %p193
    %p195 = scmp.ne.s32.totalorder %s184, %s187
    %p196 = scmp.eq.s32.totalorder %s37, 3
    %p197 = por %p195, %p196
    %p198 = scmp.ne.s32.totalorder %s187, %s188
    %p199 = scmp.eq.s32.totalorder %s37, 0
    %p200 = por %p198, %p199
    %p201 = scmp.ne.s32.totalorder %s187, %s188
    %p202 = scmp.eq.s32.totalorder %s38, 3
    %p203 = por %p201, %p202
    %p205 = scmp.ne.s32.totalorder %s188, %s204
    %p206 = scmp.eq.s32.totalorder %s38, 0
    %p207 = por %p205, %p206
    %s208 = ssub.s32 %s40, %s47
    %p209 = scmp.eq.s32.totalorder %s208, 0
    %s211 = sadd.s32 %s210, 1
    %s212 = scalar_select %p209, %s210, %s211
    %p215 = pneg %p209
    %p216 = scmp.eq.s32.totalorder %s32, 3
    %p217 = por %p215, %p216
    %p218 = scmp.ne.s32.totalorder %s210, %s213
    %p219 = scmp.eq.s32.totalorder %s32, 0
    %p220 = por %p218, %p219
    %p221 = scmp.ne.s32.totalorder %s210, %s213
    %p222 = scmp.eq.s32.totalorder %s37, 3
    %p223 = por %p221, %p222
    %p224 = scmp.ne.s32.totalorder %s213, %s214
    %p225 = scmp.eq.s32.totalorder %s37, 0
    %p226 = por %p224, %p225
    %p227 = scmp.ne.s32.totalorder %s213, %s214
    %p228 = scmp.eq.s32.totalorder %s38, 3
    %p229 = por %p227, %p228
    %p231 = scmp.ne.s32.totalorder %s214, %s230
    %p232 = scmp.eq.s32.totalorder %s38, 0
    %p233 = por %p231, %p232
    %s234 = ssub.s32 %s40, %s47
    %p235 = scmp.eq.s32.totalorder %s234, 0
    %s237 = sadd.s32 %s236, 1
    %s238 = scalar_select %p235, %s236, %s237
    %p241 = pneg %p235
    %p242 = scmp.eq.s32.totalorder %s32, 3
    %p243 = por %p241, %p242
    %p244 = scmp.ne.s32.totalorder %s236, %s239
    %p245 = scmp.eq.s32.totalorder %s32, 0
    %p246 = por %p244, %p245
    %p247 = scmp.ne.s32.totalorder %s236, %s239
    %p248 = scmp.eq.s32.totalorder %s37, 3
    %p249 = por %p247, %p248
    %p250 = scmp.ne.s32.totalorder %s239, %s240
    %p251 = scmp.eq.s32.totalorder %s37, 0
    %p252 = por %p250, %p251
    %p253 = scmp.ne.s32.totalorder %s239, %s240
    %p254 = scmp.eq.s32.totalorder %s38, 3
    %p255 = por %p253, %p254
    %p257 = scmp.ne.s32.totalorder %s240, %s256
    %p258 = scmp.eq.s32.totalorder %s38, 0
    %p259 = por %p257, %p258
    %s260 = ssub.s32 %s40, %s47
    %p261 = scmp.eq.s32.totalorder %s260, 0
    %s263 = sadd.s32 %s262, 1
    %s264 = scalar_select %p261, %s262, %s263
    %p267 = pneg %p261
    %p268 = scmp.eq.s32.totalorder %s32, 3
    %p269 = por %p267, %p268
    %p270 = scmp.ne.s32.totalorder %s262, %s265
    %p271 = scmp.eq.s32.totalorder %s32, 0
    %p272 = por %p270, %p271
    %p273 = scmp.ne.s32.totalorder %s262, %s265
    %p274 = scmp.eq.s32.totalorder %s37, 3
    %p275 = por %p273, %p274
    %p276 = scmp.ne.s32.totalorder %s265, %s266
    %p277 = scmp.eq.s32.totalorder %s37, 0
    %p278 = por %p276, %p277
    %p279 = scmp.ne.s32.totalorder %s265, %s266
    %p280 = scmp.eq.s32.totalorder %s38, 3
    %p281 = por %p279, %p280
    %p283 = scmp.ne.s32.totalorder %s266, %s282
    %p284 = scmp.eq.s32.totalorder %s38, 0
    %p285 = por %p283, %p284
    %s286 = ssub.s32 %s40, %s47
    %p287 = scmp.eq.s32.totalorder %s286, 0
    %s289 = sadd.s32 %s288, 1
    %s290 = scalar_select %p287, %s288, %s289
    %p293 = pneg %p287
    %p294 = scmp.eq.s32.totalorder %s32, 3
    %p295 = por %p293, %p294
    %p296 = scmp.ne.s32.totalorder %s288, %s291
    %p297 = scmp.eq.s32.totalorder %s32, 0
    %p298 = por %p296, %p297
    %p299 = scmp.ne.s32.totalorder %s288, %s291
    %p300 = scmp.eq.s32.totalorder %s37, 3
    %p301 = por %p299, %p300
    %p302 = scmp.ne.s32.totalorder %s291, %s292
    %p303 = scmp.eq.s32.totalorder %s37, 0
    %p304 = por %p302, %p303
    %p305 = scmp.ne.s32.totalorder %s291, %s292
    %p306 = scmp.eq.s32.totalorder %s38, 3
    %p307 = por %p305, %p306
    %p309 = scmp.ne.s32.totalorder %s292, %s308
    %p310 = scmp.eq.s32.totalorder %s38, 0
    %p311 = por %p309, %p310
    %s312 = ssub.s32 %s40, %s47
    %p313 = scmp.eq.s32.totalorder %s312, 0
    %s315 = sadd.s32 %s314, 1
    %s316 = scalar_select %p313, %s314, %s315
    %p319 = pneg %p313
    %p320 = scmp.eq.s32.totalorder %s32, 3
    %p321 = por %p319, %p320
    %p322 = scmp.ne.s32.totalorder %s314, %s317
    %p323 = scmp.eq.s32.totalorder %s32, 0
    %p324 = por %p322, %p323
    %p325 = scmp.ne.s32.totalorder %s314, %s317
    %p326 = scmp.eq.s32.totalorder %s37, 3
    %p327 = por %p325, %p326
    %p328 = scmp.ne.s32.totalorder %s317, %s318
    %p329 = scmp.eq.s32.totalorder %s37, 0
    %p330 = por %p328, %p329
    %p331 = scmp.ne.s32.totalorder %s317, %s318
    %p332 = scmp.eq.s32.totalorder %s38, 3
    %p333 = por %p331, %p332
    %p335 = scmp.ne.s32.totalorder %s318, %s334
    %p336 = scmp.eq.s32.totalorder %s38, 0
    %p337 = por %p335, %p336
    %s338 = ssub.s32 %s40, %s47
    %p339 = scmp.eq.s32.totalorder %s338, 0
    %s341 = sadd.s32 %s340, 1
    %s342 = scalar_select %p339, %s340, %s341
    %p345 = pneg %p339
    %p346 = scmp.eq.s32.totalorder %s32, 3
    %p347 = por %p345, %p346
    %p348 = scmp.ne.s32.totalorder %s340, %s343
    %p349 = scmp.eq.s32.totalorder %s32, 0
    %p350 = por %p348, %p349
    %p351 = scmp.ne.s32.totalorder %s340, %s343
    %p352 = scmp.eq.s32.totalorder %s37, 3
    %p353 = por %p351, %p352
    %p354 = scmp.ne.s32.totalorder %s343, %s344
    %p355 = scmp.eq.s32.totalorder %s37, 0
    %p356 = por %p354, %p355
    %p357 = scmp.ne.s32.totalorder %s343, %s344
    %p358 = scmp.eq.s32.totalorder %s38, 3
    %p359 = por %p357, %p358
    %p361 = scmp.ne.s32.totalorder %s344, %s360
    %p362 = scmp.eq.s32.totalorder %s38, 0
    %p363 = por %p361, %p362
    %s364 = ssub.s32 %s40, %s47
    %p365 = scmp.eq.s32.totalorder %s364, 0
    %s367 = sadd.s32 %s366, 1
    %s368 = scalar_select %p365, %s366, %s367
    %p371 = pneg %p365
    %p372 = scmp.eq.s32.totalorder %s32, 3
    %p373 = por %p371, %p372
    %p374 = scmp.ne.s32.totalorder %s366, %s369
    %p375 = scmp.eq.s32.totalorder %s32, 0
    %p376 = por %p374, %p375
    %p377 = scmp.ne.s32.totalorder %s366, %s369
    %p378 = scmp.eq.s32.totalorder %s37, 3
    %p379 = por %p377, %p378
    %p380 = scmp.ne.s32.totalorder %s369, %s370
    %p381 = scmp.eq.s32.totalorder %s37, 0
    %p382 = por %p380, %p381
    %p383 = scmp.ne.s32.totalorder %s369, %s370
    %p384 = scmp.eq.s32.totalorder %s38, 3
    %p385 = por %p383, %p384
    %p387 = scmp.ne.s32.totalorder %s370, %s386
    %p388 = scmp.eq.s32.totalorder %s38, 0
    %p389 = por %p387, %p388
    %s390 = ssub.s32 %s40, %s47
    %p391 = scmp.eq.s32.totalorder %s390, 0
    %s393 = sadd.s32 %s392, 1
    %s394 = scalar_select %p391, %s392, %s393
    %p397 = pneg %p391
    %p398 = scmp.eq.s32.totalorder %s32, 3
    %p399 = por %p397, %p398
    %p400 = scmp.ne.s32.totalorder %s392, %s395
    %p401 = scmp.eq.s32.totalorder %s32, 0
    %p402 = por %p400, %p401
    %p403 = scmp.ne.s32.totalorder %s392, %s395
    %p404 = scmp.eq.s32.totalorder %s37, 3
    %p405 = por %p403, %p404
    %p406 = scmp.ne.s32.totalorder %s395, %s396
    %p407 = scmp.eq.s32.totalorder %s37, 0
    %p408 = por %p406, %p407
    %p409 = scmp.ne.s32.totalorder %s395, %s396
    %p410 = scmp.eq.s32.totalorder %s38, 3
    %p411 = por %p409, %p410
    %p413 = scmp.ne.s32.totalorder %s396, %s412
    %p414 = scmp.eq.s32.totalorder %s38, 0
    %p415 = por %p413, %p414
    %s416 = ssub.s32 %s40, %s47
    %p417 = scmp.eq.s32.totalorder %s416, 0
    %s419 = sadd.s32 %s418, 1
    %s420 = scalar_select %p417, %s418, %s419
    %p423 = pneg %p417
    %p424 = scmp.eq.s32.totalorder %s32, 3
    %p425 = por %p423, %p424
    %p426 = scmp.ne.s32.totalorder %s418, %s421
    %p427 = scmp.eq.s32.totalorder %s32, 0
    %p428 = por %p426, %p427
    %p429 = scmp.ne.s32.totalorder %s418, %s421
    %p430 = scmp.eq.s32.totalorder %s37, 3
    %p431 = por %p429, %p430
    %p432 = scmp.ne.s32.totalorder %s421, %s422
    %p433 = scmp.eq.s32.totalorder %s37, 0
    %p434 = por %p432, %p433
    %p435 = scmp.ne.s32.totalorder %s421, %s422
    %p436 = scmp.eq.s32.totalorder %s38, 3
    %p437 = por %p435, %p436
    %p439 = scmp.ne.s32.totalorder %s422, %s438
    %p440 = scmp.eq.s32.totalorder %s38, 0
    %p441 = por %p439, %p440
    %s442 = ssub.s32 %s40, %s47
    %p443 = scmp.eq.s32.totalorder %s442, 0
    %s445 = sadd.s32 %s444, 1
    %s446 = scalar_select %p443, %s444, %s445
    %p449 = pneg %p443
    %p450 = scmp.eq.s32.totalorder %s32, 3
    %p451 = por %p449, %p450
    %p452 = scmp.ne.s32.totalorder %s444, %s447
    %p453 = scmp.eq.s32.totalorder %s32, 0
    %p454 = por %p452, %p453
    %p455 = scmp.ne.s32.totalorder %s444, %s447
    %p456 = scmp.eq.s32.totalorder %s37, 3
    %p457 = por %p455, %p456
    %p458 = scmp.ne.s32.totalorder %s447, %s448
    %p459 = scmp.eq.s32.totalorder %s37, 0
    %p460 = por %p458, %p459
    %p461 = scmp.ne.s32.totalorder %s447, %s448
    %p462 = scmp.eq.s32.totalorder %s38, 3
    %p463 = por %p461, %p462
    %p465 = scmp.ne.s32.totalorder %s448, %s464
    %p466 = scmp.eq.s32.totalorder %s38, 0
    %p467 = por %p465, %p466
    %s468 = ssub.s32 %s40, %s47
    %p469 = scmp.eq.s32.totalorder %s468, 0
    %s471 = sadd.s32 %s470, 1
    %s472 = scalar_select %p469, %s470, %s471
    %p475 = pneg %p469
    %p476 = scmp.eq.s32.totalorder %s32, 3
    %p477 = por %p475, %p476
    %p478 = scmp.ne.s32.totalorder %s470, %s473
    %p479 = scmp.eq.s32.totalorder %s32, 0
    %p480 = por %p478, %p479
    %p481 = scmp.ne.s32.totalorder %s470, %s473
    %p482 = scmp.eq.s32.totalorder %s37, 3
    %p483 = por %p481, %p482
    %p484 = scmp.ne.s32.totalorder %s473, %s474
    %p485 = scmp.eq.s32.totalorder %s37, 0
    %p486 = por %p484, %p485
    %p487 = scmp.ne.s32.totalorder %s473, %s474
    %p488 = scmp.eq.s32.totalorder %s38, 3
    %p489 = por %p487, %p488
    %p491 = scmp.ne.s32.totalorder %s474, %s490
    %p492 = scmp.eq.s32.totalorder %s38, 0
    %p493 = por %p491, %p492
    %s494 = ssub.s32 %s40, %s47
    %p495 = scmp.eq.s32.totalorder %s494, 0
    %s497 = sadd.s32 %s496, 1
    %s498 = scalar_select %p495, %s496, %s497
    %p501 = pneg %p495
    %p502 = scmp.eq.s32.totalorder %s32, 3
    %p503 = por %p501, %p502
    %p504 = scmp.ne.s32.totalorder %s496, %s499
    %p505 = scmp.eq.s32.totalorder %s32, 0
    %p506 = por %p504, %p505
    %p507 = scmp.ne.s32.totalorder %s496, %s499
    %p508 = scmp.eq.s32.totalorder %s37, 3
    %p509 = por %p507, %p508
    %p510 = scmp.ne.s32.totalorder %s499, %s500
    %p511 = scmp.eq.s32.totalorder %s37, 0
    %p512 = por %p510, %p511
    %p513 = scmp.ne.s32.totalorder %s499, %s500
    %p514 = scmp.eq.s32.totalorder %s38, 3
    %p515 = por %p513, %p514
    %p517 = scmp.ne.s32.totalorder %s500, %s516
    %p518 = scmp.eq.s32.totalorder %s38, 0
    %p519 = por %p517, %p518
    %s520 = ssub.s32 %s40, %s47
    %p521 = scmp.eq.s32.totalorder %s520, 0
    %s523 = sadd.s32 %s522, 1
    %s524 = scalar_select %p521, %s522, %s523
    %p527 = pneg %p521
    %p528 = scmp.eq.s32.totalorder %s32, 3
    %p529 = por %p527, %p528
    %p530 = scmp.ne.s32.totalorder %s522, %s525
    %p531 = scmp.eq.s32.totalorder %s32, 0
    %p532 = por %p530, %p531
    %p533 = scmp.ne.s32.totalorder %s522, %s525
    %p534 = scmp.eq.s32.totalorder %s37, 3
    %p535 = por %p533, %p534
    %p536 = scmp.ne.s32.totalorder %s525, %s526
    %p537 = scmp.eq.s32.totalorder %s37, 0
    %p538 = por %p536, %p537
    %p539 = scmp.ne.s32.totalorder %s525, %s526
    %p540 = scmp.eq.s32.totalorder %s38, 3
    %p541 = por %p539, %p540
    %p543 = scmp.ne.s32.totalorder %s526, %s542
    %p544 = scmp.eq.s32.totalorder %s38, 0
    %p545 = por %p543, %p544
    %s546 = ssub.s32 %s40, %s47
    %p547 = scmp.eq.s32.totalorder %s546, 0
    %s549 = sadd.s32 %s548, 1
    %s550 = scalar_select %p547, %s548, %s549
    %p553 = pneg %p547
    %p554 = scmp.eq.s32.totalorder %s32, 3
    %p555 = por %p553, %p554
    %p556 = scmp.ne.s32.totalorder %s548, %s551
    %p557 = scmp.eq.s32.totalorder %s32, 0
    %p558 = por %p556, %p557
    %p559 = scmp.ne.s32.totalorder %s548, %s551
    %p560 = scmp.eq.s32.totalorder %s37, 3
    %p561 = por %p559, %p560
    %p562 = scmp.ne.s32.totalorder %s551, %s552
    %p563 = scmp.eq.s32.totalorder %s37, 0
    %p564 = por %p562, %p563
    %p565 = scmp.ne.s32.totalorder %s551, %s552
    %p566 = scmp.eq.s32.totalorder %s38, 3
    %p567 = por %p565, %p566
    %p569 = scmp.ne.s32.totalorder %s552, %s568
    %p570 = scmp.eq.s32.totalorder %s38, 0
    %p571 = por %p569, %p570
    %s572 = ssub.s32 %s40, %s47
    %p573 = scmp.eq.s32.totalorder %s572, 0
    %s575 = sadd.s32 %s574, 1
    %s576 = scalar_select %p573, %s574, %s575
    %p579 = pneg %p573
    %p580 = scmp.eq.s32.totalorder %s32, 3
    %p581 = por %p579, %p580
    %p582 = scmp.ne.s32.totalorder %s574, %s577
    %p583 = scmp.eq.s32.totalorder %s32, 0
    %p584 = por %p582, %p583
    %p585 = scmp.ne.s32.totalorder %s574, %s577
    %p586 = scmp.eq.s32.totalorder %s37, 3
    %p587 = por %p585, %p586
    %p588 = scmp.ne.s32.totalorder %s577, %s578
    %p589 = scmp.eq.s32.totalorder %s37, 0
    %p590 = por %p588, %p589
    %p591 = scmp.ne.s32.totalorder %s577, %s578
    %p592 = scmp.eq.s32.totalorder %s38, 3
    %p593 = por %p591, %p592
    %p595 = scmp.ne.s32.totalorder %s578, %s594
    %p596 = scmp.eq.s32.totalorder %s38, 0
    %p597 = por %p595, %p596
    %s598 = ssub.s32 %s40, %s47
    %p599 = scmp.eq.s32.totalorder %s598, 0
    %s601 = sadd.s32 %s600, 1
    %s602 = scalar_select %p599, %s600, %s601
    %p605 = pneg %p599
    %p606 = scmp.eq.s32.totalorder %s32, 3
    %p607 = por %p605, %p606
    %p608 = scmp.ne.s32.totalorder %s600, %s603
    %p609 = scmp.eq.s32.totalorder %s32, 0
    %p610 = por %p608, %p609
    %p611 = scmp.ne.s32.totalorder %s600, %s603
    %p612 = scmp.eq.s32.totalorder %s37, 3
    %p613 = por %p611, %p612
    %p614 = scmp.ne.s32.totalorder %s603, %s604
    %p615 = scmp.eq.s32.totalorder %s37, 0
    %p616 = por %p614, %p615
    %p617 = scmp.ne.s32.totalorder %s603, %s604
    %p618 = scmp.eq.s32.totalorder %s38, 3
    %p619 = por %p617, %p618
    %p621 = scmp.ne.s32.totalorder %s604, %s620
    %p622 = scmp.eq.s32.totalorder %s38, 0
    %p623 = por %p621, %p622
    %s625 = sadd.s32 %s624, 1
    %p628 = scmp.eq.s32.totalorder %s32, 3
    %p629 = scmp.ne.s32.totalorder %s624, %s626
    %p630 = scmp.eq.s32.totalorder %s32, 0
    %p631 = por %p629, %p630
    %p632 = scmp.ne.s32.totalorder %s624, %s626
    %p633 = scmp.eq.s32.totalorder %s37, 3
    %p634 = por %p632, %p633
    %p635 = scmp.ne.s32.totalorder %s626, %s627
    %p636 = scmp.eq.s32.totalorder %s37, 0
    %p637 = por %p635, %p636
    %p638 = scmp.ne.s32.totalorder %s626, %s627
    %p639 = scmp.eq.s32.totalorder %s38, 3
    %p640 = por %p638, %p639
    %p642 = scmp.ne.s32.totalorder %s627, %s641
    %p643 = scmp.eq.s32.totalorder %s38, 0
    %p644 = por %p642, %p643
    %s646 = sadd.s32 %s645, 1
    %p649 = scmp.eq.s32.totalorder %s32, 3
    %p650 = scmp.ne.s32.totalorder %s645, %s647
    %p651 = scmp.eq.s32.totalorder %s32, 0
    %p652 = por %p650, %p651
    %p653 = scmp.ne.s32.totalorder %s645, %s647
    %p654 = scmp.eq.s32.totalorder %s37, 3
    %p655 = por %p653, %p654
    %p656 = scmp.ne.s32.totalorder %s647, %s648
    %p657 = scmp.eq.s32.totalorder %s37, 0
    %p658 = por %p656, %p657
    %p659 = scmp.ne.s32.totalorder %s647, %s648
    %p660 = scmp.eq.s32.totalorder %s38, 3
    %p661 = por %p659, %p660
    %p663 = scmp.ne.s32.totalorder %s648, %s662
    %p664 = scmp.eq.s32.totalorder %s38, 0
    %p665 = por %p663, %p664
    %s667 = sadd.s32 %s666, 1
    %p670 = scmp.eq.s32.totalorder %s32, 3
    %p671 = scmp.ne.s32.totalorder %s666, %s668
    %p672 = scmp.eq.s32.totalorder %s32, 0
    %p673 = por %p671, %p672
    %p674 = scmp.ne.s32.totalorder %s666, %s668
    %p675 = scmp.eq.s32.totalorder %s37, 3
    %p676 = por %p674, %p675
    %p677 = scmp.ne.s32.totalorder %s668, %s669
    %p678 = scmp.eq.s32.totalorder %s37, 0
    %p679 = por %p677, %p678
    %p680 = scmp.ne.s32.totalorder %s668, %s669
    %p681 = scmp.eq.s32.totalorder %s38, 3
    %p682 = por %p680, %p681
    %p684 = scmp.ne.s32.totalorder %s669, %s683
    %p685 = scmp.eq.s32.totalorder %s38, 0
    %p686 = por %p684, %p685
    %s688 = sadd.s32 %s687, 1
    %p691 = scmp.eq.s32.totalorder %s32, 3
    %p692 = scmp.ne.s32.totalorder %s687, %s689
    %p693 = scmp.eq.s32.totalorder %s32, 0
    %p694 = por %p692, %p693
    %p695 = scmp.ne.s32.totalorder %s687, %s689
    %p696 = scmp.eq.s32.totalorder %s37, 3
    %p697 = por %p695, %p696
    %p698 = scmp.ne.s32.totalorder %s689, %s690
    %p699 = scmp.eq.s32.totalorder %s37, 0
    %p700 = por %p698, %p699
    %p701 = scmp.ne.s32.totalorder %s689, %s690
    %p702 = scmp.eq.s32.totalorder %s38, 3
    %p703 = por %p701, %p702
    %p705 = scmp.ne.s32.totalorder %s690, %s704
    %p706 = scmp.eq.s32.totalorder %s38, 0
    %p707 = por %p705, %p706
    %s708 = ssub.s32 %s39, %s51
    %p709 = scmp.eq.s32.totalorder %s708, 0
    %s711 = sadd.s32 %s710, 1
    %s712 = scalar_select %p709, %s710, %s711
    %p715 = pneg %p709
    %p716 = scmp.eq.s32.totalorder %s32, 3
    %p717 = por %p715, %p716
    %p718 = scmp.ne.s32.totalorder %s710, %s713
    %p719 = scmp.eq.s32.totalorder %s32, 0
    %p720 = por %p718, %p719
    %p721 = scmp.ne.s32.totalorder %s710, %s713
    %p722 = scmp.eq.s32.totalorder %s37, 3
    %p723 = por %p721, %p722
    %p724 = scmp.ne.s32.totalorder %s713, %s714
    %p725 = scmp.eq.s32.totalorder %s37, 0
    %p726 = por %p724, %p725
    %p727 = scmp.ne.s32.totalorder %s713, %s714
    %p728 = scmp.eq.s32.totalorder %s38, 3
    %p729 = por %p727, %p728
    %p731 = scmp.ne.s32.totalorder %s714, %s730
    %p732 = scmp.eq.s32.totalorder %s38, 0
    %p733 = por %p731, %p732
    %p734 = scmp.le.s32.totalorder 1, %s32
    %p735 = scmp.lt.s32.totalorder %s32, 5
    %p736 = pnand %p734, %p735
    %p737 = pneg %p736
    // Predicated region
    $region9: #{transformer_forward.3} parent=5 // pred_check
      _
    $region10: #{transformer_forward.3} parent=5 // pred_check_branch
      %739 = sbr.rel (%p736) target = $region12
    $region11: #{transformer_forward.3} parent=5 // pred_region
      %s740 = ssub.s32 %s32, 1
      // Predicated region
      $region13: #{transformer_forward.3} parent=11 // pred_check
        %p741 = pneg %p637
      $region14: #{transformer_forward.3} parent=11 // pred_check_branch
        %743 = sbr.rel (%p741) target = $region16
      $region15: #{transformer_forward.3} parent=11 // pred_region
        _
      $region16: #{transformer_forward.3} parent=11 // pred_fallthru
        _
      // Predicated region
      $region17: #{transformer_forward.3} parent=11 // pred_check
        %p744 = pneg %p658
      $region18: #{transformer_forward.3} parent=11 // pred_check_branch
        %746 = sbr.rel (%p744) target = $region20
      $region19: #{transformer_forward.3} parent=11 // pred_region
        _
      $region20: #{transformer_forward.3} parent=11 // pred_fallthru
        _
      // Predicated region
      $region21: #{transformer_forward.3} parent=11 // pred_check
        %p747 = pneg %p679
      $region22: #{transformer_forward.3} parent=11 // pred_check_branch
        %749 = sbr.rel (%p747) target = $region24
      $region23: #{transformer_forward.3} parent=11 // pred_region
        _
      $region24: #{transformer_forward.3} parent=11 // pred_fallthru
        _
      // Predicated region
      $region25: #{transformer_forward.3} parent=11 // pred_check
        %p750 = pneg %p700
      $region26: #{transformer_forward.3} parent=11 // pred_check_branch
        %752 = sbr.rel (%p750) target = $region28
      $region27: #{transformer_forward.3} parent=11 // pred_region
        _
      $region28: #{transformer_forward.3} parent=11 // pred_fallthru
        _
    $region12: #{transformer_forward.3} parent=5 // pred_fallthru
      _
    %p753 = scmp.lt.s32.totalorder %s32, 4
    // Predicated region
    $region29: #{transformer_forward.3} parent=5 // pred_check
      %p754 = pneg %p753
    $region30: #{transformer_forward.3} parent=5 // pred_check_branch
      %756 = sbr.rel (%p754) target = $region32
    $region31: #{transformer_forward.3} parent=5 // pred_region
      // Predicated region
      $region33: #{transformer_forward.3} parent=31 // pred_check
        %p757 = pneg %p64
      $region34: #{transformer_forward.3} parent=31 // pred_check_branch
        %759 = sbr.rel (%p757) target = $region36
      $region35: #{transformer_forward.3} parent=31 // pred_region
        %p760 = scmp.lt.s32.totalorder %s39, 1
        %s761 = scalar_select %p760, %s39, 1
        %s762 = smul.addr %s761, 8
        %s763 = scalar_lea.vmem %s0, %s762
      $region36: #{transformer_forward.3} parent=31 // pred_fallthru
        _
      // Predicated region
      $region37: #{transformer_forward.3} parent=31 // pred_check
        %p764 = pneg %p90
      $region38: #{transformer_forward.3} parent=31 // pred_check_branch
        %766 = sbr.rel (%p764) target = $region40
      $region39: #{transformer_forward.3} parent=31 // pred_region
        %p767 = scmp.lt.s32.totalorder %s39, 1
        %s768 = scalar_select %p767, %s39, 1
        %s769 = smul.addr %s768, 8
        %s770 = scalar_lea.vmem %s1, %s769
      $region40: #{transformer_forward.3} parent=31 // pred_fallthru
        _
      // Predicated region
      $region41: #{transformer_forward.3} parent=31 // pred_check
        %p771 = pneg %p116
      $region42: #{transformer_forward.3} parent=31 // pred_check_branch
        %773 = sbr.rel (%p771) target = $region44
      $region43: #{transformer_forward.3} parent=31 // pred_region
        %p774 = scmp.lt.s32.totalorder %s40, 1
        %s775 = scalar_select %p774, %s40, 1
        %s776 = smul.addr %s775, 4
        %s777 = smul.addr %s776, 4
        %s778 = scalar_lea.vmem %s2, %s777
      $region44: #{transformer_forward.3} parent=31 // pred_fallthru
        _
      // Predicated region
      $region45: #{transformer_forward.3} parent=31 // pred_check
        %p779 = pneg %p142
      $region46: #{transformer_forward.3} parent=31 // pred_check_branch
        %781 = sbr.rel (%p779) target = $region48
      $region47: #{transformer_forward.3} parent=31 // pred_region
        %p782 = scmp.lt.s32.totalorder %s40, 1
        %s783 = scalar_select %p782, %s40, 1
        %s784 = scalar_lea.vmem %s3, %s783
      $region48: #{transformer_forward.3} parent=31 // pred_fallthru
        _
      // Predicated region
      $region49: #{transformer_forward.3} parent=31 // pred_check
        %p785 = pneg %p168
      $region50: #{transformer_forward.3} parent=31 // pred_check_branch
        %787 = sbr.rel (%p785) target = $region52
      $region51: #{transformer_forward.3} parent=31 // pred_region
        %p788 = scmp.lt.s32.totalorder %s40, 1
        %s789 = scalar_select %p788, %s40, 1
        %s790 = smul.addr %s789, 4
        %s791 = smul.addr %s790, 4
        %s792 = scalar_lea.vmem %s4, %s791
      $region52: #{transformer_forward.3} parent=31 // pred_fallthru
        _
      // Predicated region
      $region53: #{transformer_forward.3} parent=31 // pred_check
        %p793 = pneg %p194
      $region54: #{transformer_forward.3} parent=31 // pred_check_branch
        %795 = sbr.rel (%p793) target = $region56
      $region55: #{transformer_forward.3} parent=31 // pred_region
        %p796 = scmp.lt.s32.totalorder %s40, 1
        %s797 = scalar_select %p796, %s40, 1
        %s798 = scalar_lea.vmem %s5, %s797
      $region56: #{transformer_forward.3} parent=31 // pred_fallthru
        _
      // Predicated region
      $region57: #{transformer_forward.3} parent=31 // pred_check
        %p799 = pneg %p220
      $region58: #{transformer_forward.3} parent=31 // pred_check_branch
        %801 = sbr.rel (%p799) target = $region60
      $region59: #{transformer_forward.3} parent=31 // pred_region
        %p802 = scmp.lt.s32.totalorder %s40, 1
        %s803 = scalar_select %p802, %s40, 1
        %s804 = scalar_lea.vmem %s6, %s803
      $region60: #{transformer_forward.3} parent=31 // pred_fallthru
        _
      // Predicated region
      $region61: #{transformer_forward.3} parent=31 // pred_check
        %p805 = pneg %p246
      $region62: #{transformer_forward.3} parent=31 // pred_check_branch
        %807 = sbr.rel (%p805) target = $region64
      $region63: #{transformer_forward.3} parent=31 // pred_region
        %p808 = scmp.lt.s32.totalorder %s40, 1
        %s809 = scalar_select %p808, %s40, 1
        %s810 = scalar_lea.vmem %s7, %s809
      $region64: #{transformer_forward.3} parent=31 // pred_fallthru
        _
      // Predicated region
      $region65: #{transformer_forward.3} parent=31 // pred_check
        %p811 = pneg %p272
      $region66: #{transformer_forward.3} parent=31 // pred_check_branch
        %813 = sbr.rel (%p811) target = $region68
      $region67: #{transformer_forward.3} parent=31 // pred_region
        %p814 = scmp.lt.s32.totalorder %s40, 1
        %s815 = scalar_select %p814, %s40, 1
        %s816 = smul.addr %s815, 4
        %s817 = smul.addr %s816, 4
        %s818 = scalar_lea.vmem %s8, %s817
      $region68: #{transformer_forward.3} parent=31 // pred_fallthru
        _
      // Predicated region
      $region69: #{transformer_forward.3} parent=31 // pred_check
        %p819 = pneg %p298
      $region70: #{transformer_forward.3} parent=31 // pred_check_branch
        %821 = sbr.rel (%p819) target = $region72
      $region71: #{transformer_forward.3} parent=31 // pred_region
        %p822 = scmp.lt.s32.totalorder %s40, 1
        %s823 = scalar_select %p822, %s40, 1
        %s824 = scalar_lea.vmem %s9, %s823
      $region72: #{transformer_forward.3} parent=31 // pred_fallthru
        _
      // Predicated region
      $region73: #{transformer_forward.3} parent=31 // pred_check
        %p825 = pneg %p324
      $region74: #{transformer_forward.3} parent=31 // pred_check_branch
        %827 = sbr.rel (%p825) target = $region76
      $region75: #{transformer_forward.3} parent=31 // pred_region
        %p828 = scmp.lt.s32.totalorder %s40, 1
        %s829 = scalar_select %p828, %s40, 1
        %s830 = smul.addr %s829, 4
        %s831 = smul.addr %s830, 4
        %s832 = scalar_lea.vmem %s10, %s831
      $region76: #{transformer_forward.3} parent=31 // pred_fallthru
        _
      // Predicated region
      $region77: #{transformer_forward.3} parent=31 // pred_check
        %p833 = pneg %p350
      $region78: #{transformer_forward.3} parent=31 // pred_check_branch
        %835 = sbr.rel (%p833) target = $region80
      $region79: #{transformer_forward.3} parent=31 // pred_region
        %p836 = scmp.lt.s32.totalorder %s40, 1
        %s837 = scalar_select %p836, %s40, 1
        %s838 = scalar_lea.vmem %s11, %s837
      $region80: #{transformer_forward.3} parent=31 // pred_fallthru
        _
      // Predicated region
      $region81: #{transformer_forward.3} parent=31 // pred_check
        %p839 = pneg %p376
      $region82: #{transformer_forward.3} parent=31 // pred_check_branch
        %841 = sbr.rel (%p839) target = $region84
      $region83: #{transformer_forward.3} parent=31 // pred_region
        %p842 = scmp.lt.s32.totalorder %s40, 1
        %s843 = scalar_select %p842, %s40, 1
        %s844 = smul.addr %s843, 4
        %s845 = smul.addr %s844, 4
        %s846 = scalar_lea.vmem %s12, %s845
      $region84: #{transformer_forward.3} parent=31 // pred_fallthru
        _
      // Predicated region
      $region85: #{transformer_forward.3} parent=31 // pred_check
        %p847 = pneg %p402
      $region86: #{transformer_forward.3} parent=31 // pred_check_branch
        %849 = sbr.rel (%p847) target = $region88
      $region87: #{transformer_forward.3} parent=31 // pred_region
        %p850 = scmp.lt.s32.totalorder %s40, 1
        %s851 = scalar_select %p850, %s40, 1
        %s852 = scalar_lea.vmem %s13, %s851
      $region88: #{transformer_forward.3} parent=31 // pred_fallthru
        _
      // Predicated region
      $region89: #{transformer_forward.3} parent=31 // pred_check
        %p853 = pneg %p428
      $region90: #{transformer_forward.3} parent=31 // pred_check_branch
        %855 = sbr.rel (%p853) target = $region92
      $region91: #{transformer_forward.3} parent=31 // pred_region
        %p856 = scmp.lt.s32.totalorder %s40, 1
        %s857 = scalar_select %p856, %s40, 1
        %s858 = scalar_lea.vmem %s14, %s857
      $region92: #{transformer_forward.3} parent=31 // pred_fallthru
        _
      // Predicated region
      $region93: #{transformer_forward.3} parent=31 // pred_check
        %p859 = pneg %p454
      $region94: #{transformer_forward.3} parent=31 // pred_check_branch
        %861 = sbr.rel (%p859) target = $region96
      $region95: #{transformer_forward.3} parent=31 // pred_region
        %p862 = scmp.lt.s32.totalorder %s40, 1
        %s863 = scalar_select %p862, %s40, 1
        %s864 = scalar_lea.vmem %s15, %s863
      $region96: #{transformer_forward.3} parent=31 // pred_fallthru
        _
      // Predicated region
      $region97: #{transformer_forward.3} parent=31 // pred_check
        %p865 = pneg %p480
      $region98: #{transformer_forward.3} parent=31 // pred_check_branch
        %867 = sbr.rel (%p865) target = $region100
      $region99: #{transformer_forward.3} parent=31 // pred_region
        %p868 = scmp.lt.s32.totalorder %s40, 1
        %s869 = scalar_select %p868, %s40, 1
        %s870 = smul.addr %s869, 4
        %s871 = smul.addr %s870, 4
        %s872 = scalar_lea.vmem %s16, %s871
      $region100: #{transformer_forward.3} parent=31 // pred_fallthru
        _
      // Predicated region
      $region101: #{transformer_forward.3} parent=31 // pred_check
        %p873 = pneg %p506
      $region102: #{transformer_forward.3} parent=31 // pred_check_branch
        %875 = sbr.rel (%p873) target = $region104
      $region103: #{transformer_forward.3} parent=31 // pred_region
        %p876 = scmp.lt.s32.totalorder %s40, 1
        %s877 = scalar_select %p876, %s40, 1
        %s878 = scalar_lea.vmem %s17, %s877
      $region104: #{transformer_forward.3} parent=31 // pred_fallthru
        _
      // Predicated region
      $region105: #{transformer_forward.3} parent=31 // pred_check
        %p879 = pneg %p532
      $region106: #{transformer_forward.3} parent=31 // pred_check_branch
        %881 = sbr.rel (%p879) target = $region108
      $region107: #{transformer_forward.3} parent=31 // pred_region
        %p882 = scmp.lt.s32.totalorder %s40, 1
        %s883 = scalar_select %p882, %s40, 1
        %s884 = smul.addr %s883, 8
        %s885 = smul.addr %s884, 4
        %s886 = scalar_lea.vmem %s18, %s885
      $region108: #{transformer_forward.3} parent=31 // pred_fallthru
        _
      // Predicated region
      $region109: #{transformer_forward.3} parent=31 // pred_check
        %p887 = pneg %p558
      $region110: #{transformer_forward.3} parent=31 // pred_check_branch
        %889 = sbr.rel (%p887) target = $region112
      $region111: #{transformer_forward.3} parent=31 // pred_region
        %p890 = scmp.lt.s32.totalorder %s40, 1
        %s891 = scalar_select %p890, %s40, 1
        %s892 = scalar_lea.vmem %s19, %s891
      $region112: #{transformer_forward.3} parent=31 // pred_fallthru
        _
      // Predicated region
      $region113: #{transformer_forward.3} parent=31 // pred_check
        %p893 = pneg %p584
      $region114: #{transformer_forward.3} parent=31 // pred_check_branch
        %895 = sbr.rel (%p893) target = $region116
      $region115: #{transformer_forward.3} parent=31 // pred_region
        %p896 = scmp.lt.s32.totalorder %s40, 1
        %s897 = scalar_select %p896, %s40, 1
        %s898 = scalar_lea.vmem %s20, %s897
      $region116: #{transformer_forward.3} parent=31 // pred_fallthru
        _
      // Predicated region
      $region117: #{transformer_forward.3} parent=31 // pred_check
        %p899 = pneg %p610
      $region118: #{transformer_forward.3} parent=31 // pred_check_branch
        %901 = sbr.rel (%p899) target = $region120
      $region119: #{transformer_forward.3} parent=31 // pred_region
        %p902 = scmp.lt.s32.totalorder %s40, 1
        %s903 = scalar_select %p902, %s40, 1
        %s904 = scalar_lea.vmem %s21, %s903
      $region120: #{transformer_forward.3} parent=31 // pred_fallthru
        _
    $region32: #{transformer_forward.3} parent=5 // pred_fallthru
      _
    %p905 = scmp.le.s32.totalorder 1, %s32
    %p906 = scmp.lt.s32.totalorder %s32, 5
    %p907 = pnand %p905, %p906
    %p908 = pneg %p907
    // Predicated region
    $region121: #{transformer_forward.3} parent=5 // pred_check
      _
    $region122: #{transformer_forward.3} parent=5 // pred_check_branch
      %910 = sbr.rel (%p907) target = $region124
    $region123: #{transformer_forward.3} parent=5 // pred_region
      %s911 = ssub.s32 %s32, 1
      %p912 = scmp.lt.s32.totalorder %s41, 1
      %s913 = scalar_select %p912, %s41, 1
      %s914 = smul.addr %s913, 8
      %s915 = scalar_lea.vmem %s0, %s914
      %p916 = pneg %p70
      %p917 = pneg %p67
      %p918 = scmp.lt.s32.totalorder %s41, 1
      %s919 = scalar_select %p918, %s41, 1
      %s920 = smul.addr %s919, 8
      %s921 = scalar_lea.vmem %s1, %s920
      %p922 = pneg %p96
      %p923 = pneg %p93
      %p924 = scmp.lt.s32.totalorder %s42, 1
      %s925 = scalar_select %p924, %s42, 1
      %s926 = smul.addr %s925, 4
      %s927 = smul.addr %s926, 4
      %s928 = scalar_lea.vmem %s2, %s927
      %p929 = pneg %p122
      %p930 = pneg %p119
      %p931 = scmp.lt.s32.totalorder %s42, 1
      %s932 = scalar_select %p931, %s42, 1
      %s933 = scalar_lea.vmem %s3, %s932
      %p934 = pneg %p148
      %p935 = pneg %p145
      %p936 = scmp.lt.s32.totalorder %s42, 1
      %s937 = scalar_select %p936, %s42, 1
      %s938 = smul.addr %s937, 4
      %s939 = smul.addr %s938, 4
      %s940 = scalar_lea.vmem %s4, %s939
      %p941 = pneg %p174
      %p942 = pneg %p171
      %p943 = scmp.lt.s32.totalorder %s42, 1
      %s944 = scalar_select %p943, %s42, 1
      %s945 = scalar_lea.vmem %s5, %s944
      %p946 = pneg %p200
      %p947 = pneg %p197
      %p948 = scmp.lt.s32.totalorder %s42, 1
      %s949 = scalar_select %p948, %s42, 1
      %s950 = scalar_lea.vmem %s6, %s949
      %p951 = pneg %p226
      %p952 = pneg %p223
      %p953 = scmp.lt.s32.totalorder %s42, 1
      %s954 = scalar_select %p953, %s42, 1
      %s955 = scalar_lea.vmem %s7, %s954
      %p956 = pneg %p252
      %p957 = pneg %p249
      %p958 = scmp.lt.s32.totalorder %s42, 1
      %s959 = scalar_select %p958, %s42, 1
      %s960 = smul.addr %s959, 4
      %s961 = smul.addr %s960, 4
      %s962 = scalar_lea.vmem %s8, %s961
      %p963 = pneg %p278
      %p964 = pneg %p275
      %p965 = scmp.lt.s32.totalorder %s42, 1
      %s966 = scalar_select %p965, %s42, 1
      %s967 = scalar_lea.vmem %s9, %s966
      %p968 = pneg %p304
      %p969 = pneg %p301
      %p970 = scmp.lt.s32.totalorder %s42, 1
      %s971 = scalar_select %p970, %s42, 1
      %s972 = smul.addr %s971, 4
      %s973 = smul.addr %s972, 4
      %s974 = scalar_lea.vmem %s10, %s973
      %p975 = pneg %p330
      %p976 = pneg %p327
      %p977 = scmp.lt.s32.totalorder %s42, 1
      %s978 = scalar_select %p977, %s42, 1
      %s979 = scalar_lea.vmem %s11, %s978
      %p980 = pneg %p356
      %p981 = pneg %p353
      %p982 = scmp.lt.s32.totalorder %s42, 1
      %s983 = scalar_select %p982, %s42, 1
      %s984 = smul.addr %s983, 4
      %s985 = smul.addr %s984, 4
      %s986 = scalar_lea.vmem %s12, %s985
      %p987 = pneg %p382
      %p988 = pneg %p379
      %p989 = scmp.lt.s32.totalorder %s42, 1
      %s990 = scalar_select %p989, %s42, 1
      %s991 = scalar_lea.vmem %s13, %s990
      %p992 = pneg %p408
      %p993 = pneg %p405
      %p994 = scmp.lt.s32.totalorder %s42, 1
      %s995 = scalar_select %p994, %s42, 1
      %s996 = scalar_lea.vmem %s14, %s995
      %p997 = pneg %p434
      %p998 = pneg %p431
      %p999 = scmp.lt.s32.totalorder %s42, 1
      %s1000 = scalar_select %p999, %s42, 1
      %s1001 = scalar_lea.vmem %s15, %s1000
      %p1002 = pneg %p460
      %p1003 = pneg %p457
      %p1004 = scmp.lt.s32.totalorder %s42, 1
      %s1005 = scalar_select %p1004, %s42, 1
      %s1006 = smul.addr %s1005, 4
      %s1007 = smul.addr %s1006, 4
      %s1008 = scalar_lea.vmem %s16, %s1007
      %p1009 = pneg %p486
      %p1010 = pneg %p483
      %p1011 = scmp.lt.s32.totalorder %s42, 1
      %s1012 = scalar_select %p1011, %s42, 1
      %s1013 = scalar_lea.vmem %s17, %s1012
      %p1014 = pneg %p512
      %p1015 = pneg %p509
      %p1016 = scmp.lt.s32.totalorder %s42, 1
      %s1017 = scalar_select %p1016, %s42, 1
      %s1018 = smul.addr %s1017, 8
      %s1019 = smul.addr %s1018, 4
      %s1020 = scalar_lea.vmem %s18, %s1019
      %p1021 = pneg %p538
      %p1022 = pneg %p535
      %p1023 = scmp.lt.s32.totalorder %s42, 1
      %s1024 = scalar_select %p1023, %s42, 1
      %s1025 = scalar_lea.vmem %s19, %s1024
      %p1026 = pneg %p564
      %p1027 = pneg %p561
      %p1028 = scmp.lt.s32.totalorder %s42, 1
      %s1029 = scalar_select %p1028, %s42, 1
      %s1030 = scalar_lea.vmem %s20, %s1029
      %p1031 = pneg %p590
      %p1032 = pneg %p587
      %p1033 = scmp.lt.s32.totalorder %s42, 1
      %s1034 = scalar_select %p1033, %s42, 1
      %s1035 = scalar_lea.vmem %s21, %s1034
      %p1036 = pneg %p616
      %p1037 = pneg %p613
      %p1038 = pneg %p637
      %p1039 = pneg %p634
      %p1040 = pneg %p658
      %p1041 = pneg %p655
      %p1042 = pneg %p679
      %p1043 = pneg %p676
      %p1044 = pneg %p700
      %p1045 = pneg %p697
      %p1046 = pneg %p726
      %p1047 = pneg %p723
      %p1048 = scmp.lt.s32.totalorder %s41, 1
      %s1049 = scalar_select %p1048, %s41, 1
      %s1050 = smul.addr %s1049, 8
      %s1051 = scalar_lea.vmem %s26, %s1050
      %p1052 = scmp.lt.s32.totalorder %s41, 1
      %s1053 = scalar_select %p1052, %s41, 1
      %s1054 = smul.addr %s1053, 8
      %s1055 = scalar_lea.vmem %s0, %s1054
      %p1056 = scmp.lt.s32.totalorder %s41, 1
      %s1057 = scalar_select %p1056, %s41, 1
      %s1058 = smul.addr %s1057, 8
      %s1059 = scalar_lea.vmem %s1, %s1058
      %p1060 = scmp.lt.s32.totalorder %s42, 1
      %s1061 = scalar_select %p1060, %s42, 1
      %s1062 = smul.addr %s1061, 4
      %s1063 = smul.addr %s1062, 4
      %s1064 = scalar_lea.vmem %s2, %s1063
      %p1065 = scmp.lt.s32.totalorder %s42, 1
      %s1066 = scalar_select %p1065, %s42, 1
      %s1067 = scalar_lea.vmem %s3, %s1066
      %p1068 = scmp.lt.s32.totalorder %s42, 1
      %s1069 = scalar_select %p1068, %s42, 1
      %s1070 = smul.addr %s1069, 4
      %s1071 = smul.addr %s1070, 4
      %s1072 = scalar_lea.vmem %s4, %s1071
      %p1073 = scmp.lt.s32.totalorder %s42, 1
      %s1074 = scalar_select %p1073, %s42, 1
      %s1075 = scalar_lea.vmem %s5, %s1074
      %p1076 = scmp.lt.s32.totalorder %s42, 1
      %s1077 = scalar_select %p1076, %s42, 1
      %s1078 = scalar_lea.vmem %s6, %s1077
      %p1079 = scmp.lt.s32.totalorder %s42, 1
      %s1080 = scalar_select %p1079, %s42, 1
      %s1081 = scalar_lea.vmem %s7, %s1080
      %p1082 = scmp.lt.s32.totalorder %s42, 1
      %s1083 = scalar_select %p1082, %s42, 1
      %s1084 = smul.addr %s1083, 4
      %s1085 = smul.addr %s1084, 4
      %s1086 = scalar_lea.vmem %s8, %s1085
      %p1087 = scmp.lt.s32.totalorder %s42, 1
      %s1088 = scalar_select %p1087, %s42, 1
      %s1089 = scalar_lea.vmem %s9, %s1088
      %p1090 = scmp.lt.s32.totalorder %s42, 1
      %s1091 = scalar_select %p1090, %s42, 1
      %s1092 = smul.addr %s1091, 4
      %s1093 = smul.addr %s1092, 4
      %s1094 = scalar_lea.vmem %s10, %s1093
      %p1095 = scmp.lt.s32.totalorder %s42, 1
      %s1096 = scalar_select %p1095, %s42, 1
      %s1097 = scalar_lea.vmem %s11, %s1096
      %p1098 = scmp.lt.s32.totalorder %s42, 1
      %s1099 = scalar_select %p1098, %s42, 1
      %s1100 = smul.addr %s1099, 4
      %s1101 = smul.addr %s1100, 4
      %s1102 = scalar_lea.vmem %s12, %s1101
      %p1103 = scmp.lt.s32.totalorder %s42, 1
      %s1104 = scalar_select %p1103, %s42, 1
      %s1105 = scalar_lea.vmem %s13, %s1104
      %p1106 = scmp.lt.s32.totalorder %s42, 1
      %s1107 = scalar_select %p1106, %s42, 1
      %s1108 = scalar_lea.vmem %s14, %s1107
      %p1109 = scmp.lt.s32.totalorder %s42, 1
      %s1110 = scalar_select %p1109, %s42, 1
      %s1111 = scalar_lea.vmem %s15, %s1110
      %p1112 = scmp.lt.s32.totalorder %s42, 1
      %s1113 = scalar_select %p1112, %s42, 1
      %s1114 = smul.addr %s1113, 4
      %s1115 = smul.addr %s1114, 4
      %s1116 = scalar_lea.vmem %s16, %s1115
      %p1117 = scmp.lt.s32.totalorder %s42, 1
      %s1118 = scalar_select %p1117, %s42, 1
      %s1119 = scalar_lea.vmem %s17, %s1118
      %p1120 = scmp.lt.s32.totalorder %s42, 1
      %s1121 = scalar_select %p1120, %s42, 1
      %s1122 = smul.addr %s1121, 8
      %s1123 = smul.addr %s1122, 4
      %s1124 = scalar_lea.vmem %s18, %s1123
      %p1125 = scmp.lt.s32.totalorder %s42, 1
      %s1126 = scalar_select %p1125, %s42, 1
      %s1127 = scalar_lea.vmem %s19, %s1126
      %p1128 = scmp.lt.s32.totalorder %s42, 1
      %s1129 = scalar_select %p1128, %s42, 1
      %s1130 = scalar_lea.vmem %s20, %s1129
      %p1131 = scmp.lt.s32.totalorder %s42, 1
      %s1132 = scalar_select %p1131, %s42, 1
      %s1133 = scalar_lea.vmem %s21, %s1132
      %p1134 = scmp.lt.s32.totalorder %s41, 1
      %s1135 = scalar_select %p1134, %s41, 1
      %s1136 = smul.addr %s1135, 8
      %s1137 = scalar_lea.vmem %s26, %s1136
      %p1139 = scmp.eq.s32.totalorder %s42, 0
      // Predicated region
      $region125: #{transformer_forward.3} parent=123 // pred_check
        %p1140 = pneg %p1139
      $region126: #{transformer_forward.3} parent=123 // pred_check_branch
        %1142 = sbr.rel (%p1140) target = $region128
      $region127: #{transformer_forward.3} parent=123 // pred_region
        %v1143 = vld [vmem:[%s1055] sm:$0x3f]
        %vm1144 = vcmask 259072
        %1145 = vst.msk [vmem:[#allocation2] sm:$0x3f] %vm1144, %v1143
      $region128: #{transformer_forward.3} parent=123 // pred_fallthru
        _
      %v1146 = vld [vmem:[#allocation2] sm:$0x3f]
      %v1147 = vld [vmem:[%s1059] sm:$0xff]
      %v1148 = vld [vmem:[%s1064] sm:$0xf]
      %v1149 = vld [vmem:[%s1064 + $0x4] sm:$0xf]
      %v1150 = vld [vmem:[%s1064 + $0x8] sm:$0xf]
      %v1151 = vld [vmem:[%s1064 + $0xc] sm:$0xf]
      %v1152 = vld [vmem:[%s1067] sm:$0x1]
      %v1153 = vpack.c.bf16 %v1146, %v1146
      %v1155 = vlaneseq
      %v1156 = vshrl.u32 %v1155, 7
      %v1157 = vsub.s32 0, %v1156
      %v1158 = vrot.slane %v1152, %v1157
      %v1164 = vunpack.c.l.b16 %v1148
      %v1165 = vunpack.c.l.b16 %v1149
      %v1166 = vunpack.c.l.b16 %v1150
      %v1167 = vunpack.c.l.b16 %v1151
      %v1168 = vpack.c.b16 %v1165, %v1164
      %v1169 = vpack.c.b16 %v1167, %v1166
      %vm1172 = vcmask 261120
      %v1174 = vsel %vm1172, %v1153, 0
      %1176 = vmatprep.subr.bf16.mxu0 0
      %1177 = vmatpush1.bf16.msra.mxu0 %v1168
      %1178 = vmatprep.subr.bf16.mxu0 0
      %1179 = vmatpush1.bf16.msra.mxu0 %v1169
      %1180 = vmatprep.subr.bf16.mxu0 0
      %1181 = vmatpush1.bf16.msra.mxu0 0
      %1182 = vmatprep.subr.bf16.mxu0 0
      %1183 = vmatpush1.bf16.msra.mxu0 0
      %1184 = vmatprep.subr.bf16.mxu0 0
      %1185 = vmatpush1.bf16.msra.mxu0 0
      %1186 = vmatprep.subr.bf16.mxu0 0
      %1187 = vmatpush1.bf16.msra.mxu0 0
      %1188 = vmatprep.subr.bf16.mxu0 0
      %1189 = vmatpush1.bf16.msra.mxu0 0
      %1190 = vmatprep.subr.bf16.mxu0 0
      %1191 = vmatpush1.bf16.msra.mxu0 0
      %1192 = vmatprep.subr.bf16.mxu0 0
      %1193 = vmatpush1.bf16.msra.mxu0 0
      %1194 = vmatprep.subr.bf16.mxu0 0
      %1195 = vmatpush1.bf16.msra.mxu0 0
      %1196 = vmatprep.subr.bf16.mxu0 0
      %1197 = vmatpush1.bf16.msra.mxu0 0
      %1198 = vmatprep.subr.bf16.mxu0 0
      %1199 = vmatpush1.bf16.msra.mxu0 0
      %1200 = vmatprep.subr.bf16.mxu0 0
      %1201 = vmatpush1.bf16.msra.mxu0 0
      %1202 = vmatprep.subr.bf16.mxu0 0
      %1203 = vmatpush1.bf16.msra.mxu0 0
      %1204 = vmatprep.subr.bf16.mxu0 0
      %1205 = vmatpush1.bf16.msra.mxu0 0
      %1206 = vmatprep.subr.bf16.mxu0 0
      %1207 = vmatpush1.bf16.msra.mxu0 0
      %1208 = vmatprep.mubr.bf16.mxu0 0
      %1209 = vmatmul.mubr.bf16.gmra.mrb[0].mxu0 %v1174
      %v1210 = vpop.f32.mrb[0].mxu0
      %v1211 = vadd.f32 %v1158, %v1210
      %v1212 = vpop.f32.mrb[0].mxu0
      %v1213 = vpop.f32.mrb[0].mxu0
      %v1214 = vpop.f32.mrb[0].mxu0
      %1215 = vdwg.mxu0
      %v1216 = vld [vmem:[%s1072] sm:$0xf]
      %v1217 = vld [vmem:[%s1072 + $0x4] sm:$0xf]
      %v1218 = vld [vmem:[%s1072 + $0x8] sm:$0xf]
      %v1219 = vld [vmem:[%s1072 + $0xc] sm:$0xf]
      %v1220 = vld [vmem:[%s1075] sm:$0x1]
      %v1221 = vpack.c.bf16 %v1211, %v1211
      %v1223 = vlaneseq
      %v1224 = vshrl.u32 %v1223, 7
      %v1225 = vsub.s32 0, %v1224
      %v1226 = vrot.slane %v1220, %v1225
      %v1228 = vadd.f32 %v1226, 0.0
      %1230 = vrot.lane.b32.xlu0 %v1221, 96
      %v1231 = vpop.permute.xlu0 %1230
      %vm1232 = vcmask 64512
      %v1234 = vsel %vm1232, %v1221, 0
      %v1237 = vsel %vm1232, %v1231, 0
      %1239 = vmatprep.subr.bf16.mxu0 0
      %1240 = vmatpush1.bf16.xpose.msra.mxu0 %v1237
      %1241 = vmatprep.subr.bf16.mxu0 0
      %1242 = vmatpush1.bf16.xpose.msra.mxu0 0
      %1243 = vmatprep.subr.bf16.mxu0 0
      %1244 = vmatpush1.bf16.xpose.msra.mxu0 0
      %1245 = vmatprep.subr.bf16.mxu0 0
      %1246 = vmatpush1.bf16.xpose.msra.mxu0 0
      %1247 = vmatprep.subr.bf16.mxu0 0
      %1248 = vmatpush1.bf16.xpose.msra.mxu0 0
      %1249 = vmatprep.subr.bf16.mxu0 0
      %1250 = vmatpush1.bf16.xpose.msra.mxu0 0
      %1251 = vmatprep.subr.bf16.mxu0 0
      %1252 = vmatpush1.bf16.xpose.msra.mxu0 0
      %1253 = vmatprep.subr.bf16.mxu0 0
      %1254 = vmatpush1.bf16.xpose.msra.mxu0 0
      %1255 = vmatprep.subr.bf16.mxu0 0
      %1256 = vmatpush1.bf16.xpose.msra.mxu0 0
      %1257 = vmatprep.subr.bf16.mxu0 0
      %1258 = vmatpush1.bf16.xpose.msra.mxu0 0
      %1259 = vmatprep.subr.bf16.mxu0 0
      %1260 = vmatpush1.bf16.xpose.msra.mxu0 0
      %1261 = vmatprep.subr.bf16.mxu0 0
      %1262 = vmatpush1.bf16.xpose.msra.mxu0 0
      %1263 = vmatprep.subr.bf16.mxu0 0
      %1264 = vmatpush1.bf16.xpose.msra.mxu0 0
      %1265 = vmatprep.subr.bf16.mxu0 0
      %1266 = vmatpush1.bf16.xpose.msra.mxu0 0
      %1267 = vmatprep.subr.bf16.mxu0 0
      %1268 = vmatpush1.bf16.xpose.msra.mxu0 0
      %1269 = vmatprep.subr.bf16.mxu0 0
      %1270 = vmatpush1.bf16.xpose.msra.mxu0 0
      %1271 = vmatprep.mubr.bf16.mxu0 0
      %1272 = vmatmul.mubr.bf16.gmra.mrb[0].mxu0 %v1234
      %v1273 = vpop.f32.mrb[0].mxu0
      %v1274 = vadd.f32 0.0, %v1273
      %v1275 = vpop.f32.mrb[0].mxu0
      %v1276 = vpop.f32.mrb[0].mxu0
      %v1277 = vpop.f32.mrb[0].mxu0
      %1278 = vdwg.mxu0
      %v1279 = vmul.f32 %v1274, 0.35355338
      %vm1280 = vcmask 46080
      %v1281 = vsel %vm1280, %v1279, -inf
      %1282 = vmax.xlane.f32.xlu0 %v1281
      %v1283 = vpop.xlane.xlu0 %1282
      %v1284 = vsub.f32 %v1279, %v1283
      %v1285 = vmul.f32 %v1284, 1.442695
      %v1286 = vpow.pop %v1285
      %v1287 = vsel %vm1280, %v1286, 0.0
      %1288 = vadd.xlane.f32.xlu0 %v1287
      %v1289 = vpop.xlane.xlu0 %1288
      %v1290 = vrcp.pop %v1289
      %v1291 = vmul.f32 %v1286, %v1290
      %v1292 = vpack.c.bf16 %v1291, %v1291
      %1293 = vrot.lane.b32.xlu0 %v1221, 64
      %v1294 = vpop.permute.xlu0 %1293
      %vm1295 = vcmask 48128
      %v1297 = vsel %vm1295, %v1292, 0
      %vm1299 = vcmask 1042432
      %v1301 = vsel %vm1299, %v1294, 0
      %1303 = vmatprep.subr.bf16.mxu0 0
      %1304 = vmatpush1.bf16.msra.mxu0 %v1301
      %1305 = vmatprep.subr.bf16.mxu0 0
      %1306 = vmatpush1.bf16.msra.mxu0 0
      %1307 = vmatprep.subr.bf16.mxu0 0
      %1308 = vmatpush1.bf16.msra.mxu0 0
      %1309 = vmatprep.subr.bf16.mxu0 0
      %1310 = vmatpush1.bf16.msra.mxu0 0
      %1311 = vmatprep.subr.bf16.mxu0 0
      %1312 = vmatpush1.bf16.msra.mxu0 0
      %1313 = vmatprep.subr.bf16.mxu0 0
      %1314 = vmatpush1.bf16.msra.mxu0 0
      %1315 = vmatprep.subr.bf16.mxu0 0
      %1316 = vmatpush1.bf16.msra.mxu0 0
      %1317 = vmatprep.subr.bf16.mxu0 0
      %1318 = vmatpush1.bf16.msra.mxu0 0
      %1319 = vmatprep.subr.bf16.mxu0 0
      %1320 = vmatpush1.bf16.msra.mxu0 0
      %1321 = vmatprep.subr.bf16.mxu0 0
      %1322 = vmatpush1.bf16.msra.mxu0 0
      %1323 = vmatprep.subr.bf16.mxu0 0
      %1324 = vmatpush1.bf16.msra.mxu0 0
      %1325 = vmatprep.subr.bf16.mxu0 0
      %1326 = vmatpush1.bf16.msra.mxu0 0
      %1327 = vmatprep.subr.bf16.mxu0 0
      %1328 = vmatpush1.bf16.msra.mxu0 0
      %1329 = vmatprep.subr.bf16.mxu0 0
      %1330 = vmatpush1.bf16.msra.mxu0 0
      %1331 = vmatprep.subr.bf16.mxu0 0
      %1332 = vmatpush1.bf16.msra.mxu0 0
      %1333 = vmatprep.subr.bf16.mxu0 0
      %1334 = vmatpush1.bf16.msra.mxu0 0
      %1335 = vmatprep.mubr.bf16.mxu0 0
      %1336 = vmatmul.mubr.bf16.gmra.mrb[0].mxu0 %v1297
      %v1337 = vpop.f32.mrb[0].mxu0
      %v1338 = vadd.f32 0.0, %v1337
      %v1339 = vpop.f32.mrb[0].mxu0
      %v1340 = vpop.f32.mrb[0].mxu0
      %v1341 = vpop.f32.mrb[0].mxu0
      %1342 = vdwg.mxu0
      %v1343 = vpack.c.bf16 %v1338, %v1338
      %v1345 = vsel %vm1232, %v1343, 0
      %vm1347 = vcmask 1043456
      %v1349 = vsel %vm1347, %v1216, 0
      %1351 = vmatprep.subr.bf16.mxu0 0
      %1352 = vmatpush1.bf16.msra.mxu0 %v1349
      %1353 = vmatprep.subr.bf16.mxu0 0
      %1354 = vmatpush1.bf16.msra.mxu0 0
      %1355 = vmatprep.subr.bf16.mxu0 0
      %1356 = vmatpush1.bf16.msra.mxu0 0
      %1357 = vmatprep.subr.bf16.mxu0 0
      %1358 = vmatpush1.bf16.msra.mxu0 0
      %1359 = vmatprep.subr.bf16.mxu0 0
      %1360 = vmatpush1.bf16.msra.mxu0 0
      %1361 = vmatprep.subr.bf16.mxu0 0
      %1362 = vmatpush1.bf16.msra.mxu0 0
      %1363 = vmatprep.subr.bf16.mxu0 0
      %1364 = vmatpush1.bf16.msra.mxu0 0
      %1365 = vmatprep.subr.bf16.mxu0 0
      %1366 = vmatpush1.bf16.msra.mxu0 0
      %1367 = vmatprep.subr.bf16.mxu0 0
      %1368 = vmatpush1.bf16.msra.mxu0 0
      %1369 = vmatprep.subr.bf16.mxu0 0
      %1370 = vmatpush1.bf16.msra.mxu0 0
      %1371 = vmatprep.subr.bf16.mxu0 0
      %1372 = vmatpush1.bf16.msra.mxu0 0
      %1373 = vmatprep.subr.bf16.mxu0 0
      %1374 = vmatpush1.bf16.msra.mxu0 0
      %1375 = vmatprep.subr.bf16.mxu0 0
      %1376 = vmatpush1.bf16.msra.mxu0 0
      %1377 = vmatprep.subr.bf16.mxu0 0
      %1378 = vmatpush1.bf16.msra.mxu0 0
      %1379 = vmatprep.subr.bf16.mxu0 0
      %1380 = vmatpush1.bf16.msra.mxu0 0
      %1381 = vmatprep.subr.bf16.mxu0 0
      %1382 = vmatpush1.bf16.msra.mxu0 0
      %1383 = vmatprep.mubr.bf16.mxu0 0
      %1384 = vmatmul.mubr.bf16.gmra.mrb[0].mxu0 %v1345
      %v1385 = vpop.f32.mrb[0].mxu0
      %v1386 = vadd.f32 0.0, %v1385
      %v1387 = vpop.f32.mrb[0].mxu0
      %v1388 = vpop.f32.mrb[0].mxu0
      %v1389 = vpop.f32.mrb[0].mxu0
      %1390 = vdwg.mxu0
      %v1391 = vadd.f32 %v1228, %v1386
      %1392 = vrot.lane.b32.xlu0 %v1221, 120
      %v1393 = vpop.permute.xlu0 %1392
      %1394 = vrot.lane.b32.xlu0 %v1221, 88
      %v1395 = vpop.permute.xlu0 %1394
      %v1397 = vsel %vm1232, %v1393, 0
      %v1400 = vsel %vm1232, %v1395, 0
      %1402 = vmatprep.subr.bf16.mxu0 0
      %1403 = vmatpush1.bf16.xpose.msra.mxu0 %v1400
      %1404 = vmatprep.subr.bf16.mxu0 0
      %1405 = vmatpush1.bf16.xpose.msra.mxu0 0
      %1406 = vmatprep.subr.bf16.mxu0 0
      %1407 = vmatpush1.bf16.xpose.msra.mxu0 0
      %1408 = vmatprep.subr.bf16.mxu0 0
      %1409 = vmatpush1.bf16.xpose.msra.mxu0 0
      %1410 = vmatprep.subr.bf16.mxu0 0
      %1411 = vmatpush1.bf16.xpose.msra.mxu0 0
      %1412 = vmatprep.subr.bf16.mxu0 0
      %1413 = vmatpush1.bf16.xpose.msra.mxu0 0
      %1414 = vmatprep.subr.bf16.mxu0 0
      %1415 = vmatpush1.bf16.xpose.msra.mxu0 0
      %1416 = vmatprep.subr.bf16.mxu0 0
      %1417 = vmatpush1.bf16.xpose.msra.mxu0 0
      %1418 = vmatprep.subr.bf16.mxu0 0
      %1419 = vmatpush1.bf16.xpose.msra.mxu0 0
      %1420 = vmatprep.subr.bf16.mxu0 0
      %1421 = vmatpush1.bf16.xpose.msra.mxu0 0
      %1422 = vmatprep.subr.bf16.mxu0 0
      %1423 = vmatpush1.bf16.xpose.msra.mxu0 0
      %1424 = vmatprep.subr.bf16.mxu0 0
      %1425 = vmatpush1.bf16.xpose.msra.mxu0 0
      %1426 = vmatprep.subr.bf16.mxu0 0
      %1427 = vmatpush1.bf16.xpose.msra.mxu0 0
      %1428 = vmatprep.subr.bf16.mxu0 0
      %1429 = vmatpush1.bf16.xpose.msra.mxu0 0
      %1430 = vmatprep.subr.bf16.mxu0 0
      %1431 = vmatpush1.bf16.xpose.msra.mxu0 0
      %1432 = vmatprep.subr.bf16.mxu0 0
      %1433 = vmatpush1.bf16.xpose.msra.mxu0 0
      %1434 = vmatprep.mubr.bf16.mxu0 0
      %1435 = vmatmul.mubr.bf16.gmra.mrb[0].mxu0 %v1397
      %v1436 = vpop.f32.mrb[0].mxu0
      %v1437 = vadd.f32 0.0, %v1436
      %v1438 = vpop.f32.mrb[0].mxu0
      %v1439 = vpop.f32.mrb[0].mxu0
      %v1440 = vpop.f32.mrb[0].mxu0
      %1441 = vdwg.mxu0
      %v1442 = vmul.f32 %v1437, 0.35355338
      %v1443 = vsel %vm1280, %v1442, -inf
      %1444 = vmax.xlane.f32.xlu0 %v1443
      %v1445 = vpop.xlane.xlu0 %1444
      %v1446 = vsub.f32 %v1442, %v1445
      %v1447 = vmul.f32 %v1446, 1.442695
      %v1448 = vpow.pop %v1447
      %v1449 = vsel %vm1280, %v1448, 0.0
      %1450 = vadd.xlane.f32.xlu0 %v1449
      %v1451 = vpop.xlane.xlu0 %1450
      %v1452 = vrcp.pop %v1451
      %v1453 = vmul.f32 %v1448, %v1452
      %v1454 = vpack.c.bf16 %v1453, %v1453
      %1455 = vrot.lane.b32.xlu0 %v1221, 56
      %v1456 = vpop.permute.xlu0 %1455
      %v1458 = vsel %vm1295, %v1454, 0
      %v1461 = vsel %vm1299, %v1456, 0
      %1463 = vmatprep.subr.bf16.mxu0 0
      %1464 = vmatpush1.bf16.msra.mxu0 %v1461
      %1465 = vmatprep.subr.bf16.mxu0 0
      %1466 = vmatpush1.bf16.msra.mxu0 0
      %1467 = vmatprep.subr.bf16.mxu0 0
      %1468 = vmatpush1.bf16.msra.mxu0 0
      %1469 = vmatprep.subr.bf16.mxu0 0
      %1470 = vmatpush1.bf16.msra.mxu0 0
      %1471 = vmatprep.subr.bf16.mxu0 0
      %1472 = vmatpush1.bf16.msra.mxu0 0
      %1473 = vmatprep.subr.bf16.mxu0 0
      %1474 = vmatpush1.bf16.msra.mxu0 0
      %1475 = vmatprep.subr.bf16.mxu0 0
      %1476 = vmatpush1.bf16.msra.mxu0 0
      %1477 = vmatprep.subr.bf16.mxu0 0
      %1478 = vmatpush1.bf16.msra.mxu0 0
      %1479 = vmatprep.subr.bf16.mxu0 0
      %1480 = vmatpush1.bf16.msra.mxu0 0
      %1481 = vmatprep.subr.bf16.mxu0 0
      %1482 = vmatpush1.bf16.msra.mxu0 0
      %1483 = vmatprep.subr.bf16.mxu0 0
      %1484 = vmatpush1.bf16.msra.mxu0 0
      %1485 = vmatprep.subr.bf16.mxu0 0
      %1486 = vmatpush1.bf16.msra.mxu0 0
      %1487 = vmatprep.subr.bf16.mxu0 0
      %1488 = vmatpush1.bf16.msra.mxu0 0
      %1489 = vmatprep.subr.bf16.mxu0 0
      %1490 = vmatpush1.bf16.msra.mxu0 0
      %1491 = vmatprep.subr.bf16.mxu0 0
      %1492 = vmatpush1.bf16.msra.mxu0 0
      %1493 = vmatprep.subr.bf16.mxu0 0
      %1494 = vmatpush1.bf16.msra.mxu0 0
      %1495 = vmatprep.mubr.bf16.mxu0 0
      %1496 = vmatmul.mubr.bf16.gmra.mrb[0].mxu0 %v1458
      %v1497 = vpop.f32.mrb[0].mxu0
      %v1498 = vadd.f32 0.0, %v1497
      %v1499 = vpop.f32.mrb[0].mxu0
      %v1500 = vpop.f32.mrb[0].mxu0
      %v1501 = vpop.f32.mrb[0].mxu0
      %1502 = vdwg.mxu0
      %v1503 = vpack.c.bf16 %v1498, %v1498
      %v1505 = vsel %vm1232, %v1503, 0
      %v1508 = vsel %vm1347, %v1217, 0
      %1510 = vmatprep.subr.bf16.mxu0 0
      %1511 = vmatpush1.bf16.msra.mxu0 %v1508
      %1512 = vmatprep.subr.bf16.mxu0 0
      %1513 = vmatpush1.bf16.msra.mxu0 0
      %1514 = vmatprep.subr.bf16.mxu0 0
      %1515 = vmatpush1.bf16.msra.mxu0 0
      %1516 = vmatprep.subr.bf16.mxu0 0
      %1517 = vmatpush1.bf16.msra.mxu0 0
      %1518 = vmatprep.subr.bf16.mxu0 0
      %1519 = vmatpush1.bf16.msra.mxu0 0
      %1520 = vmatprep.subr.bf16.mxu0 0
      %1521 = vmatpush1.bf16.msra.mxu0 0
      %1522 = vmatprep.subr.bf16.mxu0 0
      %1523 = vmatpush1.bf16.msra.mxu0 0
      %1524 = vmatprep.subr.bf16.mxu0 0
      %1525 = vmatpush1.bf16.msra.mxu0 0
      %1526 = vmatprep.subr.bf16.mxu0 0
      %1527 = vmatpush1.bf16.msra.mxu0 0
      %1528 = vmatprep.subr.bf16.mxu0 0
      %1529 = vmatpush1.bf16.msra.mxu0 0
      %1530 = vmatprep.subr.bf16.mxu0 0
      %1531 = vmatpush1.bf16.msra.mxu0 0
      %1532 = vmatprep.subr.bf16.mxu0 0
      %1533 = vmatpush1.bf16.msra.mxu0 0
      %1534 = vmatprep.subr.bf16.mxu0 0
      %1535 = vmatpush1.bf16.msra.mxu0 0
      %1536 = vmatprep.subr.bf16.mxu0 0
      %1537 = vmatpush1.bf16.msra.mxu0 0
      %1538 = vmatprep.subr.bf16.mxu0 0
      %1539 = vmatpush1.bf16.msra.mxu0 0
      %1540 = vmatprep.subr.bf16.mxu0 0
      %1541 = vmatpush1.bf16.msra.mxu0 0
      %1542 = vmatprep.mubr.bf16.mxu0 0
      %1543 = vmatmul.mubr.bf16.gmra.mrb[0].mxu0 %v1505
      %v1544 = vpop.f32.mrb[0].mxu0
      %v1545 = vadd.f32 0.0, %v1544
      %v1546 = vpop.f32.mrb[0].mxu0
      %v1547 = vpop.f32.mrb[0].mxu0
      %v1548 = vpop.f32.mrb[0].mxu0
      %1549 = vdwg.mxu0
      %v1550 = vadd.f32 %v1391, %v1545
      %1551 = vrot.lane.b32.xlu0 %v1221, 112
      %v1552 = vpop.permute.xlu0 %1551
      %1553 = vrot.lane.b32.xlu0 %v1221, 80
      %v1554 = vpop.permute.xlu0 %1553
      %v1556 = vsel %vm1232, %v1552, 0
      %v1559 = vsel %vm1232, %v1554, 0
      %1561 = vmatprep.subr.bf16.mxu0 0
      %1562 = vmatpush1.bf16.xpose.msra.mxu0 %v1559
      %1563 = vmatprep.subr.bf16.mxu0 0
      %1564 = vmatpush1.bf16.xpose.msra.mxu0 0
      %1565 = vmatprep.subr.bf16.mxu0 0
      %1566 = vmatpush1.bf16.xpose.msra.mxu0 0
      %1567 = vmatprep.subr.bf16.mxu0 0
      %1568 = vmatpush1.bf16.xpose.msra.mxu0 0
      %1569 = vmatprep.subr.bf16.mxu0 0
      %1570 = vmatpush1.bf16.xpose.msra.mxu0 0
      %1571 = vmatprep.subr.bf16.mxu0 0
      %1572 = vmatpush1.bf16.xpose.msra.mxu0 0
      %1573 = vmatprep.subr.bf16.mxu0 0
      %1574 = vmatpush1.bf16.xpose.msra.mxu0 0
      %1575 = vmatprep.subr.bf16.mxu0 0
      %1576 = vmatpush1.bf16.xpose.msra.mxu0 0
      %1577 = vmatprep.subr.bf16.mxu0 0
      %1578 = vmatpush1.bf16.xpose.msra.mxu0 0
      %1579 = vmatprep.subr.bf16.mxu0 0
      %1580 = vmatpush1.bf16.xpose.msra.mxu0 0
      %1581 = vmatprep.subr.bf16.mxu0 0
      %1582 = vmatpush1.bf16.xpose.msra.mxu0 0
      %1583 = vmatprep.subr.bf16.mxu0 0
      %1584 = vmatpush1.bf16.xpose.msra.mxu0 0
      %1585 = vmatprep.subr.bf16.mxu0 0
      %1586 = vmatpush1.bf16.xpose.msra.mxu0 0
      %1587 = vmatprep.subr.bf16.mxu0 0
      %1588 = vmatpush1.bf16.xpose.msra.mxu0 0
      %1589 = vmatprep.subr.bf16.mxu0 0
      %1590 = vmatpush1.bf16.xpose.msra.mxu0 0
      %1591 = vmatprep.subr.bf16.mxu0 0
      %1592 = vmatpush1.bf16.xpose.msra.mxu0 0
      %1593 = vmatprep.mubr.bf16.mxu0 0
      %1594 = vmatmul.mubr.bf16.gmra.mrb[0].mxu0 %v1556
      %v1595 = vpop.f32.mrb[0].mxu0
      %v1596 = vadd.f32 0.0, %v1595
      %v1597 = vpop.f32.mrb[0].mxu0
      %v1598 = vpop.f32.mrb[0].mxu0
      %v1599 = vpop.f32.mrb[0].mxu0
      %1600 = vdwg.mxu0
      %v1601 = vmul.f32 %v1596, 0.35355338
      %v1602 = vsel %vm1280, %v1601, -inf
      %1603 = vmax.xlane.f32.xlu0 %v1602
      %v1604 = vpop.xlane.xlu0 %1603
      %v1605 = vsub.f32 %v1601, %v1604
      %v1606 = vmul.f32 %v1605, 1.442695
      %v1607 = vpow.pop %v1606
      %v1608 = vsel %vm1280, %v1607, 0.0
      %1609 = vadd.xlane.f32.xlu0 %v1608
      %v1610 = vpop.xlane.xlu0 %1609
      %v1611 = vrcp.pop %v1610
      %v1612 = vmul.f32 %v1607, %v1611
      %v1613 = vpack.c.bf16 %v1612, %v1612
      %1614 = vrot.lane.b32.xlu0 %v1221, 48
      %v1615 = vpop.permute.xlu0 %1614
      %v1617 = vsel %vm1295, %v1613, 0
      %v1620 = vsel %vm1299, %v1615, 0
      %1622 = vmatprep.subr.bf16.mxu0 0
      %1623 = vmatpush1.bf16.msra.mxu0 %v1620
      %1624 = vmatprep.subr.bf16.mxu0 0
      %1625 = vmatpush1.bf16.msra.mxu0 0
      %1626 = vmatprep.subr.bf16.mxu0 0
      %1627 = vmatpush1.bf16.msra.mxu0 0
      %1628 = vmatprep.subr.bf16.mxu0 0
      %1629 = vmatpush1.bf16.msra.mxu0 0
      %1630 = vmatprep.subr.bf16.mxu0 0
      %1631 = vmatpush1.bf16.msra.mxu0 0
      %1632 = vmatprep.subr.bf16.mxu0 0
      %1633 = vmatpush1.bf16.msra.mxu0 0
      %1634 = vmatprep.subr.bf16.mxu0 0
      %1635 = vmatpush1.bf16.msra.mxu0 0
      %1636 = vmatprep.subr.bf16.mxu0 0
      %1637 = vmatpush1.bf16.msra.mxu0 0
      %1638 = vmatprep.subr.bf16.mxu0 0
      %1639 = vmatpush1.bf16.msra.mxu0 0
      %1640 = vmatprep.subr.bf16.mxu0 0
      %1641 = vmatpush1.bf16.msra.mxu0 0
      %1642 = vmatprep.subr.bf16.mxu0 0
      %1643 = vmatpush1.bf16.msra.mxu0 0
      %1644 = vmatprep.subr.bf16.mxu0 0
      %1645 = vmatpush1.bf16.msra.mxu0 0
      %1646 = vmatprep.subr.bf16.mxu0 0
      %1647 = vmatpush1.bf16.msra.mxu0 0
      %1648 = vmatprep.subr.bf16.mxu0 0
      %1649 = vmatpush1.bf16.msra.mxu0 0
      %1650 = vmatprep.subr.bf16.mxu0 0
      %1651 = vmatpush1.bf16.msra.mxu0 0
      %1652 = vmatprep.subr.bf16.mxu0 0
      %1653 = vmatpush1.bf16.msra.mxu0 0
      %1654 = vmatprep.mubr.bf16.mxu0 0
      %1655 = vmatmul.mubr.bf16.gmra.mrb[0].mxu0 %v1617
      %v1656 = vpop.f32.mrb[0].mxu0
      %v1657 = vadd.f32 0.0, %v1656
      %v1658 = vpop.f32.mrb[0].mxu0
      %v1659 = vpop.f32.mrb[0].mxu0
      %v1660 = vpop.f32.mrb[0].mxu0
      %1661 = vdwg.mxu0
      %v1662 = vpack.c.bf16 %v1657, %v1657
      %v1664 = vsel %vm1232, %v1662, 0
      %v1667 = vsel %vm1347, %v1218, 0
      %1669 = vmatprep.subr.bf16.mxu0 0
      %1670 = vmatpush1.bf16.msra.mxu0 %v1667
      %1671 = vmatprep.subr.bf16.mxu0 0
      %1672 = vmatpush1.bf16.msra.mxu0 0
      %1673 = vmatprep.subr.bf16.mxu0 0
      %1674 = vmatpush1.bf16.msra.mxu0 0
      %1675 = vmatprep.subr.bf16.mxu0 0
      %1676 = vmatpush1.bf16.msra.mxu0 0
      %1677 = vmatprep.subr.bf16.mxu0 0
      %1678 = vmatpush1.bf16.msra.mxu0 0
      %1679 = vmatprep.subr.bf16.mxu0 0
      %1680 = vmatpush1.bf16.msra.mxu0 0
      %1681 = vmatprep.subr.bf16.mxu0 0
      %1682 = vmatpush1.bf16.msra.mxu0 0
      %1683 = vmatprep.subr.bf16.mxu0 0
      %1684 = vmatpush1.bf16.msra.mxu0 0
      %1685 = vmatprep.subr.bf16.mxu0 0
      %1686 = vmatpush1.bf16.msra.mxu0 0
      %1687 = vmatprep.subr.bf16.mxu0 0
      %1688 = vmatpush1.bf16.msra.mxu0 0
      %1689 = vmatprep.subr.bf16.mxu0 0
      %1690 = vmatpush1.bf16.msra.mxu0 0
      %1691 = vmatprep.subr.bf16.mxu0 0
      %1692 = vmatpush1.bf16.msra.mxu0 0
      %1693 = vmatprep.subr.bf16.mxu0 0
      %1694 = vmatpush1.bf16.msra.mxu0 0
      %1695 = vmatprep.subr.bf16.mxu0 0
      %1696 = vmatpush1.bf16.msra.mxu0 0
      %1697 = vmatprep.subr.bf16.mxu0 0
      %1698 = vmatpush1.bf16.msra.mxu0 0
      %1699 = vmatprep.subr.bf16.mxu0 0
      %1700 = vmatpush1.bf16.msra.mxu0 0
      %1701 = vmatprep.mubr.bf16.mxu0 0
      %1702 = vmatmul.mubr.bf16.gmra.mrb[0].mxu0 %v1664
      %v1703 = vpop.f32.mrb[0].mxu0
      %v1704 = vadd.f32 0.0, %v1703
      %v1705 = vpop.f32.mrb[0].mxu0
      %v1706 = vpop.f32.mrb[0].mxu0
      %v1707 = vpop.f32.mrb[0].mxu0
      %1708 = vdwg.mxu0
      %v1709 = vadd.f32 %v1550, %v1704
      %1710 = vrot.lane.b32.xlu0 %v1221, 104
      %v1711 = vpop.permute.xlu0 %1710
      %1712 = vrot.lane.b32.xlu0 %v1221, 72
      %v1713 = vpop.permute.xlu0 %1712
      %v1715 = vsel %vm1232, %v1711, 0
      %v1718 = vsel %vm1232, %v1713, 0
      %1720 = vmatprep.subr.bf16.mxu0 0
      %1721 = vmatpush1.bf16.xpose.msra.mxu0 %v1718
      %1722 = vmatprep.subr.bf16.mxu0 0
      %1723 = vmatpush1.bf16.xpose.msra.mxu0 0
      %1724 = vmatprep.subr.bf16.mxu0 0
      %1725 = vmatpush1.bf16.xpose.msra.mxu0 0
      %1726 = vmatprep.subr.bf16.mxu0 0
      %1727 = vmatpush1.bf16.xpose.msra.mxu0 0
      %1728 = vmatprep.subr.bf16.mxu0 0
      %1729 = vmatpush1.bf16.xpose.msra.mxu0 0
      %1730 = vmatprep.subr.bf16.mxu0 0
      %1731 = vmatpush1.bf16.xpose.msra.mxu0 0
      %1732 = vmatprep.subr.bf16.mxu0 0
      %1733 = vmatpush1.bf16.xpose.msra.mxu0 0
      %1734 = vmatprep.subr.bf16.mxu0 0
      %1735 = vmatpush1.bf16.xpose.msra.mxu0 0
      %1736 = vmatprep.subr.bf16.mxu0 0
      %1737 = vmatpush1.bf16.xpose.msra.mxu0 0
      %1738 = vmatprep.subr.bf16.mxu0 0
      %1739 = vmatpush1.bf16.xpose.msra.mxu0 0
      %1740 = vmatprep.subr.bf16.mxu0 0
      %1741 = vmatpush1.bf16.xpose.msra.mxu0 0
      %1742 = vmatprep.subr.bf16.mxu0 0
      %1743 = vmatpush1.bf16.xpose.msra.mxu0 0
      %1744 = vmatprep.subr.bf16.mxu0 0
      %1745 = vmatpush1.bf16.xpose.msra.mxu0 0
      %1746 = vmatprep.subr.bf16.mxu0 0
      %1747 = vmatpush1.bf16.xpose.msra.mxu0 0
      %1748 = vmatprep.subr.bf16.mxu0 0
      %1749 = vmatpush1.bf16.xpose.msra.mxu0 0
      %1750 = vmatprep.subr.bf16.mxu0 0
      %1751 = vmatpush1.bf16.xpose.msra.mxu0 0
      %1752 = vmatprep.mubr.bf16.mxu0 0
      %1753 = vmatmul.mubr.bf16.gmra.mrb[0].mxu0 %v1715
      %v1754 = vpop.f32.mrb[0].mxu0
      %v1755 = vadd.f32 0.0, %v1754
      %v1756 = vpop.f32.mrb[0].mxu0
      %v1757 = vpop.f32.mrb[0].mxu0
      %v1758 = vpop.f32.mrb[0].mxu0
      %1759 = vdwg.mxu0
      %v1760 = vmul.f32 %v1755, 0.35355338
      %v1761 = vsel %vm1280, %v1760, -inf
      %1762 = vmax.xlane.f32.xlu0 %v1761
      %v1763 = vpop.xlane.xlu0 %1762
      %v1764 = vsub.f32 %v1760, %v1763
      %v1765 = vmul.f32 %v1764, 1.442695
      %v1766 = vpow.pop %v1765
      %v1767 = vsel %vm1280, %v1766, 0.0
      %1768 = vadd.xlane.f32.xlu0 %v1767
      %v1769 = vpop.xlane.xlu0 %1768
      %v1770 = vrcp.pop %v1769
      %v1771 = vmul.f32 %v1766, %v1770
      %v1772 = vpack.c.bf16 %v1771, %v1771
      %1773 = vrot.lane.b32.xlu0 %v1221, 40
      %v1774 = vpop.permute.xlu0 %1773
      %v1776 = vsel %vm1295, %v1772, 0
      %v1779 = vsel %vm1299, %v1774, 0
      %1781 = vmatprep.subr.bf16.mxu0 0
      %1782 = vmatpush1.bf16.msra.mxu0 %v1779
      %1783 = vmatprep.subr.bf16.mxu0 0
      %1784 = vmatpush1.bf16.msra.mxu0 0
      %1785 = vmatprep.subr.bf16.mxu0 0
      %1786 = vmatpush1.bf16.msra.mxu0 0
      %1787 = vmatprep.subr.bf16.mxu0 0
      %1788 = vmatpush1.bf16.msra.mxu0 0
      %1789 = vmatprep.subr.bf16.mxu0 0
      %1790 = vmatpush1.bf16.msra.mxu0 0
      %1791 = vmatprep.subr.bf16.mxu0 0
      %1792 = vmatpush1.bf16.msra.mxu0 0
      %1793 = vmatprep.subr.bf16.mxu0 0
      %1794 = vmatpush1.bf16.msra.mxu0 0
      %1795 = vmatprep.subr.bf16.mxu0 0
      %1796 = vmatpush1.bf16.msra.mxu0 0
      %1797 = vmatprep.subr.bf16.mxu0 0
      %1798 = vmatpush1.bf16.msra.mxu0 0
      %1799 = vmatprep.subr.bf16.mxu0 0
      %1800 = vmatpush1.bf16.msra.mxu0 0
      %1801 = vmatprep.subr.bf16.mxu0 0
      %1802 = vmatpush1.bf16.msra.mxu0 0
      %1803 = vmatprep.subr.bf16.mxu0 0
      %1804 = vmatpush1.bf16.msra.mxu0 0
      %1805 = vmatprep.subr.bf16.mxu0 0
      %1806 = vmatpush1.bf16.msra.mxu0 0
      %1807 = vmatprep.subr.bf16.mxu0 0
      %1808 = vmatpush1.bf16.msra.mxu0 0
      %1809 = vmatprep.subr.bf16.mxu0 0
      %1810 = vmatpush1.bf16.msra.mxu0 0
      %1811 = vmatprep.subr.bf16.mxu0 0
      %1812 = vmatpush1.bf16.msra.mxu0 0
      %1813 = vmatprep.mubr.bf16.mxu0 0
      %1814 = vmatmul.mubr.bf16.gmra.mrb[0].mxu0 %v1776
      %v1815 = vpop.f32.mrb[0].mxu0
      %v1816 = vadd.f32 0.0, %v1815
      %v1817 = vpop.f32.mrb[0].mxu0
      %v1818 = vpop.f32.mrb[0].mxu0
      %v1819 = vpop.f32.mrb[0].mxu0
      %1820 = vdwg.mxu0
      %v1821 = vpack.c.bf16 %v1816, %v1816
      %v1823 = vsel %vm1232, %v1821, 0
      %v1826 = vsel %vm1347, %v1219, 0
      %1828 = vmatprep.subr.bf16.mxu0 0
      %1829 = vmatpush1.bf16.msra.mxu0 %v1826
      %1830 = vmatprep.subr.bf16.mxu0 0
      %1831 = vmatpush1.bf16.msra.mxu0 0
      %1832 = vmatprep.subr.bf16.mxu0 0
      %1833 = vmatpush1.bf16.msra.mxu0 0
      %1834 = vmatprep.subr.bf16.mxu0 0
      %1835 = vmatpush1.bf16.msra.mxu0 0
      %1836 = vmatprep.subr.bf16.mxu0 0
      %1837 = vmatpush1.bf16.msra.mxu0 0
      %1838 = vmatprep.subr.bf16.mxu0 0
      %1839 = vmatpush1.bf16.msra.mxu0 0
      %1840 = vmatprep.subr.bf16.mxu0 0
      %1841 = vmatpush1.bf16.msra.mxu0 0
      %1842 = vmatprep.subr.bf16.mxu0 0
      %1843 = vmatpush1.bf16.msra.mxu0 0
      %1844 = vmatprep.subr.bf16.mxu0 0
      %1845 = vmatpush1.bf16.msra.mxu0 0
      %1846 = vmatprep.subr.bf16.mxu0 0
      %1847 = vmatpush1.bf16.msra.mxu0 0
      %1848 = vmatprep.subr.bf16.mxu0 0
      %1849 = vmatpush1.bf16.msra.mxu0 0
      %1850 = vmatprep.subr.bf16.mxu0 0
      %1851 = vmatpush1.bf16.msra.mxu0 0
      %1852 = vmatprep.subr.bf16.mxu0 0
      %1853 = vmatpush1.bf16.msra.mxu0 0
      %1854 = vmatprep.subr.bf16.mxu0 0
      %1855 = vmatpush1.bf16.msra.mxu0 0
      %1856 = vmatprep.subr.bf16.mxu0 0
      %1857 = vmatpush1.bf16.msra.mxu0 0
      %1858 = vmatprep.subr.bf16.mxu0 0
      %1859 = vmatpush1.bf16.msra.mxu0 0
      %1860 = vmatprep.mubr.bf16.mxu0 0
      %1861 = vmatmul.mubr.bf16.gmra.mrb[0].mxu0 %v1823
      %v1862 = vpop.f32.mrb[0].mxu0
      %v1863 = vadd.f32 0.0, %v1862
      %v1864 = vpop.f32.mrb[0].mxu0
      %v1865 = vpop.f32.mrb[0].mxu0
      %v1866 = vpop.f32.mrb[0].mxu0
      %1867 = vdwg.mxu0
      %v1868 = vadd.f32 %v1709, %v1863
      %v1869 = vadd.f32 %v1146, %v1868
      %v1870 = vld [vmem:[%s1078] sm:$0x1]
      %v1871 = vld [vmem:[%s1081] sm:$0x1]
      %vm1872 = vcmask 259072
      %v1873 = vsel %vm1872, %v1869, 0.0
      %1874 = vadd.xlane.f32.xlu0 %v1873
      %v1875 = vpop.xlane.xlu0 %1874
      %v1876 = vrcp.pop 32.0
      %v1877 = vmul.f32 %v1875, %v1876
      %v1878 = vsub.f32 %v1869, %v1877
      %v1879 = vmul.f32 %v1878, %v1878
      %v1880 = vsel %vm1872, %v1879, 0.0
      %1881 = vadd.xlane.f32.xlu0 %v1880
      %v1882 = vpop.xlane.xlu0 %1881
      %v1883 = vmul.f32 %v1882, %v1876
      %v1884 = vadd.f32 %v1883, 1e-05
      %v1885 = vrsqrt.pop %v1884
      %v1886 = vmul.f32 %v1878, %v1885
      %v1888 = vlaneseq
      %v1889 = vshrl.u32 %v1888, 7
      %v1890 = vsub.s32 0, %v1889
      %v1891 = vrot.slane %v1870, %v1890
      %v1893 = vmul.f32 %v1886, %v1891
      %v1895 = vlaneseq
      %v1896 = vshrl.u32 %v1895, 7
      %v1897 = vsub.s32 0, %v1896
      %v1898 = vrot.slane %v1871, %v1897
      %v1900 = vadd.f32 %v1893, %v1898
      %v1901 = vld [vmem:[%s1086] sm:$0xf]
      %v1902 = vld [vmem:[%s1086 + $0x4] sm:$0xf]
      %v1903 = vld [vmem:[%s1086 + $0x8] sm:$0xf]
      %v1904 = vld [vmem:[%s1086 + $0xc] sm:$0xf]
      %v1905 = vld [vmem:[%s1089] sm:$0x1]
      %v1906 = vpack.c.bf16 %v1900, %v1900
      %v1908 = vlaneseq
      %v1909 = vshrl.u32 %v1908, 7
      %v1910 = vsub.s32 0, %v1909
      %v1911 = vrot.slane %v1905, %v1910
      %v1917 = vunpack.c.l.b16 %v1901
      %v1918 = vunpack.c.l.b16 %v1902
      %v1919 = vunpack.c.l.b16 %v1903
      %v1920 = vunpack.c.l.b16 %v1904
      %v1921 = vpack.c.b16 %v1918, %v1917
      %v1922 = vpack.c.b16 %v1920, %v1919
      %v1926 = vsel %vm1172, %v1906, 0
      %1928 = vmatprep.subr.bf16.mxu0 0
      %1929 = vmatpush1.bf16.msra.mxu0 %v1921
      %1930 = vmatprep.subr.bf16.mxu0 0
      %1931 = vmatpush1.bf16.msra.mxu0 %v1922
      %1932 = vmatprep.subr.bf16.mxu0 0
      %1933 = vmatpush1.bf16.msra.mxu0 0
      %1934 = vmatprep.subr.bf16.mxu0 0
      %1935 = vmatpush1.bf16.msra.mxu0 0
      %1936 = vmatprep.subr.bf16.mxu0 0
      %1937 = vmatpush1.bf16.msra.mxu0 0
      %1938 = vmatprep.subr.bf16.mxu0 0
      %1939 = vmatpush1.bf16.msra.mxu0 0
      %1940 = vmatprep.subr.bf16.mxu0 0
      %1941 = vmatpush1.bf16.msra.mxu0 0
      %1942 = vmatprep.subr.bf16.mxu0 0
      %1943 = vmatpush1.bf16.msra.mxu0 0
      %1944 = vmatprep.subr.bf16.mxu0 0
      %1945 = vmatpush1.bf16.msra.mxu0 0
      %1946 = vmatprep.subr.bf16.mxu0 0
      %1947 = vmatpush1.bf16.msra.mxu0 0
      %1948 = vmatprep.subr.bf16.mxu0 0
      %1949 = vmatpush1.bf16.msra.mxu0 0
      %1950 = vmatprep.subr.bf16.mxu0 0
      %1951 = vmatpush1.bf16.msra.mxu0 0
      %1952 = vmatprep.subr.bf16.mxu0 0
      %1953 = vmatpush1.bf16.msra.mxu0 0
      %1954 = vmatprep.subr.bf16.mxu0 0
      %1955 = vmatpush1.bf16.msra.mxu0 0
      %1956 = vmatprep.subr.bf16.mxu0 0
      %1957 = vmatpush1.bf16.msra.mxu0 0
      %1958 = vmatprep.subr.bf16.mxu0 0
      %1959 = vmatpush1.bf16.msra.mxu0 0
      %1960 = vmatprep.mubr.bf16.mxu0 0
      %1961 = vmatmul.mubr.bf16.gmra.mrb[0].mxu0 %v1926
      %v1962 = vpop.f32.mrb[0].mxu0
      %v1963 = vadd.f32 %v1911, %v1962
      %v1964 = vpop.f32.mrb[0].mxu0
      %v1965 = vpop.f32.mrb[0].mxu0
      %v1966 = vpop.f32.mrb[0].mxu0
      %1967 = vdwg.mxu0
      %v1968 = vld [vmem:[%s1094] sm:$0xf]
      %v1969 = vld [vmem:[%s1094 + $0x4] sm:$0xf]
      %v1970 = vld [vmem:[%s1094 + $0x8] sm:$0xf]
      %v1971 = vld [vmem:[%s1094 + $0xc] sm:$0xf]
      %v1972 = vld [vmem:[%s1097] sm:$0x1]
      %v1973 = vpack.c.bf16 %v1147, %v1147
      %v1975 = vlaneseq
      %v1976 = vshrl.u32 %v1975, 7
      %v1977 = vsub.s32 0, %v1976
      %v1978 = vrot.slane %v1972, %v1977
      %v1984 = vunpack.c.l.b16 %v1968
      %v1985 = vunpack.c.l.b16 %v1969
      %v1986 = vunpack.c.l.b16 %v1970
      %v1987 = vunpack.c.l.b16 %v1971
      %v1988 = vpack.c.b16 %v1985, %v1984
      %v1989 = vpack.c.b16 %v1987, %v1986
      %v1993 = vsel %vm1172, %v1973, 0
      %1995 = vmatprep.subr.bf16.mxu0 0
      %1996 = vmatpush1.bf16.msra.mxu0 %v1988
      %1997 = vmatprep.subr.bf16.mxu0 0
      %1998 = vmatpush1.bf16.msra.mxu0 %v1989
      %1999 = vmatprep.subr.bf16.mxu0 0
      %2000 = vmatpush1.bf16.msra.mxu0 0
      %2001 = vmatprep.subr.bf16.mxu0 0
      %2002 = vmatpush1.bf16.msra.mxu0 0
      %2003 = vmatprep.subr.bf16.mxu0 0
      %2004 = vmatpush1.bf16.msra.mxu0 0
      %2005 = vmatprep.subr.bf16.mxu0 0
      %2006 = vmatpush1.bf16.msra.mxu0 0
      %2007 = vmatprep.subr.bf16.mxu0 0
      %2008 = vmatpush1.bf16.msra.mxu0 0
      %2009 = vmatprep.subr.bf16.mxu0 0
      %2010 = vmatpush1.bf16.msra.mxu0 0
      %2011 = vmatprep.subr.bf16.mxu0 0
      %2012 = vmatpush1.bf16.msra.mxu0 0
      %2013 = vmatprep.subr.bf16.mxu0 0
      %2014 = vmatpush1.bf16.msra.mxu0 0
      %2015 = vmatprep.subr.bf16.mxu0 0
      %2016 = vmatpush1.bf16.msra.mxu0 0
      %2017 = vmatprep.subr.bf16.mxu0 0
      %2018 = vmatpush1.bf16.msra.mxu0 0
      %2019 = vmatprep.subr.bf16.mxu0 0
      %2020 = vmatpush1.bf16.msra.mxu0 0
      %2021 = vmatprep.subr.bf16.mxu0 0
      %2022 = vmatpush1.bf16.msra.mxu0 0
      %2023 = vmatprep.subr.bf16.mxu0 0
      %2024 = vmatpush1.bf16.msra.mxu0 0
      %2025 = vmatprep.subr.bf16.mxu0 0
      %2026 = vmatpush1.bf16.msra.mxu0 0
      %2027 = vmatprep.mubr.bf16.mxu0 0
      %2028 = vmatmul.mubr.bf16.gmra.mrb[0].mxu0 %v1993
      %v2029 = vpop.f32.mrb[0].mxu0
      %v2030 = vadd.f32 %v1978, %v2029
      %v2031 = vpop.f32.mrb[0].mxu0
      %v2032 = vpop.f32.mrb[0].mxu0
      %v2033 = vpop.f32.mrb[0].mxu0
      %2034 = vdwg.mxu0
      %v2035 = vld [vmem:[%s1102] sm:$0xf]
      %v2036 = vld [vmem:[%s1102 + $0x4] sm:$0xf]
      %v2037 = vld [vmem:[%s1102 + $0x8] sm:$0xf]
      %v2038 = vld [vmem:[%s1102 + $0xc] sm:$0xf]
      %v2039 = vld [vmem:[%s1105] sm:$0x1]
      %v2040 = vpack.c.bf16 %v1963, %v1963
      %v2041 = vpack.c.bf16 %v2030, %v2030
      %v2043 = vlaneseq
      %v2044 = vshrl.u32 %v2043, 7
      %v2045 = vsub.s32 0, %v2044
      %v2046 = vrot.slane %v2039, %v2045
      %v2048 = vadd.f32 %v2046, 0.0
      %v2050 = vsel %vm1232, %v2040, 0
      %v2053 = vsel %vm1232, %v2041, 0
      %2055 = vmatprep.subr.bf16.mxu0 0
      %2056 = vmatpush1.bf16.xpose.msra.mxu0 %v2053
      %2057 = vmatprep.subr.bf16.mxu0 0
      %2058 = vmatpush1.bf16.xpose.msra.mxu0 0
      %2059 = vmatprep.subr.bf16.mxu0 0
      %2060 = vmatpush1.bf16.xpose.msra.mxu0 0
      %2061 = vmatprep.subr.bf16.mxu0 0
      %2062 = vmatpush1.bf16.xpose.msra.mxu0 0
      %2063 = vmatprep.subr.bf16.mxu0 0
      %2064 = vmatpush1.bf16.xpose.msra.mxu0 0
      %2065 = vmatprep.subr.bf16.mxu0 0
      %2066 = vmatpush1.bf16.xpose.msra.mxu0 0
      %2067 = vmatprep.subr.bf16.mxu0 0
      %2068 = vmatpush1.bf16.xpose.msra.mxu0 0
      %2069 = vmatprep.subr.bf16.mxu0 0
      %2070 = vmatpush1.bf16.xpose.msra.mxu0 0
      %2071 = vmatprep.subr.bf16.mxu0 0
      %2072 = vmatpush1.bf16.xpose.msra.mxu0 0
      %2073 = vmatprep.subr.bf16.mxu0 0
      %2074 = vmatpush1.bf16.xpose.msra.mxu0 0
      %2075 = vmatprep.subr.bf16.mxu0 0
      %2076 = vmatpush1.bf16.xpose.msra.mxu0 0
      %2077 = vmatprep.subr.bf16.mxu0 0
      %2078 = vmatpush1.bf16.xpose.msra.mxu0 0
      %2079 = vmatprep.subr.bf16.mxu0 0
      %2080 = vmatpush1.bf16.xpose.msra.mxu0 0
      %2081 = vmatprep.subr.bf16.mxu0 0
      %2082 = vmatpush1.bf16.xpose.msra.mxu0 0
      %2083 = vmatprep.subr.bf16.mxu0 0
      %2084 = vmatpush1.bf16.xpose.msra.mxu0 0
      %2085 = vmatprep.subr.bf16.mxu0 0
      %2086 = vmatpush1.bf16.xpose.msra.mxu0 0
      %2087 = vmatprep.mubr.bf16.mxu0 0
      %2088 = vmatmul.mubr.bf16.gmra.mrb[0].mxu0 %v2050
      %v2089 = vpop.f32.mrb[0].mxu0
      %v2090 = vadd.f32 0.0, %v2089
      %v2091 = vpop.f32.mrb[0].mxu0
      %v2092 = vpop.f32.mrb[0].mxu0
      %v2093 = vpop.f32.mrb[0].mxu0
      %2094 = vdwg.mxu0
      %v2095 = vmul.f32 %v2090, 0.35355338
      %vm2096 = vcmask 62464
      %v2097 = vsel %vm2096, %v2095, -inf
      %2098 = vmax.xlane.f32.xlu0 %v2097
      %v2099 = vpop.xlane.xlu0 %2098
      %v2100 = vsub.f32 %v2095, %v2099
      %v2101 = vmul.f32 %v2100, 1.442695
      %v2102 = vpow.pop %v2101
      %v2103 = vsel %vm2096, %v2102, 0.0
      %2104 = vadd.xlane.f32.xlu0 %v2103
      %v2105 = vpop.xlane.xlu0 %2104
      %v2106 = vrcp.pop %v2105
      %v2107 = vmul.f32 %v2102, %v2106
      %v2108 = vpack.c.bf16 %v2107, %v2107
      %2110 = vrot.lane.b32.xlu0 %v2041, 96
      %v2111 = vpop.permute.xlu0 %2110
      %v2113 = vsel %vm1232, %v2108, 0
      %v2116 = vsel %vm1347, %v2111, 0
      %2118 = vmatprep.subr.bf16.mxu0 0
      %2119 = vmatpush1.bf16.msra.mxu0 %v2116
      %2120 = vmatprep.subr.bf16.mxu0 0
      %2121 = vmatpush1.bf16.msra.mxu0 0
      %2122 = vmatprep.subr.bf16.mxu0 0
      %2123 = vmatpush1.bf16.msra.mxu0 0
      %2124 = vmatprep.subr.bf16.mxu0 0
      %2125 = vmatpush1.bf16.msra.mxu0 0
      %2126 = vmatprep.subr.bf16.mxu0 0
      %2127 = vmatpush1.bf16.msra.mxu0 0
      %2128 = vmatprep.subr.bf16.mxu0 0
      %2129 = vmatpush1.bf16.msra.mxu0 0
      %2130 = vmatprep.subr.bf16.mxu0 0
      %2131 = vmatpush1.bf16.msra.mxu0 0
      %2132 = vmatprep.subr.bf16.mxu0 0
      %2133 = vmatpush1.bf16.msra.mxu0 0
      %2134 = vmatprep.subr.bf16.mxu0 0
      %2135 = vmatpush1.bf16.msra.mxu0 0
      %2136 = vmatprep.subr.bf16.mxu0 0
      %2137 = vmatpush1.bf16.msra.mxu0 0
      %2138 = vmatprep.subr.bf16.mxu0 0
      %2139 = vmatpush1.bf16.msra.mxu0 0
      %2140 = vmatprep.subr.bf16.mxu0 0
      %2141 = vmatpush1.bf16.msra.mxu0 0
      %2142 = vmatprep.subr.bf16.mxu0 0
      %2143 = vmatpush1.bf16.msra.mxu0 0
      %2144 = vmatprep.subr.bf16.mxu0 0
      %2145 = vmatpush1.bf16.msra.mxu0 0
      %2146 = vmatprep.subr.bf16.mxu0 0
      %2147 = vmatpush1.bf16.msra.mxu0 0
      %2148 = vmatprep.subr.bf16.mxu0 0
      %2149 = vmatpush1.bf16.msra.mxu0 0
      %2150 = vmatprep.mubr.bf16.mxu0 0
      %2151 = vmatmul.mubr.bf16.gmra.mrb[0].mxu0 %v2113
      %v2152 = vpop.f32.mrb[0].mxu0
      %v2153 = vadd.f32 0.0, %v2152
      %v2154 = vpop.f32.mrb[0].mxu0
      %v2155 = vpop.f32.mrb[0].mxu0
      %v2156 = vpop.f32.mrb[0].mxu0
      %2157 = vdwg.mxu0
      %v2158 = vpack.c.bf16 %v2153, %v2153
      %v2160 = vsel %vm1232, %v2158, 0
      %v2163 = vsel %vm1347, %v2035, 0
      %2165 = vmatprep.subr.bf16.mxu0 0
      %2166 = vmatpush1.bf16.msra.mxu0 %v2163
      %2167 = vmatprep.subr.bf16.mxu0 0
      %2168 = vmatpush1.bf16.msra.mxu0 0
      %2169 = vmatprep.subr.bf16.mxu0 0
      %2170 = vmatpush1.bf16.msra.mxu0 0
      %2171 = vmatprep.subr.bf16.mxu0 0
      %2172 = vmatpush1.bf16.msra.mxu0 0
      %2173 = vmatprep.subr.bf16.mxu0 0
      %2174 = vmatpush1.bf16.msra.mxu0 0
      %2175 = vmatprep.subr.bf16.mxu0 0
      %2176 = vmatpush1.bf16.msra.mxu0 0
      %2177 = vmatprep.subr.bf16.mxu0 0
      %2178 = vmatpush1.bf16.msra.mxu0 0
      %2179 = vmatprep.subr.bf16.mxu0 0
      %2180 = vmatpush1.bf16.msra.mxu0 0
      %2181 = vmatprep.subr.bf16.mxu0 0
      %2182 = vmatpush1.bf16.msra.mxu0 0
      %2183 = vmatprep.subr.bf16.mxu0 0
      %2184 = vmatpush1.bf16.msra.mxu0 0
      %2185 = vmatprep.subr.bf16.mxu0 0
      %2186 = vmatpush1.bf16.msra.mxu0 0
      %2187 = vmatprep.subr.bf16.mxu0 0
      %2188 = vmatpush1.bf16.msra.mxu0 0
      %2189 = vmatprep.subr.bf16.mxu0 0
      %2190 = vmatpush1.bf16.msra.mxu0 0
      %2191 = vmatprep.subr.bf16.mxu0 0
      %2192 = vmatpush1.bf16.msra.mxu0 0
      %2193 = vmatprep.subr.bf16.mxu0 0
      %2194 = vmatpush1.bf16.msra.mxu0 0
      %2195 = vmatprep.subr.bf16.mxu0 0
      %2196 = vmatpush1.bf16.msra.mxu0 0
      %2197 = vmatprep.mubr.bf16.mxu0 0
      %2198 = vmatmul.mubr.bf16.gmra.mrb[0].mxu0 %v2160
      %v2199 = vpop.f32.mrb[0].mxu0
      %v2200 = vadd.f32 0.0, %v2199
      %v2201 = vpop.f32.mrb[0].mxu0
      %v2202 = vpop.f32.mrb[0].mxu0
      %v2203 = vpop.f32.mrb[0].mxu0
      %2204 = vdwg.mxu0
      %v2205 = vadd.f32 %v2048, %v2200
      %2207 = vrot.lane.b32.xlu0 %v2040, 120
      %v2208 = vpop.permute.xlu0 %2207
      %2209 = vrot.lane.b32.xlu0 %v2041, 120
      %v2210 = vpop.permute.xlu0 %2209
      %v2212 = vsel %vm1232, %v2208, 0
      %v2215 = vsel %vm1232, %v2210, 0
      %2217 = vmatprep.subr.bf16.mxu0 0
      %2218 = vmatpush1.bf16.xpose.msra.mxu0 %v2215
      %2219 = vmatprep.subr.bf16.mxu0 0
      %2220 = vmatpush1.bf16.xpose.msra.mxu0 0
      %2221 = vmatprep.subr.bf16.mxu0 0
      %2222 = vmatpush1.bf16.xpose.msra.mxu0 0
      %2223 = vmatprep.subr.bf16.mxu0 0
      %2224 = vmatpush1.bf16.xpose.msra.mxu0 0
      %2225 = vmatprep.subr.bf16.mxu0 0
      %2226 = vmatpush1.bf16.xpose.msra.mxu0 0
      %2227 = vmatprep.subr.bf16.mxu0 0
      %2228 = vmatpush1.bf16.xpose.msra.mxu0 0
      %2229 = vmatprep.subr.bf16.mxu0 0
      %2230 = vmatpush1.bf16.xpose.msra.mxu0 0
      %2231 = vmatprep.subr.bf16.mxu0 0
      %2232 = vmatpush1.bf16.xpose.msra.mxu0 0
      %2233 = vmatprep.subr.bf16.mxu0 0
      %2234 = vmatpush1.bf16.xpose.msra.mxu0 0
      %2235 = vmatprep.subr.bf16.mxu0 0
      %2236 = vmatpush1.bf16.xpose.msra.mxu0 0
      %2237 = vmatprep.subr.bf16.mxu0 0
      %2238 = vmatpush1.bf16.xpose.msra.mxu0 0
      %2239 = vmatprep.subr.bf16.mxu0 0
      %2240 = vmatpush1.bf16.xpose.msra.mxu0 0
      %2241 = vmatprep.subr.bf16.mxu0 0
      %2242 = vmatpush1.bf16.xpose.msra.mxu0 0
      %2243 = vmatprep.subr.bf16.mxu0 0
      %2244 = vmatpush1.bf16.xpose.msra.mxu0 0
      %2245 = vmatprep.subr.bf16.mxu0 0
      %2246 = vmatpush1.bf16.xpose.msra.mxu0 0
      %2247 = vmatprep.subr.bf16.mxu0 0
      %2248 = vmatpush1.bf16.xpose.msra.mxu0 0
      %2249 = vmatprep.mubr.bf16.mxu0 0
      %2250 = vmatmul.mubr.bf16.gmra.mrb[0].mxu0 %v2212
      %v2251 = vpop.f32.mrb[0].mxu0
      %v2252 = vadd.f32 0.0, %v2251
      %v2253 = vpop.f32.mrb[0].mxu0
      %v2254 = vpop.f32.mrb[0].mxu0
      %v2255 = vpop.f32.mrb[0].mxu0
      %2256 = vdwg.mxu0
      %v2257 = vmul.f32 %v2252, 0.35355338
      %v2258 = vsel %vm2096, %v2257, -inf
      %2259 = vmax.xlane.f32.xlu0 %v2258
      %v2260 = vpop.xlane.xlu0 %2259
      %v2261 = vsub.f32 %v2257, %v2260
      %v2262 = vmul.f32 %v2261, 1.442695
      %v2263 = vpow.pop %v2262
      %v2264 = vsel %vm2096, %v2263, 0.0
      %2265 = vadd.xlane.f32.xlu0 %v2264
      %v2266 = vpop.xlane.xlu0 %2265
      %v2267 = vrcp.pop %v2266
      %v2268 = vmul.f32 %v2263, %v2267
      %v2269 = vpack.c.bf16 %v2268, %v2268
      %2270 = vrot.lane.b32.xlu0 %v2041, 88
      %v2271 = vpop.permute.xlu0 %2270
      %v2273 = vsel %vm1232, %v2269, 0
      %v2276 = vsel %vm1347, %v2271, 0
      %2278 = vmatprep.subr.bf16.mxu0 0
      %2279 = vmatpush1.bf16.msra.mxu0 %v2276
      %2280 = vmatprep.subr.bf16.mxu0 0
      %2281 = vmatpush1.bf16.msra.mxu0 0
      %2282 = vmatprep.subr.bf16.mxu0 0
      %2283 = vmatpush1.bf16.msra.mxu0 0
      %2284 = vmatprep.subr.bf16.mxu0 0
      %2285 = vmatpush1.bf16.msra.mxu0 0
      %2286 = vmatprep.subr.bf16.mxu0 0
      %2287 = vmatpush1.bf16.msra.mxu0 0
      %2288 = vmatprep.subr.bf16.mxu0 0
      %2289 = vmatpush1.bf16.msra.mxu0 0
      %2290 = vmatprep.subr.bf16.mxu0 0
      %2291 = vmatpush1.bf16.msra.mxu0 0
      %2292 = vmatprep.subr.bf16.mxu0 0
      %2293 = vmatpush1.bf16.msra.mxu0 0
      %2294 = vmatprep.subr.bf16.mxu0 0
      %2295 = vmatpush1.bf16.msra.mxu0 0
      %2296 = vmatprep.subr.bf16.mxu0 0
      %2297 = vmatpush1.bf16.msra.mxu0 0
      %2298 = vmatprep.subr.bf16.mxu0 0
      %2299 = vmatpush1.bf16.msra.mxu0 0
      %2300 = vmatprep.subr.bf16.mxu0 0
      %2301 = vmatpush1.bf16.msra.mxu0 0
      %2302 = vmatprep.subr.bf16.mxu0 0
      %2303 = vmatpush1.bf16.msra.mxu0 0
      %2304 = vmatprep.subr.bf16.mxu0 0
      %2305 = vmatpush1.bf16.msra.mxu0 0
      %2306 = vmatprep.subr.bf16.mxu0 0
      %2307 = vmatpush1.bf16.msra.mxu0 0
      %2308 = vmatprep.subr.bf16.mxu0 0
      %2309 = vmatpush1.bf16.msra.mxu0 0
      %2310 = vmatprep.mubr.bf16.mxu0 0
      %2311 = vmatmul.mubr.bf16.gmra.mrb[0].mxu0 %v2273
      %v2312 = vpop.f32.mrb[0].mxu0
      %v2313 = vadd.f32 0.0, %v2312
      %v2314 = vpop.f32.mrb[0].mxu0
      %v2315 = vpop.f32.mrb[0].mxu0
      %v2316 = vpop.f32.mrb[0].mxu0
      %2317 = vdwg.mxu0
      %v2318 = vpack.c.bf16 %v2313, %v2313
      %v2320 = vsel %vm1232, %v2318, 0
      %v2323 = vsel %vm1347, %v2036, 0
      %2325 = vmatprep.subr.bf16.mxu0 0
      %2326 = vmatpush1.bf16.msra.mxu0 %v2323
      %2327 = vmatprep.subr.bf16.mxu0 0
      %2328 = vmatpush1.bf16.msra.mxu0 0
      %2329 = vmatprep.subr.bf16.mxu0 0
      %2330 = vmatpush1.bf16.msra.mxu0 0
      %2331 = vmatprep.subr.bf16.mxu0 0
      %2332 = vmatpush1.bf16.msra.mxu0 0
      %2333 = vmatprep.subr.bf16.mxu0 0
      %2334 = vmatpush1.bf16.msra.mxu0 0
      %2335 = vmatprep.subr.bf16.mxu0 0
      %2336 = vmatpush1.bf16.msra.mxu0 0
      %2337 = vmatprep.subr.bf16.mxu0 0
      %2338 = vmatpush1.bf16.msra.mxu0 0
      %2339 = vmatprep.subr.bf16.mxu0 0
      %2340 = vmatpush1.bf16.msra.mxu0 0
      %2341 = vmatprep.subr.bf16.mxu0 0
      %2342 = vmatpush1.bf16.msra.mxu0 0
      %2343 = vmatprep.subr.bf16.mxu0 0
      %2344 = vmatpush1.bf16.msra.mxu0 0
      %2345 = vmatprep.subr.bf16.mxu0 0
      %2346 = vmatpush1.bf16.msra.mxu0 0
      %2347 = vmatprep.subr.bf16.mxu0 0
      %2348 = vmatpush1.bf16.msra.mxu0 0
      %2349 = vmatprep.subr.bf16.mxu0 0
      %2350 = vmatpush1.bf16.msra.mxu0 0
      %2351 = vmatprep.subr.bf16.mxu0 0
      %2352 = vmatpush1.bf16.msra.mxu0 0
      %2353 = vmatprep.subr.bf16.mxu0 0
      %2354 = vmatpush1.bf16.msra.mxu0 0
      %2355 = vmatprep.subr.bf16.mxu0 0
      %2356 = vmatpush1.bf16.msra.mxu0 0
      %2357 = vmatprep.mubr.bf16.mxu0 0
      %2358 = vmatmul.mubr.bf16.gmra.mrb[0].mxu0 %v2320
      %v2359 = vpop.f32.mrb[0].mxu0
      %v2360 = vadd.f32 0.0, %v2359
      %v2361 = vpop.f32.mrb[0].mxu0
      %v2362 = vpop.f32.mrb[0].mxu0
      %v2363 = vpop.f32.mrb[0].mxu0
      %2364 = vdwg.mxu0
      %v2365 = vadd.f32 %v2205, %v2360
      %2366 = vrot.lane.b32.xlu0 %v2040, 112
      %v2367 = vpop.permute.xlu0 %2366
      %2368 = vrot.lane.b32.xlu0 %v2041, 112
      %v2369 = vpop.permute.xlu0 %2368
      %v2371 = vsel %vm1232, %v2367, 0
      %v2374 = vsel %vm1232, %v2369, 0
      %2376 = vmatprep.subr.bf16.mxu0 0
      %2377 = vmatpush1.bf16.xpose.msra.mxu0 %v2374
      %2378 = vmatprep.subr.bf16.mxu0 0
      %2379 = vmatpush1.bf16.xpose.msra.mxu0 0
      %2380 = vmatprep.subr.bf16.mxu0 0
      %2381 = vmatpush1.bf16.xpose.msra.mxu0 0
      %2382 = vmatprep.subr.bf16.mxu0 0
      %2383 = vmatpush1.bf16.xpose.msra.mxu0 0
      %2384 = vmatprep.subr.bf16.mxu0 0
      %2385 = vmatpush1.bf16.xpose.msra.mxu0 0
      %2386 = vmatprep.subr.bf16.mxu0 0
      %2387 = vmatpush1.bf16.xpose.msra.mxu0 0
      %2388 = vmatprep.subr.bf16.mxu0 0
      %2389 = vmatpush1.bf16.xpose.msra.mxu0 0
      %2390 = vmatprep.subr.bf16.mxu0 0
      %2391 = vmatpush1.bf16.xpose.msra.mxu0 0
      %2392 = vmatprep.subr.bf16.mxu0 0
      %2393 = vmatpush1.bf16.xpose.msra.mxu0 0
      %2394 = vmatprep.subr.bf16.mxu0 0
      %2395 = vmatpush1.bf16.xpose.msra.mxu0 0
      %2396 = vmatprep.subr.bf16.mxu0 0
      %2397 = vmatpush1.bf16.xpose.msra.mxu0 0
      %2398 = vmatprep.subr.bf16.mxu0 0
      %2399 = vmatpush1.bf16.xpose.msra.mxu0 0
      %2400 = vmatprep.subr.bf16.mxu0 0
      %2401 = vmatpush1.bf16.xpose.msra.mxu0 0
      %2402 = vmatprep.subr.bf16.mxu0 0
      %2403 = vmatpush1.bf16.xpose.msra.mxu0 0
      %2404 = vmatprep.subr.bf16.mxu0 0
      %2405 = vmatpush1.bf16.xpose.msra.mxu0 0
      %2406 = vmatprep.subr.bf16.mxu0 0
      %2407 = vmatpush1.bf16.xpose.msra.mxu0 0
      %2408 = vmatprep.mubr.bf16.mxu0 0
      %2409 = vmatmul.mubr.bf16.gmra.mrb[0].mxu0 %v2371
      %v2410 = vpop.f32.mrb[0].mxu0
      %v2411 = vadd.f32 0.0, %v2410
      %v2412 = vpop.f32.mrb[0].mxu0
      %v2413 = vpop.f32.mrb[0].mxu0
      %v2414 = vpop.f32.mrb[0].mxu0
      %2415 = vdwg.mxu0
      %v2416 = vmul.f32 %v2411, 0.35355338
      %v2417 = vsel %vm2096, %v2416, -inf
      %2418 = vmax.xlane.f32.xlu0 %v2417
      %v2419 = vpop.xlane.xlu0 %2418
      %v2420 = vsub.f32 %v2416, %v2419
      %v2421 = vmul.f32 %v2420, 1.442695
      %v2422 = vpow.pop %v2421
      %v2423 = vsel %vm2096, %v2422, 0.0
      %2424 = vadd.xlane.f32.xlu0 %v2423
      %v2425 = vpop.xlane.xlu0 %2424
      %v2426 = vrcp.pop %v2425
      %v2427 = vmul.f32 %v2422, %v2426
      %v2428 = vpack.c.bf16 %v2427, %v2427
      %2429 = vrot.lane.b32.xlu0 %v2041, 80
      %v2430 = vpop.permute.xlu0 %2429
      %v2432 = vsel %vm1232, %v2428, 0
      %v2435 = vsel %vm1347, %v2430, 0
      %2437 = vmatprep.subr.bf16.mxu0 0
      %2438 = vmatpush1.bf16.msra.mxu0 %v2435
      %2439 = vmatprep.subr.bf16.mxu0 0
      %2440 = vmatpush1.bf16.msra.mxu0 0
      %2441 = vmatprep.subr.bf16.mxu0 0
      %2442 = vmatpush1.bf16.msra.mxu0 0
      %2443 = vmatprep.subr.bf16.mxu0 0
      %2444 = vmatpush1.bf16.msra.mxu0 0
      %2445 = vmatprep.subr.bf16.mxu0 0
      %2446 = vmatpush1.bf16.msra.mxu0 0
      %2447 = vmatprep.subr.bf16.mxu0 0
      %2448 = vmatpush1.bf16.msra.mxu0 0
      %2449 = vmatprep.subr.bf16.mxu0 0
      %2450 = vmatpush1.bf16.msra.mxu0 0
      %2451 = vmatprep.subr.bf16.mxu0 0
      %2452 = vmatpush1.bf16.msra.mxu0 0
      %2453 = vmatprep.subr.bf16.mxu0 0
      %2454 = vmatpush1.bf16.msra.mxu0 0
      %2455 = vmatprep.subr.bf16.mxu0 0
      %2456 = vmatpush1.bf16.msra.mxu0 0
      %2457 = vmatprep.subr.bf16.mxu0 0
      %2458 = vmatpush1.bf16.msra.mxu0 0
      %2459 = vmatprep.subr.bf16.mxu0 0
      %2460 = vmatpush1.bf16.msra.mxu0 0
      %2461 = vmatprep.subr.bf16.mxu0 0
      %2462 = vmatpush1.bf16.msra.mxu0 0
      %2463 = vmatprep.subr.bf16.mxu0 0
      %2464 = vmatpush1.bf16.msra.mxu0 0
      %2465 = vmatprep.subr.bf16.mxu0 0
      %2466 = vmatpush1.bf16.msra.mxu0 0
      %2467 = vmatprep.subr.bf16.mxu0 0
      %2468 = vmatpush1.bf16.msra.mxu0 0
      %2469 = vmatprep.mubr.bf16.mxu0 0
      %2470 = vmatmul.mubr.bf16.gmra.mrb[0].mxu0 %v2432
      %v2471 = vpop.f32.mrb[0].mxu0
      %v2472 = vadd.f32 0.0, %v2471
      %v2473 = vpop.f32.mrb[0].mxu0
      %v2474 = vpop.f32.mrb[0].mxu0
      %v2475 = vpop.f32.mrb[0].mxu0
      %2476 = vdwg.mxu0
      %v2477 = vpack.c.bf16 %v2472, %v2472
      %v2479 = vsel %vm1232, %v2477, 0
      %v2482 = vsel %vm1347, %v2037, 0
      %2484 = vmatprep.subr.bf16.mxu0 0
      %2485 = vmatpush1.bf16.msra.mxu0 %v2482
      %2486 = vmatprep.subr.bf16.mxu0 0
      %2487 = vmatpush1.bf16.msra.mxu0 0
      %2488 = vmatprep.subr.bf16.mxu0 0
      %2489 = vmatpush1.bf16.msra.mxu0 0
      %2490 = vmatprep.subr.bf16.mxu0 0
      %2491 = vmatpush1.bf16.msra.mxu0 0
      %2492 = vmatprep.subr.bf16.mxu0 0
      %2493 = vmatpush1.bf16.msra.mxu0 0
      %2494 = vmatprep.subr.bf16.mxu0 0
      %2495 = vmatpush1.bf16.msra.mxu0 0
      %2496 = vmatprep.subr.bf16.mxu0 0
      %2497 = vmatpush1.bf16.msra.mxu0 0
      %2498 = vmatprep.subr.bf16.mxu0 0
      %2499 = vmatpush1.bf16.msra.mxu0 0
      %2500 = vmatprep.subr.bf16.mxu0 0
      %2501 = vmatpush1.bf16.msra.mxu0 0
      %2502 = vmatprep.subr.bf16.mxu0 0
      %2503 = vmatpush1.bf16.msra.mxu0 0
      %2504 = vmatprep.subr.bf16.mxu0 0
      %2505 = vmatpush1.bf16.msra.mxu0 0
      %2506 = vmatprep.subr.bf16.mxu0 0
      %2507 = vmatpush1.bf16.msra.mxu0 0
      %2508 = vmatprep.subr.bf16.mxu0 0
      %2509 = vmatpush1.bf16.msra.mxu0 0
      %2510 = vmatprep.subr.bf16.mxu0 0
      %2511 = vmatpush1.bf16.msra.mxu0 0
      %2512 = vmatprep.subr.bf16.mxu0 0
      %2513 = vmatpush1.bf16.msra.mxu0 0
      %2514 = vmatprep.subr.bf16.mxu0 0
      %2515 = vmatpush1.bf16.msra.mxu0 0
      %2516 = vmatprep.mubr.bf16.mxu0 0
      %2517 = vmatmul.mubr.bf16.gmra.mrb[0].mxu0 %v2479
      %v2518 = vpop.f32.mrb[0].mxu0
      %v2519 = vadd.f32 0.0, %v2518
      %v2520 = vpop.f32.mrb[0].mxu0
      %v2521 = vpop.f32.mrb[0].mxu0
      %v2522 = vpop.f32.mrb[0].mxu0
      %2523 = vdwg.mxu0
      %v2524 = vadd.f32 %v2365, %v2519
      %2525 = vrot.lane.b32.xlu0 %v2040, 104
      %v2526 = vpop.permute.xlu0 %2525
      %2527 = vrot.lane.b32.xlu0 %v2041, 104
      %v2528 = vpop.permute.xlu0 %2527
      %v2530 = vsel %vm1232, %v2526, 0
      %v2533 = vsel %vm1232, %v2528, 0
      %2535 = vmatprep.subr.bf16.mxu0 0
      %2536 = vmatpush1.bf16.xpose.msra.mxu0 %v2533
      %2537 = vmatprep.subr.bf16.mxu0 0
      %2538 = vmatpush1.bf16.xpose.msra.mxu0 0
      %2539 = vmatprep.subr.bf16.mxu0 0
      %2540 = vmatpush1.bf16.xpose.msra.mxu0 0
      %2541 = vmatprep.subr.bf16.mxu0 0
      %2542 = vmatpush1.bf16.xpose.msra.mxu0 0
      %2543 = vmatprep.subr.bf16.mxu0 0
      %2544 = vmatpush1.bf16.xpose.msra.mxu0 0
      %2545 = vmatprep.subr.bf16.mxu0 0
      %2546 = vmatpush1.bf16.xpose.msra.mxu0 0
      %2547 = vmatprep.subr.bf16.mxu0 0
      %2548 = vmatpush1.bf16.xpose.msra.mxu0 0
      %2549 = vmatprep.subr.bf16.mxu0 0
      %2550 = vmatpush1.bf16.xpose.msra.mxu0 0
      %2551 = vmatprep.subr.bf16.mxu0 0
      %2552 = vmatpush1.bf16.xpose.msra.mxu0 0
      %2553 = vmatprep.subr.bf16.mxu0 0
      %2554 = vmatpush1.bf16.xpose.msra.mxu0 0
      %2555 = vmatprep.subr.bf16.mxu0 0
      %2556 = vmatpush1.bf16.xpose.msra.mxu0 0
      %2557 = vmatprep.subr.bf16.mxu0 0
      %2558 = vmatpush1.bf16.xpose.msra.mxu0 0
      %2559 = vmatprep.subr.bf16.mxu0 0
      %2560 = vmatpush1.bf16.xpose.msra.mxu0 0
      %2561 = vmatprep.subr.bf16.mxu0 0
      %2562 = vmatpush1.bf16.xpose.msra.mxu0 0
      %2563 = vmatprep.subr.bf16.mxu0 0
      %2564 = vmatpush1.bf16.xpose.msra.mxu0 0
      %2565 = vmatprep.subr.bf16.mxu0 0
      %2566 = vmatpush1.bf16.xpose.msra.mxu0 0
      %2567 = vmatprep.mubr.bf16.mxu0 0
      %2568 = vmatmul.mubr.bf16.gmra.mrb[0].mxu0 %v2530
      %v2569 = vpop.f32.mrb[0].mxu0
      %v2570 = vadd.f32 0.0, %v2569
      %v2571 = vpop.f32.mrb[0].mxu0
      %v2572 = vpop.f32.mrb[0].mxu0
      %v2573 = vpop.f32.mrb[0].mxu0
      %2574 = vdwg.mxu0
      %v2575 = vmul.f32 %v2570, 0.35355338
      %v2576 = vsel %vm2096, %v2575, -inf
      %2577 = vmax.xlane.f32.xlu0 %v2576
      %v2578 = vpop.xlane.xlu0 %2577
      %v2579 = vsub.f32 %v2575, %v2578
      %v2580 = vmul.f32 %v2579, 1.442695
      %v2581 = vpow.pop %v2580
      %v2582 = vsel %vm2096, %v2581, 0.0
      %2583 = vadd.xlane.f32.xlu0 %v2582
      %v2584 = vpop.xlane.xlu0 %2583
      %v2585 = vrcp.pop %v2584
      %v2586 = vmul.f32 %v2581, %v2585
      %v2587 = vpack.c.bf16 %v2586, %v2586
      %2588 = vrot.lane.b32.xlu0 %v2041, 72
      %v2589 = vpop.permute.xlu0 %2588
      %v2591 = vsel %vm1232, %v2587, 0
      %v2594 = vsel %vm1347, %v2589, 0
      %2596 = vmatprep.subr.bf16.mxu0 0
      %2597 = vmatpush1.bf16.msra.mxu0 %v2594
      %2598 = vmatprep.subr.bf16.mxu0 0
      %2599 = vmatpush1.bf16.msra.mxu0 0
      %2600 = vmatprep.subr.bf16.mxu0 0
      %2601 = vmatpush1.bf16.msra.mxu0 0
      %2602 = vmatprep.subr.bf16.mxu0 0
      %2603 = vmatpush1.bf16.msra.mxu0 0
      %2604 = vmatprep.subr.bf16.mxu0 0
      %2605 = vmatpush1.bf16.msra.mxu0 0
      %2606 = vmatprep.subr.bf16.mxu0 0
      %2607 = vmatpush1.bf16.msra.mxu0 0
      %2608 = vmatprep.subr.bf16.mxu0 0
      %2609 = vmatpush1.bf16.msra.mxu0 0
      %2610 = vmatprep.subr.bf16.mxu0 0
      %2611 = vmatpush1.bf16.msra.mxu0 0
      %2612 = vmatprep.subr.bf16.mxu0 0
      %2613 = vmatpush1.bf16.msra.mxu0 0
      %2614 = vmatprep.subr.bf16.mxu0 0
      %2615 = vmatpush1.bf16.msra.mxu0 0
      %2616 = vmatprep.subr.bf16.mxu0 0
      %2617 = vmatpush1.bf16.msra.mxu0 0
      %2618 = vmatprep.subr.bf16.mxu0 0
      %2619 = vmatpush1.bf16.msra.mxu0 0
      %2620 = vmatprep.subr.bf16.mxu0 0
      %2621 = vmatpush1.bf16.msra.mxu0 0
      %2622 = vmatprep.subr.bf16.mxu0 0
      %2623 = vmatpush1.bf16.msra.mxu0 0
      %2624 = vmatprep.subr.bf16.mxu0 0
      %2625 = vmatpush1.bf16.msra.mxu0 0
      %2626 = vmatprep.subr.bf16.mxu0 0
      %2627 = vmatpush1.bf16.msra.mxu0 0
      %2628 = vmatprep.mubr.bf16.mxu0 0
      %2629 = vmatmul.mubr.bf16.gmra.mrb[0].mxu0 %v2591
      %v2630 = vpop.f32.mrb[0].mxu0
      %v2631 = vadd.f32 0.0, %v2630
      %v2632 = vpop.f32.mrb[0].mxu0
      %v2633 = vpop.f32.mrb[0].mxu0
      %v2634 = vpop.f32.mrb[0].mxu0
      %2635 = vdwg.mxu0
      %v2636 = vpack.c.bf16 %v2631, %v2631
      %v2638 = vsel %vm1232, %v2636, 0
      %v2641 = vsel %vm1347, %v2038, 0
      %2643 = vmatprep.subr.bf16.mxu0 0
      %2644 = vmatpush1.bf16.msra.mxu0 %v2641
      %2645 = vmatprep.subr.bf16.mxu0 0
      %2646 = vmatpush1.bf16.msra.mxu0 0
      %2647 = vmatprep.subr.bf16.mxu0 0
      %2648 = vmatpush1.bf16.msra.mxu0 0
      %2649 = vmatprep.subr.bf16.mxu0 0
      %2650 = vmatpush1.bf16.msra.mxu0 0
      %2651 = vmatprep.subr.bf16.mxu0 0
      %2652 = vmatpush1.bf16.msra.mxu0 0
      %2653 = vmatprep.subr.bf16.mxu0 0
      %2654 = vmatpush1.bf16.msra.mxu0 0
      %2655 = vmatprep.subr.bf16.mxu0 0
      %2656 = vmatpush1.bf16.msra.mxu0 0
      %2657 = vmatprep.subr.bf16.mxu0 0
      %2658 = vmatpush1.bf16.msra.mxu0 0
      %2659 = vmatprep.subr.bf16.mxu0 0
      %2660 = vmatpush1.bf16.msra.mxu0 0
      %2661 = vmatprep.subr.bf16.mxu0 0
      %2662 = vmatpush1.bf16.msra.mxu0 0
      %2663 = vmatprep.subr.bf16.mxu0 0
      %2664 = vmatpush1.bf16.msra.mxu0 0
      %2665 = vmatprep.subr.bf16.mxu0 0
      %2666 = vmatpush1.bf16.msra.mxu0 0
      %2667 = vmatprep.subr.bf16.mxu0 0
      %2668 = vmatpush1.bf16.msra.mxu0 0
      %2669 = vmatprep.subr.bf16.mxu0 0
      %2670 = vmatpush1.bf16.msra.mxu0 0
      %2671 = vmatprep.subr.bf16.mxu0 0
      %2672 = vmatpush1.bf16.msra.mxu0 0
      %2673 = vmatprep.subr.bf16.mxu0 0
      %2674 = vmatpush1.bf16.msra.mxu0 0
      %2675 = vmatprep.mubr.bf16.mxu0 0
      %2676 = vmatmul.mubr.bf16.gmra.mrb[0].mxu0 %v2638
      %v2677 = vpop.f32.mrb[0].mxu0
      %v2678 = vadd.f32 0.0, %v2677
      %v2679 = vpop.f32.mrb[0].mxu0
      %v2680 = vpop.f32.mrb[0].mxu0
      %v2681 = vpop.f32.mrb[0].mxu0
      %2682 = vdwg.mxu0
      %v2683 = vadd.f32 %v2524, %v2678
      %v2684 = vadd.f32 %v1900, %v2683
      %v2685 = vld [vmem:[%s1108] sm:$0x1]
      %v2686 = vld [vmem:[%s1111] sm:$0x1]
      %v2687 = vsel %vm1872, %v2684, 0.0
      %2688 = vadd.xlane.f32.xlu0 %v2687
      %v2689 = vpop.xlane.xlu0 %2688
      %v2690 = vmul.f32 %v2689, %v1876
      %v2691 = vsub.f32 %v2684, %v2690
      %v2692 = vmul.f32 %v2691, %v2691
      %v2693 = vsel %vm1872, %v2692, 0.0
      %2694 = vadd.xlane.f32.xlu0 %v2693
      %v2695 = vpop.xlane.xlu0 %2694
      %v2696 = vmul.f32 %v2695, %v1876
      %v2697 = vadd.f32 %v2696, 1e-05
      %v2698 = vrsqrt.pop %v2697
      %v2699 = vmul.f32 %v2691, %v2698
      %v2701 = vlaneseq
      %v2702 = vshrl.u32 %v2701, 7
      %v2703 = vsub.s32 0, %v2702
      %v2704 = vrot.slane %v2685, %v2703
      %v2706 = vmul.f32 %v2699, %v2704
      %v2708 = vlaneseq
      %v2709 = vshrl.u32 %v2708, 7
      %v2710 = vsub.s32 0, %v2709
      %v2711 = vrot.slane %v2686, %v2710
      %v2713 = vadd.f32 %v2706, %v2711
      %v2714 = vld [vmem:[%s1116] sm:$0xf]
      %v2715 = vld [vmem:[%s1116 + $0x4] sm:$0xf]
      %v2716 = vld [vmem:[%s1116 + $0x8] sm:$0xf]
      %v2717 = vld [vmem:[%s1116 + $0xc] sm:$0xf]
      %v2718 = vld [vmem:[%s1119] sm:$0x1]
      %v2719 = vpack.c.bf16 %v2713, %v2713
      %v2721 = vlaneseq
      %v2722 = vshrl.u32 %v2721, 7
      %v2723 = vsub.s32 0, %v2722
      %v2724 = vrot.slane %v2718, %v2723
      %v2730 = vunpack.c.l.b16 %v2714
      %v2731 = vunpack.c.l.b16 %v2715
      %v2732 = vunpack.c.l.b16 %v2716
      %v2733 = vunpack.c.l.b16 %v2717
      %v2734 = vpack.c.b16 %v2731, %v2730
      %v2735 = vpack.c.b16 %v2733, %v2732
      %v2739 = vsel %vm1172, %v2719, 0
      %2741 = vmatprep.subr.bf16.mxu0 0
      %2742 = vmatpush1.bf16.msra.mxu0 %v2734
      %2743 = vmatprep.subr.bf16.mxu0 0
      %2744 = vmatpush1.bf16.msra.mxu0 %v2735
      %2745 = vmatprep.subr.bf16.mxu0 0
      %2746 = vmatpush1.bf16.msra.mxu0 0
      %2747 = vmatprep.subr.bf16.mxu0 0
      %2748 = vmatpush1.bf16.msra.mxu0 0
      %2749 = vmatprep.subr.bf16.mxu0 0
      %2750 = vmatpush1.bf16.msra.mxu0 0
      %2751 = vmatprep.subr.bf16.mxu0 0
      %2752 = vmatpush1.bf16.msra.mxu0 0
      %2753 = vmatprep.subr.bf16.mxu0 0
      %2754 = vmatpush1.bf16.msra.mxu0 0
      %2755 = vmatprep.subr.bf16.mxu0 0
      %2756 = vmatpush1.bf16.msra.mxu0 0
      %2757 = vmatprep.subr.bf16.mxu0 0
      %2758 = vmatpush1.bf16.msra.mxu0 0
      %2759 = vmatprep.subr.bf16.mxu0 0
      %2760 = vmatpush1.bf16.msra.mxu0 0
      %2761 = vmatprep.subr.bf16.mxu0 0
      %2762 = vmatpush1.bf16.msra.mxu0 0
      %2763 = vmatprep.subr.bf16.mxu0 0
      %2764 = vmatpush1.bf16.msra.mxu0 0
      %2765 = vmatprep.subr.bf16.mxu0 0
      %2766 = vmatpush1.bf16.msra.mxu0 0
      %2767 = vmatprep.subr.bf16.mxu0 0
      %2768 = vmatpush1.bf16.msra.mxu0 0
      %2769 = vmatprep.subr.bf16.mxu0 0
      %2770 = vmatpush1.bf16.msra.mxu0 0
      %2771 = vmatprep.subr.bf16.mxu0 0
      %2772 = vmatpush1.bf16.msra.mxu0 0
      %2773 = vmatprep.mubr.bf16.mxu0 0
      %2774 = vmatmul.mubr.bf16.gmra.mrb[0].mxu0 %v2739
      %v2775 = vpop.f32.mrb[0].mxu0
      %v2776 = vadd.f32 %v2724, %v2775
      %v2777 = vpop.f32.mrb[0].mxu0
      %v2778 = vpop.f32.mrb[0].mxu0
      %v2779 = vpop.f32.mrb[0].mxu0
      %2780 = vdwg.mxu0
      %v2781 = vmax.f32 %v2776, 0.0
      %v2782 = vld [vmem:[%s1124] sm:$0xf]
      %v2783 = vld [vmem:[%s1124 + $0x4] sm:$0xf]
      %v2784 = vld [vmem:[%s1124 + $0x8] sm:$0xf]
      %v2785 = vld [vmem:[%s1124 + $0xc] sm:$0xf]
      %v2786 = vld [vmem:[%s1124 + $0x10] sm:$0xf]
      %v2787 = vld [vmem:[%s1124 + $0x14] sm:$0xf]
      %v2788 = vld [vmem:[%s1124 + $0x18] sm:$0xf]
      %v2789 = vld [vmem:[%s1124 + $0x1c] sm:$0xf]
      %v2790 = vld [vmem:[%s1127] sm:$0x1]
      %v2791 = vpack.c.bf16 %v2781, %v2781
      %v2793 = vlaneseq
      %v2794 = vshrl.u32 %v2793, 7
      %v2795 = vsub.s32 0, %v2794
      %v2796 = vrot.slane %v2790, %v2795
      %v2806 = vunpack.c.l.b16 %v2782
      %v2807 = vunpack.c.l.b16 %v2783
      %v2808 = vunpack.c.l.b16 %v2784
      %v2809 = vunpack.c.l.b16 %v2785
      %v2810 = vunpack.c.l.b16 %v2786
      %v2811 = vunpack.c.l.b16 %v2787
      %v2812 = vunpack.c.l.b16 %v2788
      %v2813 = vunpack.c.l.b16 %v2789
      %v2814 = vpack.c.b16 %v2807, %v2806
      %v2815 = vpack.c.b16 %v2809, %v2808
      %v2816 = vpack.c.b16 %v2811, %v2810
      %v2817 = vpack.c.b16 %v2813, %v2812
      %vm2822 = vcmask 523264
      %v2824 = vsel %vm2822, %v2791, 0
      %2826 = vmatprep.subr.bf16.mxu0 0
      %2827 = vmatpush1.bf16.msra.mxu0 %v2814
      %2828 = vmatprep.subr.bf16.mxu0 0
      %2829 = vmatpush1.bf16.msra.mxu0 %v2815
      %2830 = vmatprep.subr.bf16.mxu0 0
      %2831 = vmatpush1.bf16.msra.mxu0 %v2816
      %2832 = vmatprep.subr.bf16.mxu0 0
      %2833 = vmatpush1.bf16.msra.mxu0 %v2817
      %2834 = vmatprep.subr.bf16.mxu0 0
      %2835 = vmatpush1.bf16.msra.mxu0 0
      %2836 = vmatprep.subr.bf16.mxu0 0
      %2837 = vmatpush1.bf16.msra.mxu0 0
      %2838 = vmatprep.subr.bf16.mxu0 0
      %2839 = vmatpush1.bf16.msra.mxu0 0
      %2840 = vmatprep.subr.bf16.mxu0 0
      %2841 = vmatpush1.bf16.msra.mxu0 0
      %2842 = vmatprep.subr.bf16.mxu0 0
      %2843 = vmatpush1.bf16.msra.mxu0 0
      %2844 = vmatprep.subr.bf16.mxu0 0
      %2845 = vmatpush1.bf16.msra.mxu0 0
      %2846 = vmatprep.subr.bf16.mxu0 0
      %2847 = vmatpush1.bf16.msra.mxu0 0
      %2848 = vmatprep.subr.bf16.mxu0 0
      %2849 = vmatpush1.bf16.msra.mxu0 0
      %2850 = vmatprep.subr.bf16.mxu0 0
      %2851 = vmatpush1.bf16.msra.mxu0 0
      %2852 = vmatprep.subr.bf16.mxu0 0
      %2853 = vmatpush1.bf16.msra.mxu0 0
      %2854 = vmatprep.subr.bf16.mxu0 0
      %2855 = vmatpush1.bf16.msra.mxu0 0
      %2856 = vmatprep.subr.bf16.mxu0 0
      %2857 = vmatpush1.bf16.msra.mxu0 0
      %2858 = vmatprep.mubr.bf16.mxu0 0
      %2859 = vmatmul.mubr.bf16.gmra.mrb[0].mxu0 %v2824
      %v2860 = vpop.f32.mrb[0].mxu0
      %v2861 = vadd.f32 %v2796, %v2860
      %v2862 = vpop.f32.mrb[0].mxu0
      %v2863 = vpop.f32.mrb[0].mxu0
      %v2864 = vpop.f32.mrb[0].mxu0
      %2865 = vdwg.mxu0
      %v2866 = vadd.f32 %v2713, %v2861
      %v2867 = vld [vmem:[%s1130] sm:$0x1]
      %v2868 = vld [vmem:[%s1133] sm:$0x1]
      %v2869 = vsel %vm1872, %v2866, 0.0
      %2870 = vadd.xlane.f32.xlu0 %v2869
      %v2871 = vpop.xlane.xlu0 %2870
      %v2872 = vmul.f32 %v2871, %v1876
      %v2873 = vsub.f32 %v2866, %v2872
      %v2874 = vmul.f32 %v2873, %v2873
      %v2875 = vsel %vm1872, %v2874, 0.0
      %2876 = vadd.xlane.f32.xlu0 %v2875
      %v2877 = vpop.xlane.xlu0 %2876
      %v2878 = vmul.f32 %v2877, %v1876
      %v2879 = vadd.f32 %v2878, 1e-05
      %v2880 = vrsqrt.pop %v2879
      %v2881 = vmul.f32 %v2873, %v2880
      %v2883 = vlaneseq
      %v2884 = vshrl.u32 %v2883, 7
      %v2885 = vsub.s32 0, %v2884
      %v2886 = vrot.slane %v2867, %v2885
      %v2888 = vmul.f32 %v2881, %v2886
      %v2890 = vlaneseq
      %v2891 = vshrl.u32 %v2890, 7
      %v2892 = vsub.s32 0, %v2891
      %v2893 = vrot.slane %v2868, %v2892
      %v2895 = vadd.f32 %v2888, %v2893
      %2896 = vst.msk [vmem:[#allocation2] sm:$0x3f] %vm1872, %v2895
      %p2897 = scmp.eq.s32.totalorder %s42, 1
      // Predicated region
      $region129: #{transformer_forward.3} parent=123 // pred_check
        %p2898 = pneg %p2897
      $region130: #{transformer_forward.3} parent=123 // pred_check_branch
        %2900 = sbr.rel (%p2898) target = $region132
      $region131: #{transformer_forward.3} parent=123 // pred_region
        %v2901 = vld [vmem:[%s22] sm:$0x1]
        %v2902 = vld [vmem:[%s23] sm:$0x1]
        %v2903 = vsel %vm1872, %v2895, 0.0
        %2904 = vadd.xlane.f32.xlu0 %v2903
        %v2905 = vpop.xlane.xlu0 %2904
        %v2906 = vmul.f32 %v2905, %v1876
        %v2907 = vsub.f32 %v2895, %v2906
        %v2908 = vmul.f32 %v2907, %v2907
        %v2909 = vsel %vm1872, %v2908, 0.0
        %2910 = vadd.xlane.f32.xlu0 %v2909
        %v2911 = vpop.xlane.xlu0 %2910
        %v2912 = vmul.f32 %v2911, %v1876
        %v2913 = vadd.f32 %v2912, 1e-05
        %v2914 = vrsqrt.pop %v2913
        %v2915 = vmul.f32 %v2907, %v2914
        %v2917 = vlaneseq
        %v2918 = vshrl.u32 %v2917, 7
        %v2919 = vsub.s32 0, %v2918
        %v2920 = vrot.slane %v2901, %v2919
        %v2922 = vmul.f32 %v2915, %v2920
        %v2924 = vlaneseq
        %v2925 = vshrl.u32 %v2924, 7
        %v2926 = vsub.s32 0, %v2925
        %v2927 = vrot.slane %v2902, %v2926
        %v2929 = vadd.f32 %v2922, %v2927
        %v2930 = vld [vmem:[%s24] sm:$0xf]
        %v2931 = vld [vmem:[%s24 + $0x4] sm:$0xf]
        %v2932 = vld [vmem:[%s24 + $0x8] sm:$0xf]
        %v2933 = vld [vmem:[%s24 + $0xc] sm:$0xf]
        %v2934 = vld [vmem:[%s25] sm:$0x1]
        %v2935 = vpack.c.bf16 %v2929, %v2929
        %v2937 = vlaneseq
        %v2938 = vshrl.u32 %v2937, 7
        %v2939 = vsub.s32 0, %v2938
        %v2940 = vrot.slane %v2934, %v2939
        %v2946 = vunpack.c.l.b16 %v2930
        %v2947 = vunpack.c.l.b16 %v2931
        %v2948 = vunpack.c.l.b16 %v2932
        %v2949 = vunpack.c.l.b16 %v2933
        %v2950 = vpack.c.b16 %v2947, %v2946
        %v2951 = vpack.c.b16 %v2949, %v2948
        %v2955 = vsel %vm1172, %v2935, 0
        %2957 = vmatprep.subr.bf16.mxu0 0
        %2958 = vmatpush1.bf16.msra.mxu0 %v2950
        %2959 = vmatprep.subr.bf16.mxu0 0
        %2960 = vmatpush1.bf16.msra.mxu0 %v2951
        %2961 = vmatprep.subr.bf16.mxu0 0
        %2962 = vmatpush1.bf16.msra.mxu0 0
        %2963 = vmatprep.subr.bf16.mxu0 0
        %2964 = vmatpush1.bf16.msra.mxu0 0
        %2965 = vmatprep.subr.bf16.mxu0 0
        %2966 = vmatpush1.bf16.msra.mxu0 0
        %2967 = vmatprep.subr.bf16.mxu0 0
        %2968 = vmatpush1.bf16.msra.mxu0 0
        %2969 = vmatprep.subr.bf16.mxu0 0
        %2970 = vmatpush1.bf16.msra.mxu0 0
        %2971 = vmatprep.subr.bf16.mxu0 0
        %2972 = vmatpush1.bf16.msra.mxu0 0
        %2973 = vmatprep.subr.bf16.mxu0 0
        %2974 = vmatpush1.bf16.msra.mxu0 0
        %2975 = vmatprep.subr.bf16.mxu0 0
        %2976 = vmatpush1.bf16.msra.mxu0 0
        %2977 = vmatprep.subr.bf16.mxu0 0
        %2978 = vmatpush1.bf16.msra.mxu0 0
        %2979 = vmatprep.subr.bf16.mxu0 0
        %2980 = vmatpush1.bf16.msra.mxu0 0
        %2981 = vmatprep.subr.bf16.mxu0 0
        %2982 = vmatpush1.bf16.msra.mxu0 0
        %2983 = vmatprep.subr.bf16.mxu0 0
        %2984 = vmatpush1.bf16.msra.mxu0 0
        %2985 = vmatprep.subr.bf16.mxu0 0
        %2986 = vmatpush1.bf16.msra.mxu0 0
        %2987 = vmatprep.subr.bf16.mxu0 0
        %2988 = vmatpush1.bf16.msra.mxu0 0
        %2989 = vmatprep.mubr.bf16.mxu0 0
        %2990 = vmatmul.mubr.bf16.gmra.mrb[0].mxu0 %v2955
        %v2991 = vpop.f32.mrb[0].mxu0
        %v2992 = vadd.f32 %v2940, %v2991
        %v2993 = vpop.f32.mrb[0].mxu0
        %v2994 = vpop.f32.mrb[0].mxu0
        %v2995 = vpop.f32.mrb[0].mxu0
        %2996 = vdwg.mxu0
        %2997 = vst [vmem:[%s1137] sm:$0x3f] %v2992
      $region132: #{transformer_forward.3} parent=123 // pred_fallthru
        _
      %p2998 = scmp.lt.s32.totalorder %s41, 1
      %s2999 = scalar_select %p2998, %s41, 1
      %s3000 = smul.addr %s2999, 8
      %s3001 = scalar_lea.vmem %s26, %s3000
      // Predicated region
      $region133: #{transformer_forward.3} parent=123 // pred_check
        %p3002 = pneg %p723
      $region134: #{transformer_forward.3} parent=123 // pred_check_branch
        %3004 = sbr.rel (%p3002) target = $region136
      $region135: #{transformer_forward.3} parent=123 // pred_region
        _
      $region136: #{transformer_forward.3} parent=123 // pred_fallthru
        _
    $region124: #{transformer_forward.3} parent=5 // pred_fallthru
      _
    %p3005 = scmp.le.s32.totalorder 2, %s32
    // Predicated region
    $region137: #{transformer_forward.3} parent=5 // pred_check
      %p3006 = pneg %p3005
    $region138: #{transformer_forward.3} parent=5 // pred_check_branch
      %3008 = sbr.rel (%p3006) target = $region140
    $region139: #{transformer_forward.3} parent=5 // pred_region
      %s3009 = ssub.s32 %s32, 2
      // Predicated region
      $region141: #{transformer_forward.3} parent=139 // pred_check
        %p3010 = pneg %p729
      $region142: #{transformer_forward.3} parent=139 // pred_check_branch
        %3012 = sbr.rel (%p3010) target = $region144
      $region143: #{transformer_forward.3} parent=139 // pred_region
        %p3013 = scmp.lt.s32.totalorder %s43, 1
        %s3014 = scalar_select %p3013, %s43, 1
        %s3015 = smul.addr %s3014, 8
        %s3016 = scalar_lea.vmem %s26, %s3015
      $region144: #{transformer_forward.3} parent=139 // pred_fallthru
        _
    $region140: #{transformer_forward.3} parent=5 // pred_fallthru
      _
  $region6: #{transformer_forward.3} parent=0 // loop_footer
    %s36 = sadd.s32 1, %s32
  $region7: #{transformer_forward.3} parent=0 // loop_footer_branch
    %31 = sbr.rel target = $region3
  $region8: #{transformer_forward.3} parent=0 // loop_exit
    _

</llo_original>
